<compile_context>
chip_gen: v7x
topology: tpu7x:2x2x1
jax: 0.10.0
libtpu: 0.0.40
codegen_flags: <defaults>
</compile_context>

<pallas_src>
import functools
import math

import jax
import jax.numpy as jnp
from jax.experimental import pallas as pl
from jax.experimental.pallas import tpu as pltpu

# ----------------------------- config (small) -------------------------------
VOCAB     = 64
VOCAB_PAD = 128          # lane-pad the vocab projection to a full 128-lane slab
D_MODEL   = 32
N_HEADS   = 4
D_HEAD    = D_MODEL // N_HEADS
D_FF      = 64
N_LAYERS  = 2
MAX_SEQ   = 16
LN_EPS    = 1e-5
AUG       = 8            # ones-column augmentation width (carries the QKV bias)

BATCH = 2
SEQ   = 8

# ----------------------------- slab layout ----------------------------------
SLAB_LANES   = 128
EMBED_ROW    = 0                              # (VOCAB, D_MODEL)
PE_ROW       = EMBED_ROW + VOCAB              # (MAX_SEQ, D_MODEL)
OUTW_ROW     = PE_ROW + MAX_SEQ               # (D_MODEL, VOCAB_PAD)
LAYER_W_ROW0 = OUTW_ROW + D_MODEL             # per-layer FFN weights start here
LAYER_W_ROWS = D_MODEL + D_FF                 # w1_t rows then w2_t rows
WSLAB_ROWS   = LAYER_W_ROW0 + N_LAYERS * LAYER_W_ROWS
BSLAB_ROWS   = N_LAYERS * 8 + 8               # 8 rows per layer + out-bias row


# ------------------------------- kernel --------------------------------------
def _layer_norm(x, g, b, eps=LN_EPS):
    mu = jnp.mean(x, axis=-1, keepdims=True)
    xc = x - mu
    var = jnp.mean(xc * xc, axis=-1, keepdims=True)
    return xc * jax.lax.rsqrt(var + eps) * g + b


def fused_forward_kernel(ids_ref, wslab_ref, bslab_ref, wqkv_ref, wo_ref,
                         out_ref, *, batch, seq):
    """Embedding + PE + all encoder layers + padded vocab projection.

    ids_ref   : (B*S, 1)  int32 token ids
    wslab_ref : (WSLAB_ROWS, 128) matrix slab (embed | pe | out_w | ffn weights)
    bslab_ref : (BSLAB_ROWS, 128) bias / LN slab (one vector per row)
    wqkv_ref  : (N_LAYERS*3H, D+AUG, Dh) head-major augmented QKV weights
                (scale folded into Q, bias folded into row D)
    wo_ref    : (N_LAYERS*H, Dh, D) head-major output-projection weights
    out_ref   : (B*S, VOCAB_PAD) padded logits
    """
    BS = batch * seq
    D = D_MODEL
    H = N_HEADS
    Dh = D_HEAD

    # ---- token embedding as a one-hot matmul (MXU) + positional encoding ----
    ids = ids_ref[...]                                                # (BS, 1)
    vocab_iota = jax.lax.broadcasted_iota(jnp.int32, (BS, VOCAB), 1)
    one_hot = (ids == vocab_iota).astype(jnp.float32)                 # (BS, V)
    embed = wslab_ref[EMBED_ROW:EMBED_ROW + VOCAB, :D]                # (V, D)
    x = jnp.dot(one_hot, embed, preferred_element_type=jnp.float32)   # (BS, D)
    pe = wslab_ref[PE_ROW:PE_ROW + seq, :D]                           # (S, D)
    x = x + jnp.concatenate([pe] * batch, axis=0)                     # (BS, D)
    # dropout == identity (eval)

    # ---- block-diagonal mask so batches never attend across each other ------
    row_i = jax.lax.broadcasted_iota(jnp.int32, (BS, 1), 0).astype(jnp.float32)
    col_i = jax.lax.broadcasted_iota(jnp.int32, (1, BS), 1).astype(jnp.float32)
    row_b = jnp.floor(row_i * (1.0 / seq))
    col_b = jnp.floor(col_i * (1.0 / seq))
    neg_mask = jnp.where(row_b == col_b, 0.0, -1e30).astype(jnp.float32)  # (BS,BS)

    ones_aug = jnp.ones((BS, AUG), jnp.float32)                       # hoisted

    for l in range(N_LAYERS):                                         # static unroll
        wqkv_h = wqkv_ref[l * 3 * H:(l + 1) * 3 * H, :, :]            # (3H, D+AUG, Dh)
        wo_h = wo_ref[l * H:(l + 1) * H, :, :]                        # (H, Dh, D)
        br = l * 8
        bo  = bslab_ref[br + 0:br + 1, :D]
        g1  = bslab_ref[br + 1:br + 2, :D]
        be1 = bslab_ref[br + 2:br + 3, :D]
        g2  = bslab_ref[br + 3:br + 4, :D]
        be2 = bslab_ref[br + 4:br + 5, :D]
        b1  = bslab_ref[br + 5:br + 6, :D_FF]
        b2  = bslab_ref[br + 6:br + 7, :D]

        # ---- multi-head self-attention (heads batched on the MXU) ----------
        x_aug = jnp.concatenate([x, ones_aug], axis=1)                # (BS, D+AUG)
        xh = jnp.broadcast_to(x_aug, (3 * H, BS, D + AUG))            # (3H, BS, D+AUG)
        qkv = jnp.einsum('hnd,hde->hne', xh, wqkv_h,
                         preferred_element_type=jnp.float32)          # (3H, BS, Dh)
        q = qkv[0:H]                                                  # (H, BS, Dh)
        k = qkv[H:2 * H]
        v = qkv[2 * H:3 * H]

        s = jnp.einsum('hqe,hke->hqk', q, k,
                       preferred_element_type=jnp.float32)            # (H, BS, BS)
        s = s + neg_mask                                              # batch mask
        s = s - jnp.max(s, axis=-1, keepdims=True)
        p = jnp.exp(s)
        p = p * pl.reciprocal(jnp.sum(p, axis=-1, keepdims=True), approx=True)
        ctx = jnp.einsum('hqk,hke->hqe', p, v,
                         preferred_element_type=jnp.float32)          # (H, BS, Dh)
        per_head = jnp.einsum('hqe,hed->hqd', ctx, wo_h,
                              preferred_element_type=jnp.float32)     # (H, BS, D)
        attn = per_head[0]
        for h in range(1, H):
            attn = attn + per_head[h]
        attn = attn + bo                                              # (BS, D)

        # ---- residual + LN1, FFN (relu), residual + LN2 (post-LN) ----------
        x = _layer_norm(x + attn, g1, be1)
        r0 = LAYER_W_ROW0 + l * LAYER_W_ROWS
        w1t = wslab_ref[r0:r0 + D, :D_FF]                             # (D, D_FF)
        w2t = wslab_ref[r0 + D:r0 + D + D_FF, :D]                     # (D_FF, D)
        ff = jnp.dot(x, w1t, preferred_element_type=jnp.float32) + b1
        ff = jnp.maximum(ff, 0.0)
        ff = jnp.dot(ff, w2t, preferred_element_type=jnp.float32) + b2
        x = _layer_norm(x + ff, g2, be2)

    # ---- lane-padded vocab projection (full-lane unmasked store) ------------
    outw = wslab_ref[OUTW_ROW:OUTW_ROW + D, :]                        # (D, 128)
    outb = bslab_ref[N_LAYERS * 8:N_LAYERS * 8 + 1, :]                # (1, 128)
    logits = jnp.dot(x, outw, preferred_element_type=jnp.float32) + outb
    out_ref[...] = logits.astype(out_ref.dtype)


# ------------------------------ pallas wrapper --------------------------------
def transformer_lm_forward(prepped, input_ids):
    B, S = input_ids.shape
    ids2d = input_ids.reshape(B * S, 1).astype(jnp.int32)

    vmem = pl.BlockSpec(memory_space=pltpu.MemorySpace.VMEM)
    kernel = functools.partial(fused_forward_kernel, batch=B, seq=S)

    logits_pad = pl.pallas_call(
        kernel,
        out_shape=jax.ShapeDtypeStruct((B * S, VOCAB_PAD), jnp.float32),
        in_specs=[vmem] * 5,
        out_specs=vmem,
    )(ids2d, prepped["wslab"], prepped["bslab"],
      prepped["wqkv3"], prepped["wo3"])

    # Module semantics require (B, S, VOCAB) logits; slice the lane padding.
    return logits_pad[:, :VOCAB].reshape(B, S, VOCAB)


# ------------------------------ parameters -----------------------------------
def sinusoidal_pe(max_len, d_model):
    position = jnp.arange(max_len, dtype=jnp.float32)[:, None]
    div_term = jnp.exp(jnp.arange(0, d_model, 2, dtype=jnp.float32)
                       * (-math.log(10000.0) / d_model))
    pe = jnp.zeros((1, max_len, d_model), jnp.float32)
    pe = pe.at[0, :, 0::2].set(jnp.sin(position * div_term))
    pe = pe.at[0, :, 1::2].set(jnp.cos(position * div_term))   # d_model is even
    return pe


def init_params(key):
    """Weights in PyTorch convention: Linear weight is (out_features, in_features)."""
    n_keys = 4 + N_LAYERS * 8
    keys = iter(jax.random.split(key, n_keys))

    def nrm(shape, scale=0.02):
        return (scale * jax.random.normal(next(keys), shape)).astype(jnp.float32)

    params = {
        "embed": nrm((VOCAB, D_MODEL), 1.0),
        "pe": sinusoidal_pe(MAX_SEQ, D_MODEL),
        "out_w": nrm((VOCAB, D_MODEL)),
        "out_b": nrm((1, VOCAB)),
        "layers": [],
    }
    for _ in range(N_LAYERS):
        params["layers"].append({
            "wqkv": nrm((3 * D_MODEL, D_MODEL)),
            "bqkv": nrm((1, 3 * D_MODEL)),
            "wo": nrm((D_MODEL, D_MODEL)),
            "bo": nrm((1, D_MODEL)),
            "ln1_g": jnp.ones((1, D_MODEL), jnp.float32),
            "ln1_b": jnp.zeros((1, D_MODEL), jnp.float32),
            "ln2_g": jnp.ones((1, D_MODEL), jnp.float32),
            "ln2_b": jnp.zeros((1, D_MODEL), jnp.float32),
            "w1": nrm((D_FF, D_MODEL)),
            "b1": nrm((1, D_FF)),
            "w2": nrm((D_MODEL, D_FF)),
            "b2": nrm((1, D_MODEL)),
        })
    return params


def prepare_params(params):
    """One-time conversion to kernel layout:
       * pack matrices / biases into lane-0-aligned slabs (5 kernel inputs),
       * head-major QKV weights with 1/sqrt(Dh) folded into Q and the bias
         folded into a ones-column augmentation row,
       * head-major Wo, zero-padded 128-lane vocab projection."""
    scale = 1.0 / math.sqrt(D_HEAD)

    # ---- matrix slab ----
    wslab = jnp.zeros((WSLAB_ROWS, SLAB_LANES), jnp.float32)
    wslab = wslab.at[EMBED_ROW:EMBED_ROW + VOCAB, :D_MODEL].set(params["embed"])
    wslab = wslab.at[PE_ROW:PE_ROW + MAX_SEQ, :D_MODEL].set(params["pe"][0])
    wslab = wslab.at[OUTW_ROW:OUTW_ROW + D_MODEL, :VOCAB].set(params["out_w"].T)
    for l, lp in enumerate(params["layers"]):
        r0 = LAYER_W_ROW0 + l * LAYER_W_ROWS
        wslab = wslab.at[r0:r0 + D_MODEL, :D_FF].set(lp["w1"].T)
        wslab = wslab.at[r0 + D_MODEL:r0 + D_MODEL + D_FF, :D_MODEL].set(lp["w2"].T)

    # ---- bias / LN slab ----
    bslab = jnp.zeros((BSLAB_ROWS, SLAB_LANES), jnp.float32)
    for l, lp in enumerate(params["layers"]):
        r0 = l * 8
        bslab = bslab.at[r0 + 0, :D_MODEL].set(lp["bo"][0])
        bslab = bslab.at[r0 + 1, :D_MODEL].set(lp["ln1_g"][0])
        bslab = bslab.at[r0 + 2, :D_MODEL].set(lp["ln1_b"][0])
        bslab = bslab.at[r0 + 3, :D_MODEL].set(lp["ln2_g"][0])
        bslab = bslab.at[r0 + 4, :D_MODEL].set(lp["ln2_b"][0])
        bslab = bslab.at[r0 + 5, :D_FF].set(lp["b1"][0])
        bslab = bslab.at[r0 + 6, :D_MODEL].set(lp["b2"][0])
    bslab = bslab.at[N_LAYERS * 8, :VOCAB].set(params["out_b"][0])

    # ---- head-major augmented QKV weights + head-major Wo ----
    wqkv_blocks, wo_blocks = [], []
    for lp in params["layers"]:
        wqkv = lp["wqkv"]                       # (3D, D) rows: Wq, Wk, Wv
        bqkv = lp["bqkv"][0]                    # (3D,)
        per_proj = []
        for p_idx in range(3):                  # 0:q, 1:k, 2:v
            W = wqkv[p_idx * D_MODEL:(p_idx + 1) * D_MODEL, :]   # (D, D)
            bvec = bqkv[p_idx * D_MODEL:(p_idx + 1) * D_MODEL]   # (D,)
            sc = scale if p_idx == 0 else 1.0   # fold attention scale into Q
            heads = []
            for h in range(N_HEADS):
                Wh = W[h * D_HEAD:(h + 1) * D_HEAD, :].T * sc    # (D, Dh)
                bh = bvec[h * D_HEAD:(h + 1) * D_HEAD] * sc      # (Dh,)
                aug = jnp.zeros((D_MODEL + AUG, D_HEAD), jnp.float32)
                aug = aug.at[:D_MODEL, :].set(Wh)
                aug = aug.at[D_MODEL, :].set(bh)                 # bias row
                heads.append(aug)
            per_proj.append(jnp.stack(heads, 0))                 # (H, D+AUG, Dh)
        wqkv_blocks.append(jnp.concatenate(per_proj, 0))         # (3H, D+AUG, Dh)

        wo_t = lp["wo"].T                                        # (D, D) (in, out)
        wo_heads = jnp.stack(
            [wo_t[h * D_HEAD:(h + 1) * D_HEAD, :] for h in range(N_HEADS)], 0)
        wo_blocks.append(wo_heads)                               # (H, Dh, D)

    return {
        "wslab": wslab,
        "bslab": bslab,
        "wqkv3": jnp.concatenate(wqkv_blocks, 0),   # (N_LAYERS*3H, D+AUG, Dh)
        "wo3": jnp.concatenate(wo_blocks, 0),       # (N_LAYERS*H, Dh, D)
    }


# --------------------------------- main ---------------------------------------
if __name__ == "__main__":
    key = jax.random.PRNGKey(0)
    pkey, ikey = jax.random.split(key)
    params = init_params(pkey)
    prepped = prepare_params(params)
    input_ids = jax.random.randint(ikey, (BATCH, SEQ), 0, VOCAB, dtype=jnp.int32)

    logits = jax.jit(transformer_lm_forward)(prepped, input_ids)
    jax.block_until_ready(logits)
    assert logits.shape == (BATCH, SEQ, VOCAB)
    print("KERNEL_OK")
</pallas_src>

<mosaic_0001>
module attributes {stable_mosaic.version = 11 : i64} {
  func.func @fused_forward_kernel(%arg0: memref<16x1xi32, #tpu.memory_space<vmem>>, %arg1: memref<304x128xf32, #tpu.memory_space<vmem>>, %arg2: memref<24x128xf32, #tpu.memory_space<vmem>>, %arg3: memref<24x40x8xf32, #tpu.memory_space<vmem>>, %arg4: memref<8x8x32xf32, #tpu.memory_space<vmem>>, %arg5: memref<16x128xf32, #tpu.memory_space<vmem>>) attributes {dimension_semantics = [], scalar_prefetch = 0 : i64, scratch_operands = 0 : i64, tpu.core_type = #tpu.core_type<tc>} {
    %c0 = arith.constant 0 : index
    %c0_0 = arith.constant 0 : index
    %0 = vector.load %arg0[%c0, %c0_0] : memref<16x1xi32, #tpu.memory_space<vmem>>, vector<16x1xi32>
    %1 = tpu.iota {dimensions = array<i32: 1>} : vector<16x64xi32>
    %2 = vector.broadcast %0 : vector<16x1xi32> to vector<16x64xi32>
    %3 = arith.cmpi eq, %2, %1 : vector<16x64xi32>
    %4 = arith.extui %3 : vector<16x64xi1> to vector<16x64xi32>
    %5 = arith.sitofp %4 : vector<16x64xi32> to vector<16x64xf32>
    %c0_1 = arith.constant 0 : index
    %c0_2 = arith.constant 0 : index
    %6 = vector.load %arg1[%c0_1, %c0_2] : memref<304x128xf32, #tpu.memory_space<vmem>>, vector<64x32xf32>
    %cst = arith.constant dense<0.000000e+00> : vector<16x32xf32>
    %7 = tpu.matmul %5, %6, %cst {dimension_numbers = #tpu.dot_dimension_numbers<[1], [0], [0], [1], [0, 0, 1, 1], [], []>} : vector<16x64xf32>, vector<64x32xf32>, vector<16x32xf32> -> vector<16x32xf32>
    %c64 = arith.constant 64 : index
    %c0_3 = arith.constant 0 : index
    %8 = vector.load %arg1[%c64, %c0_3] : memref<304x128xf32, #tpu.memory_space<vmem>>, vector<8x32xf32>
    %9 = tpu.concatenate %8, %8 in 0 : vector<8x32xf32>, vector<8x32xf32> -> vector<16x32xf32>
    %10 = arith.addf %7, %9 : vector<16x32xf32>
    %11 = tpu.iota {dimensions = array<i32: 0>} : vector<16x1xi32>
    %12 = arith.sitofp %11 : vector<16x1xi32> to vector<16x1xf32>
    %13 = tpu.iota {dimensions = array<i32: 1>} : vector<1x16xi32>
    %14 = arith.sitofp %13 : vector<1x16xi32> to vector<1x16xf32>
    %cst_4 = arith.constant 1.250000e-01 : f32
    %15 = vector.broadcast %cst_4 : f32 to vector<16x1xf32>
    %16 = arith.mulf %12, %15 : vector<16x1xf32>
    %17 = math.floor %16 : vector<16x1xf32>
    %cst_5 = arith.constant 1.250000e-01 : f32
    %18 = vector.broadcast %cst_5 : f32 to vector<1x16xf32>
    %19 = arith.mulf %14, %18 : vector<1x16xf32>
    %20 = math.floor %19 : vector<1x16xf32>
    %21 = vector.broadcast %17 : vector<16x1xf32> to vector<16x16xf32>
    %22 = vector.broadcast %20 : vector<1x16xf32> to vector<16x16xf32>
    %23 = arith.cmpf oeq, %21, %22 : vector<16x16xf32>
    %cst_6 = arith.constant 0.000000e+00 : f32
    %cst_7 = arith.constant -1.000000e+30 : f32
    %24 = vector.broadcast %cst_6 : f32 to vector<16x16xf32>
    %25 = vector.broadcast %cst_7 : f32 to vector<16x16xf32>
    %26 = arith.select %23, %24, %25 : vector<16x16xi1>, vector<16x16xf32>
    %cst_8 = arith.constant 1.000000e+00 : f32
    %27 = vector.broadcast %cst_8 : f32 to vector<16x8xf32>
    %c0_9 = arith.constant 0 : index
    %c0_10 = arith.constant 0 : index
    %c0_11 = arith.constant 0 : index
    %28 = vector.load %arg3[%c0_9, %c0_10, %c0_11] : memref<24x40x8xf32, #tpu.memory_space<vmem>>, vector<12x40x8xf32>
    %c0_12 = arith.constant 0 : index
    %c0_13 = arith.constant 0 : index
    %c0_14 = arith.constant 0 : index
    %29 = vector.load %arg4[%c0_12, %c0_13, %c0_14] : memref<8x8x32xf32, #tpu.memory_space<vmem>>, vector<4x8x32xf32>
    %c0_15 = arith.constant 0 : index
    %c0_16 = arith.constant 0 : index
    %30 = vector.load %arg2[%c0_15, %c0_16] : memref<24x128xf32, #tpu.memory_space<vmem>>, vector<1x32xf32>
    %c1 = arith.constant 1 : index
    %c0_17 = arith.constant 0 : index
    %31 = vector.load %arg2[%c1, %c0_17] : memref<24x128xf32, #tpu.memory_space<vmem>>, vector<1x32xf32>
    %c2 = arith.constant 2 : index
    %c0_18 = arith.constant 0 : index
    %32 = vector.load %arg2[%c2, %c0_18] : memref<24x128xf32, #tpu.memory_space<vmem>>, vector<1x32xf32>
    %c3 = arith.constant 3 : index
    %c0_19 = arith.constant 0 : index
    %33 = vector.load %arg2[%c3, %c0_19] : memref<24x128xf32, #tpu.memory_space<vmem>>, vector<1x32xf32>
    %c4 = arith.constant 4 : index
    %c0_20 = arith.constant 0 : index
    %34 = vector.load %arg2[%c4, %c0_20] : memref<24x128xf32, #tpu.memory_space<vmem>>, vector<1x32xf32>
    %c5 = arith.constant 5 : index
    %c0_21 = arith.constant 0 : index
    %35 = vector.load %arg2[%c5, %c0_21] : memref<24x128xf32, #tpu.memory_space<vmem>>, vector<1x64xf32>
    %c6 = arith.constant 6 : index
    %c0_22 = arith.constant 0 : index
    %36 = vector.load %arg2[%c6, %c0_22] : memref<24x128xf32, #tpu.memory_space<vmem>>, vector<1x32xf32>
    %37 = tpu.concatenate %10, %27 in 1 : vector<16x32xf32>, vector<16x8xf32> -> vector<16x40xf32>
    %38 = vector.shape_cast %37 : vector<16x40xf32> to vector<1x16x40xf32>
    %39 = vector.broadcast %38 : vector<1x16x40xf32> to vector<12x16x40xf32>
    "tpu.trace_start"() <{level = 10 : i32, message = "hnd,hde->hne"}> : () -> ()
    %cst_23 = arith.constant dense<0.000000e+00> : vector<12x16x8xf32>
    %40 = tpu.matmul %39, %28, %cst_23 {dimension_numbers = #tpu.dot_dimension_numbers<[2], [1], [1], [2], [0, 0, 0, 1, 1, 2], [0], [0]>} : vector<12x16x40xf32>, vector<12x40x8xf32>, vector<12x16x8xf32> -> vector<12x16x8xf32>
    "tpu.trace_stop"() : () -> ()
    %41 = vector.extract_strided_slice %40 {offsets = [0, 0, 0], sizes = [4, 16, 8], strides = [1, 1, 1]} : vector<12x16x8xf32> to vector<4x16x8xf32>
    %42 = vector.extract_strided_slice %40 {offsets = [4, 0, 0], sizes = [4, 16, 8], strides = [1, 1, 1]} : vector<12x16x8xf32> to vector<4x16x8xf32>
    %43 = vector.extract_strided_slice %40 {offsets = [8, 0, 0], sizes = [4, 16, 8], strides = [1, 1, 1]} : vector<12x16x8xf32> to vector<4x16x8xf32>
    "tpu.trace_start"() <{level = 10 : i32, message = "hqe,hke->hqk"}> : () -> ()
    %cst_24 = arith.constant dense<0.000000e+00> : vector<4x16x16xf32>
    %44 = tpu.matmul %41, %42, %cst_24 {dimension_numbers = #tpu.dot_dimension_numbers<[2], [2], [1], [1], [0, 0, 0, 1, 1, 1], [0], [0]>} : vector<4x16x8xf32>, vector<4x16x8xf32>, vector<4x16x16xf32> -> vector<4x16x16xf32>
    "tpu.trace_stop"() : () -> ()
    %45 = vector.shape_cast %26 : vector<16x16xf32> to vector<1x16x16xf32>
    %46 = vector.broadcast %45 : vector<1x16x16xf32> to vector<4x16x16xf32>
    %47 = arith.addf %44, %46 : vector<4x16x16xf32>
    %cst_25 = arith.constant dense<0xFF800000> : vector<4x16xf32>
    %48 = vector.multi_reduction <maximumf>, %47, %cst_25 [2] : vector<4x16x16xf32> to vector<4x16xf32>
    %49 = vector.shape_cast %48 : vector<4x16xf32> to vector<4x16x1xf32>
    %50 = vector.broadcast %49 : vector<4x16x1xf32> to vector<4x16x16xf32>
    %51 = arith.subf %47, %50 : vector<4x16x16xf32>
    %52 = math.exp %51 : vector<4x16x16xf32>
    %cst_26 = arith.constant dense<0.000000e+00> : vector<4x16xf32>
    %53 = vector.multi_reduction <add>, %52, %cst_26 [2] : vector<4x16x16xf32> to vector<4x16xf32>
    %54 = vector.shape_cast %53 : vector<4x16xf32> to vector<4x16x1xf32>
    %55 = tpu.reciprocal %54 {approx = true} : vector<4x16x1xf32> -> vector<4x16x1xf32>
    %56 = vector.broadcast %55 : vector<4x16x1xf32> to vector<4x16x16xf32>
    %57 = arith.mulf %52, %56 : vector<4x16x16xf32>
    "tpu.trace_start"() <{level = 10 : i32, message = "hqk,hke->hqe"}> : () -> ()
    %cst_27 = arith.constant dense<0.000000e+00> : vector<4x16x8xf32>
    %58 = tpu.matmul %57, %43, %cst_27 {dimension_numbers = #tpu.dot_dimension_numbers<[2], [1], [1], [2], [0, 0, 0, 1, 1, 2], [0], [0]>} : vector<4x16x16xf32>, vector<4x16x8xf32>, vector<4x16x8xf32> -> vector<4x16x8xf32>
    "tpu.trace_stop"() : () -> ()
    "tpu.trace_start"() <{level = 10 : i32, message = "hqe,hed->hqd"}> : () -> ()
    %cst_28 = arith.constant dense<0.000000e+00> : vector<4x16x32xf32>
    %59 = tpu.matmul %58, %29, %cst_28 {dimension_numbers = #tpu.dot_dimension_numbers<[2], [1], [1], [2], [0, 0, 0, 1, 1, 2], [0], [0]>} : vector<4x16x8xf32>, vector<4x8x32xf32>, vector<4x16x32xf32> -> vector<4x16x32xf32>
    "tpu.trace_stop"() : () -> ()
    %60 = vector.extract_strided_slice %59 {offsets = [0, 0, 0], sizes = [1, 16, 32], strides = [1, 1, 1]} : vector<4x16x32xf32> to vector<1x16x32xf32>
    %61 = vector.shape_cast %60 : vector<1x16x32xf32> to vector<16x32xf32>
    %62 = vector.extract_strided_slice %59 {offsets = [1, 0, 0], sizes = [1, 16, 32], strides = [1, 1, 1]} : vector<4x16x32xf32> to vector<1x16x32xf32>
    %63 = vector.shape_cast %62 : vector<1x16x32xf32> to vector<16x32xf32>
    %64 = arith.addf %61, %63 : vector<16x32xf32>
    %65 = vector.extract_strided_slice %59 {offsets = [2, 0, 0], sizes = [1, 16, 32], strides = [1, 1, 1]} : vector<4x16x32xf32> to vector<1x16x32xf32>
    %66 = vector.shape_cast %65 : vector<1x16x32xf32> to vector<16x32xf32>
    %67 = arith.addf %64, %66 : vector<16x32xf32>
    %68 = vector.extract_strided_slice %59 {offsets = [3, 0, 0], sizes = [1, 16, 32], strides = [1, 1, 1]} : vector<4x16x32xf32> to vector<1x16x32xf32>
    %69 = vector.shape_cast %68 : vector<1x16x32xf32> to vector<16x32xf32>
    %70 = arith.addf %67, %69 : vector<16x32xf32>
    %71 = vector.broadcast %30 : vector<1x32xf32> to vector<16x32xf32>
    %72 = arith.addf %70, %71 : vector<16x32xf32>
    %73 = arith.addf %10, %72 : vector<16x32xf32>
    %cst_29 = arith.constant dense<0.000000e+00> : vector<16xf32>
    %74 = vector.multi_reduction <add>, %73, %cst_29 [1] : vector<16x32xf32> to vector<16xf32>
    %75 = vector.shape_cast %74 : vector<16xf32> to vector<16x1xf32>
    %cst_30 = arith.constant 3.200000e+01 : f32
    %76 = vector.broadcast %cst_30 : f32 to vector<16x1xf32>
    %77 = arith.divf %75, %76 : vector<16x1xf32>
    %78 = vector.broadcast %77 : vector<16x1xf32> to vector<16x32xf32>
    %79 = arith.subf %73, %78 : vector<16x32xf32>
    %80 = arith.mulf %79, %79 : vector<16x32xf32>
    %cst_31 = arith.constant dense<0.000000e+00> : vector<16xf32>
    %81 = vector.multi_reduction <add>, %80, %cst_31 [1] : vector<16x32xf32> to vector<16xf32>
    %82 = vector.shape_cast %81 : vector<16xf32> to vector<16x1xf32>
    %cst_32 = arith.constant 3.200000e+01 : f32
    %83 = vector.broadcast %cst_32 : f32 to vector<16x1xf32>
    %84 = arith.divf %82, %83 : vector<16x1xf32>
    %cst_33 = arith.constant 9.99999974E-6 : f32
    %85 = vector.broadcast %cst_33 : f32 to vector<16x1xf32>
    %86 = arith.addf %84, %85 : vector<16x1xf32>
    %87 = math.rsqrt %86 : vector<16x1xf32>
    %88 = vector.broadcast %87 : vector<16x1xf32> to vector<16x32xf32>
    %89 = arith.mulf %79, %88 : vector<16x32xf32>
    %90 = vector.broadcast %31 : vector<1x32xf32> to vector<16x32xf32>
    %91 = arith.mulf %89, %90 : vector<16x32xf32>
    %92 = vector.broadcast %32 : vector<1x32xf32> to vector<16x32xf32>
    %93 = arith.addf %91, %92 : vector<16x32xf32>
    %c112 = arith.constant 112 : index
    %c0_34 = arith.constant 0 : index
    %94 = vector.load %arg1[%c112, %c0_34] : memref<304x128xf32, #tpu.memory_space<vmem>>, vector<32x64xf32>
    %c144 = arith.constant 144 : index
    %c0_35 = arith.constant 0 : index
    %95 = vector.load %arg1[%c144, %c0_35] : memref<304x128xf32, #tpu.memory_space<vmem>>, vector<64x32xf32>
    %cst_36 = arith.constant dense<0.000000e+00> : vector<16x64xf32>
    %96 = tpu.matmul %93, %94, %cst_36 {dimension_numbers = #tpu.dot_dimension_numbers<[1], [0], [0], [1], [0, 0, 1, 1], [], []>} : vector<16x32xf32>, vector<32x64xf32>, vector<16x64xf32> -> vector<16x64xf32>
    %97 = vector.broadcast %35 : vector<1x64xf32> to vector<16x64xf32>
    %98 = arith.addf %96, %97 : vector<16x64xf32>
    %cst_37 = arith.constant 0.000000e+00 : f32
    %99 = vector.broadcast %cst_37 : f32 to vector<16x64xf32>
    %100 = arith.maximumf %98, %99 : vector<16x64xf32>
    %cst_38 = arith.constant dense<0.000000e+00> : vector<16x32xf32>
    %101 = tpu.matmul %100, %95, %cst_38 {dimension_numbers = #tpu.dot_dimension_numbers<[1], [0], [0], [1], [0, 0, 1, 1], [], []>} : vector<16x64xf32>, vector<64x32xf32>, vector<16x32xf32> -> vector<16x32xf32>
    %102 = vector.broadcast %36 : vector<1x32xf32> to vector<16x32xf32>
    %103 = arith.addf %101, %102 : vector<16x32xf32>
    %104 = arith.addf %93, %103 : vector<16x32xf32>
    %cst_39 = arith.constant dense<0.000000e+00> : vector<16xf32>
    %105 = vector.multi_reduction <add>, %104, %cst_39 [1] : vector<16x32xf32> to vector<16xf32>
    %106 = vector.shape_cast %105 : vector<16xf32> to vector<16x1xf32>
    %cst_40 = arith.constant 3.200000e+01 : f32
    %107 = vector.broadcast %cst_40 : f32 to vector<16x1xf32>
    %108 = arith.divf %106, %107 : vector<16x1xf32>
    %109 = vector.broadcast %108 : vector<16x1xf32> to vector<16x32xf32>
    %110 = arith.subf %104, %109 : vector<16x32xf32>
    %111 = arith.mulf %110, %110 : vector<16x32xf32>
    %cst_41 = arith.constant dense<0.000000e+00> : vector<16xf32>
    %112 = vector.multi_reduction <add>, %111, %cst_41 [1] : vector<16x32xf32> to vector<16xf32>
    %113 = vector.shape_cast %112 : vector<16xf32> to vector<16x1xf32>
    %cst_42 = arith.constant 3.200000e+01 : f32
    %114 = vector.broadcast %cst_42 : f32 to vector<16x1xf32>
    %115 = arith.divf %113, %114 : vector<16x1xf32>
    %cst_43 = arith.constant 9.99999974E-6 : f32
    %116 = vector.broadcast %cst_43 : f32 to vector<16x1xf32>
    %117 = arith.addf %115, %116 : vector<16x1xf32>
    %118 = math.rsqrt %117 : vector<16x1xf32>
    %119 = vector.broadcast %118 : vector<16x1xf32> to vector<16x32xf32>
    %120 = arith.mulf %110, %119 : vector<16x32xf32>
    %121 = vector.broadcast %33 : vector<1x32xf32> to vector<16x32xf32>
    %122 = arith.mulf %120, %121 : vector<16x32xf32>
    %123 = vector.broadcast %34 : vector<1x32xf32> to vector<16x32xf32>
    %124 = arith.addf %122, %123 : vector<16x32xf32>
    %c12 = arith.constant 12 : index
    %c0_44 = arith.constant 0 : index
    %c0_45 = arith.constant 0 : index
    %125 = vector.load %arg3[%c12, %c0_44, %c0_45] : memref<24x40x8xf32, #tpu.memory_space<vmem>>, vector<12x40x8xf32>
    %c4_46 = arith.constant 4 : index
    %c0_47 = arith.constant 0 : index
    %c0_48 = arith.constant 0 : index
    %126 = vector.load %arg4[%c4_46, %c0_47, %c0_48] : memref<8x8x32xf32, #tpu.memory_space<vmem>>, vector<4x8x32xf32>
    %c8 = arith.constant 8 : index
    %c0_49 = arith.constant 0 : index
    %127 = vector.load %arg2[%c8, %c0_49] : memref<24x128xf32, #tpu.memory_space<vmem>>, vector<1x32xf32>
    %c9 = arith.constant 9 : index
    %c0_50 = arith.constant 0 : index
    %128 = vector.load %arg2[%c9, %c0_50] : memref<24x128xf32, #tpu.memory_space<vmem>>, vector<1x32xf32>
    %c10 = arith.constant 10 : index
    %c0_51 = arith.constant 0 : index
    %129 = vector.load %arg2[%c10, %c0_51] : memref<24x128xf32, #tpu.memory_space<vmem>>, vector<1x32xf32>
    %c11 = arith.constant 11 : index
    %c0_52 = arith.constant 0 : index
    %130 = vector.load %arg2[%c11, %c0_52] : memref<24x128xf32, #tpu.memory_space<vmem>>, vector<1x32xf32>
    %c12_53 = arith.constant 12 : index
    %c0_54 = arith.constant 0 : index
    %131 = vector.load %arg2[%c12_53, %c0_54] : memref<24x128xf32, #tpu.memory_space<vmem>>, vector<1x32xf32>
    %c13 = arith.constant 13 : index
    %c0_55 = arith.constant 0 : index
    %132 = vector.load %arg2[%c13, %c0_55] : memref<24x128xf32, #tpu.memory_space<vmem>>, vector<1x64xf32>
    %c14 = arith.constant 14 : index
    %c0_56 = arith.constant 0 : index
    %133 = vector.load %arg2[%c14, %c0_56] : memref<24x128xf32, #tpu.memory_space<vmem>>, vector<1x32xf32>
    %134 = tpu.concatenate %124, %27 in 1 : vector<16x32xf32>, vector<16x8xf32> -> vector<16x40xf32>
    %135 = vector.shape_cast %134 : vector<16x40xf32> to vector<1x16x40xf32>
    %136 = vector.broadcast %135 : vector<1x16x40xf32> to vector<12x16x40xf32>
    "tpu.trace_start"() <{level = 10 : i32, message = "hnd,hde->hne"}> : () -> ()
    %cst_57 = arith.constant dense<0.000000e+00> : vector<12x16x8xf32>
    %137 = tpu.matmul %136, %125, %cst_57 {dimension_numbers = #tpu.dot_dimension_numbers<[2], [1], [1], [2], [0, 0, 0, 1, 1, 2], [0], [0]>} : vector<12x16x40xf32>, vector<12x40x8xf32>, vector<12x16x8xf32> -> vector<12x16x8xf32>
    "tpu.trace_stop"() : () -> ()
    %138 = vector.extract_strided_slice %137 {offsets = [0, 0, 0], sizes = [4, 16, 8], strides = [1, 1, 1]} : vector<12x16x8xf32> to vector<4x16x8xf32>
    %139 = vector.extract_strided_slice %137 {offsets = [4, 0, 0], sizes = [4, 16, 8], strides = [1, 1, 1]} : vector<12x16x8xf32> to vector<4x16x8xf32>
    %140 = vector.extract_strided_slice %137 {offsets = [8, 0, 0], sizes = [4, 16, 8], strides = [1, 1, 1]} : vector<12x16x8xf32> to vector<4x16x8xf32>
    "tpu.trace_start"() <{level = 10 : i32, message = "hqe,hke->hqk"}> : () -> ()
    %cst_58 = arith.constant dense<0.000000e+00> : vector<4x16x16xf32>
    %141 = tpu.matmul %138, %139, %cst_58 {dimension_numbers = #tpu.dot_dimension_numbers<[2], [2], [1], [1], [0, 0, 0, 1, 1, 1], [0], [0]>} : vector<4x16x8xf32>, vector<4x16x8xf32>, vector<4x16x16xf32> -> vector<4x16x16xf32>
    "tpu.trace_stop"() : () -> ()
    %142 = vector.shape_cast %26 : vector<16x16xf32> to vector<1x16x16xf32>
    %143 = vector.broadcast %142 : vector<1x16x16xf32> to vector<4x16x16xf32>
    %144 = arith.addf %141, %143 : vector<4x16x16xf32>
    %cst_59 = arith.constant dense<0xFF800000> : vector<4x16xf32>
    %145 = vector.multi_reduction <maximumf>, %144, %cst_59 [2] : vector<4x16x16xf32> to vector<4x16xf32>
    %146 = vector.shape_cast %145 : vector<4x16xf32> to vector<4x16x1xf32>
    %147 = vector.broadcast %146 : vector<4x16x1xf32> to vector<4x16x16xf32>
    %148 = arith.subf %144, %147 : vector<4x16x16xf32>
    %149 = math.exp %148 : vector<4x16x16xf32>
    %cst_60 = arith.constant dense<0.000000e+00> : vector<4x16xf32>
    %150 = vector.multi_reduction <add>, %149, %cst_60 [2] : vector<4x16x16xf32> to vector<4x16xf32>
    %151 = vector.shape_cast %150 : vector<4x16xf32> to vector<4x16x1xf32>
    %152 = tpu.reciprocal %151 {approx = true} : vector<4x16x1xf32> -> vector<4x16x1xf32>
    %153 = vector.broadcast %152 : vector<4x16x1xf32> to vector<4x16x16xf32>
    %154 = arith.mulf %149, %153 : vector<4x16x16xf32>
    "tpu.trace_start"() <{level = 10 : i32, message = "hqk,hke->hqe"}> : () -> ()
    %cst_61 = arith.constant dense<0.000000e+00> : vector<4x16x8xf32>
    %155 = tpu.matmul %154, %140, %cst_61 {dimension_numbers = #tpu.dot_dimension_numbers<[2], [1], [1], [2], [0, 0, 0, 1, 1, 2], [0], [0]>} : vector<4x16x16xf32>, vector<4x16x8xf32>, vector<4x16x8xf32> -> vector<4x16x8xf32>
    "tpu.trace_stop"() : () -> ()
    "tpu.trace_start"() <{level = 10 : i32, message = "hqe,hed->hqd"}> : () -> ()
    %cst_62 = arith.constant dense<0.000000e+00> : vector<4x16x32xf32>
    %156 = tpu.matmul %155, %126, %cst_62 {dimension_numbers = #tpu.dot_dimension_numbers<[2], [1], [1], [2], [0, 0, 0, 1, 1, 2], [0], [0]>} : vector<4x16x8xf32>, vector<4x8x32xf32>, vector<4x16x32xf32> -> vector<4x16x32xf32>
    "tpu.trace_stop"() : () -> ()
    %157 = vector.extract_strided_slice %156 {offsets = [0, 0, 0], sizes = [1, 16, 32], strides = [1, 1, 1]} : vector<4x16x32xf32> to vector<1x16x32xf32>
    %158 = vector.shape_cast %157 : vector<1x16x32xf32> to vector<16x32xf32>
    %159 = vector.extract_strided_slice %156 {offsets = [1, 0, 0], sizes = [1, 16, 32], strides = [1, 1, 1]} : vector<4x16x32xf32> to vector<1x16x32xf32>
    %160 = vector.shape_cast %159 : vector<1x16x32xf32> to vector<16x32xf32>
    %161 = arith.addf %158, %160 : vector<16x32xf32>
    %162 = vector.extract_strided_slice %156 {offsets = [2, 0, 0], sizes = [1, 16, 32], strides = [1, 1, 1]} : vector<4x16x32xf32> to vector<1x16x32xf32>
    %163 = vector.shape_cast %162 : vector<1x16x32xf32> to vector<16x32xf32>
    %164 = arith.addf %161, %163 : vector<16x32xf32>
    %165 = vector.extract_strided_slice %156 {offsets = [3, 0, 0], sizes = [1, 16, 32], strides = [1, 1, 1]} : vector<4x16x32xf32> to vector<1x16x32xf32>
    %166 = vector.shape_cast %165 : vector<1x16x32xf32> to vector<16x32xf32>
    %167 = arith.addf %164, %166 : vector<16x32xf32>
    %168 = vector.broadcast %127 : vector<1x32xf32> to vector<16x32xf32>
    %169 = arith.addf %167, %168 : vector<16x32xf32>
    %170 = arith.addf %124, %169 : vector<16x32xf32>
    %cst_63 = arith.constant dense<0.000000e+00> : vector<16xf32>
    %171 = vector.multi_reduction <add>, %170, %cst_63 [1] : vector<16x32xf32> to vector<16xf32>
    %172 = vector.shape_cast %171 : vector<16xf32> to vector<16x1xf32>
    %cst_64 = arith.constant 3.200000e+01 : f32
    %173 = vector.broadcast %cst_64 : f32 to vector<16x1xf32>
    %174 = arith.divf %172, %173 : vector<16x1xf32>
    %175 = vector.broadcast %174 : vector<16x1xf32> to vector<16x32xf32>
    %176 = arith.subf %170, %175 : vector<16x32xf32>
    %177 = arith.mulf %176, %176 : vector<16x32xf32>
    %cst_65 = arith.constant dense<0.000000e+00> : vector<16xf32>
    %178 = vector.multi_reduction <add>, %177, %cst_65 [1] : vector<16x32xf32> to vector<16xf32>
    %179 = vector.shape_cast %178 : vector<16xf32> to vector<16x1xf32>
    %cst_66 = arith.constant 3.200000e+01 : f32
    %180 = vector.broadcast %cst_66 : f32 to vector<16x1xf32>
    %181 = arith.divf %179, %180 : vector<16x1xf32>
    %cst_67 = arith.constant 9.99999974E-6 : f32
    %182 = vector.broadcast %cst_67 : f32 to vector<16x1xf32>
    %183 = arith.addf %181, %182 : vector<16x1xf32>
    %184 = math.rsqrt %183 : vector<16x1xf32>
    %185 = vector.broadcast %184 : vector<16x1xf32> to vector<16x32xf32>
    %186 = arith.mulf %176, %185 : vector<16x32xf32>
    %187 = vector.broadcast %128 : vector<1x32xf32> to vector<16x32xf32>
    %188 = arith.mulf %186, %187 : vector<16x32xf32>
    %189 = vector.broadcast %129 : vector<1x32xf32> to vector<16x32xf32>
    %190 = arith.addf %188, %189 : vector<16x32xf32>
    %c208 = arith.constant 208 : index
    %c0_68 = arith.constant 0 : index
    %191 = vector.load %arg1[%c208, %c0_68] : memref<304x128xf32, #tpu.memory_space<vmem>>, vector<32x64xf32>
    %c240 = arith.constant 240 : index
    %c0_69 = arith.constant 0 : index
    %192 = vector.load %arg1[%c240, %c0_69] : memref<304x128xf32, #tpu.memory_space<vmem>>, vector<64x32xf32>
    %cst_70 = arith.constant dense<0.000000e+00> : vector<16x64xf32>
    %193 = tpu.matmul %190, %191, %cst_70 {dimension_numbers = #tpu.dot_dimension_numbers<[1], [0], [0], [1], [0, 0, 1, 1], [], []>} : vector<16x32xf32>, vector<32x64xf32>, vector<16x64xf32> -> vector<16x64xf32>
    %194 = vector.broadcast %132 : vector<1x64xf32> to vector<16x64xf32>
    %195 = arith.addf %193, %194 : vector<16x64xf32>
    %cst_71 = arith.constant 0.000000e+00 : f32
    %196 = vector.broadcast %cst_71 : f32 to vector<16x64xf32>
    %197 = arith.maximumf %195, %196 : vector<16x64xf32>
    %cst_72 = arith.constant dense<0.000000e+00> : vector<16x32xf32>
    %198 = tpu.matmul %197, %192, %cst_72 {dimension_numbers = #tpu.dot_dimension_numbers<[1], [0], [0], [1], [0, 0, 1, 1], [], []>} : vector<16x64xf32>, vector<64x32xf32>, vector<16x32xf32> -> vector<16x32xf32>
    %199 = vector.broadcast %133 : vector<1x32xf32> to vector<16x32xf32>
    %200 = arith.addf %198, %199 : vector<16x32xf32>
    %201 = arith.addf %190, %200 : vector<16x32xf32>
    %cst_73 = arith.constant dense<0.000000e+00> : vector<16xf32>
    %202 = vector.multi_reduction <add>, %201, %cst_73 [1] : vector<16x32xf32> to vector<16xf32>
    %203 = vector.shape_cast %202 : vector<16xf32> to vector<16x1xf32>
    %cst_74 = arith.constant 3.200000e+01 : f32
    %204 = vector.broadcast %cst_74 : f32 to vector<16x1xf32>
    %205 = arith.divf %203, %204 : vector<16x1xf32>
    %206 = vector.broadcast %205 : vector<16x1xf32> to vector<16x32xf32>
    %207 = arith.subf %201, %206 : vector<16x32xf32>
    %208 = arith.mulf %207, %207 : vector<16x32xf32>
    %cst_75 = arith.constant dense<0.000000e+00> : vector<16xf32>
    %209 = vector.multi_reduction <add>, %208, %cst_75 [1] : vector<16x32xf32> to vector<16xf32>
    %210 = vector.shape_cast %209 : vector<16xf32> to vector<16x1xf32>
    %cst_76 = arith.constant 3.200000e+01 : f32
    %211 = vector.broadcast %cst_76 : f32 to vector<16x1xf32>
    %212 = arith.divf %210, %211 : vector<16x1xf32>
    %cst_77 = arith.constant 9.99999974E-6 : f32
    %213 = vector.broadcast %cst_77 : f32 to vector<16x1xf32>
    %214 = arith.addf %212, %213 : vector<16x1xf32>
    %215 = math.rsqrt %214 : vector<16x1xf32>
    %216 = vector.broadcast %215 : vector<16x1xf32> to vector<16x32xf32>
    %217 = arith.mulf %207, %216 : vector<16x32xf32>
    %218 = vector.broadcast %130 : vector<1x32xf32> to vector<16x32xf32>
    %219 = arith.mulf %217, %218 : vector<16x32xf32>
    %220 = vector.broadcast %131 : vector<1x32xf32> to vector<16x32xf32>
    %221 = arith.addf %219, %220 : vector<16x32xf32>
    %c80 = arith.constant 80 : index
    %c0_78 = arith.constant 0 : index
    %222 = vector.load %arg1[%c80, %c0_78] : memref<304x128xf32, #tpu.memory_space<vmem>>, vector<32x128xf32>
    %c16 = arith.constant 16 : index
    %c0_79 = arith.constant 0 : index
    %223 = vector.load %arg2[%c16, %c0_79] : memref<24x128xf32, #tpu.memory_space<vmem>>, vector<1x128xf32>
    %cst_80 = arith.constant dense<0.000000e+00> : vector<16x128xf32>
    %224 = tpu.matmul %221, %222, %cst_80 {dimension_numbers = #tpu.dot_dimension_numbers<[1], [0], [0], [1], [0, 0, 1, 1], [], []>} : vector<16x32xf32>, vector<32x128xf32>, vector<16x128xf32> -> vector<16x128xf32>
    %225 = vector.broadcast %223 : vector<1x128xf32> to vector<16x128xf32>
    %226 = arith.addf %224, %225 : vector<16x128xf32>
    %c0_81 = arith.constant 0 : index
    %c0_82 = arith.constant 0 : index
    %227 = vector.load %arg5[%c0_81, %c0_82] : memref<16x128xf32, #tpu.memory_space<vmem>>, vector<16x128xf32>
    tpu.vector_store %arg5[%c0_81, %c0_82], %226 {strides = array<i32>} : memref<16x128xf32, #tpu.memory_space<vmem>>, vector<16x128xf32>,
    return
  }
}

</mosaic_0001>

<llo_original>
// kernel: transformer_lm_forward.1
$region0: #{transformer_lm_forward.1}
  #allocation0 [shape = 'u32[]', space=smem, size = 0x4, offset = 0x4, fixed_abs, tag = 'smem constant byte address 0x4 - core index']
  #allocation1 [shape = 'u32[144,128]{1,0:T(1,128)}', space=vmem, size = 0x12000, scoped, tag = 'internal scratch']
  %s0 = inlined_call_operand.vmem [shape: s32[16,1], index: 0, kind: input, shape index: {}]
  %s1 = inlined_call_operand.vmem [shape: f32[304,128], index: 1, kind: input, shape index: {}]
  %s2 = inlined_call_operand.vmem [shape: f32[24,128], index: 2, kind: input, shape index: {}]
  %s3 = inlined_call_operand.vmem [shape: f32[24,40,8], index: 3, kind: input, shape index: {}]
  %s4 = inlined_call_operand.vmem [shape: f32[8,8,32], index: 4, kind: input, shape index: {}]
  %s5 = inlined_call_operand.vmem [shape: f32[16,128], index: 5, kind: output, shape index: {}]
  %s6 = sld [smem:[#allocation0]]
  $region30: #{transformer_lm_forward.1} parent=0
    _
  %s8 = ssub.s32 1, %s6
  %s9 = scalar_select 0, %s8, %s6
  // Predicated region
  $region2: #{transformer_lm_forward.1} parent=0 // pred_check
    _
  $region3: #{transformer_lm_forward.1} parent=0 // pred_check_branch
    %11 = sbr.rel (0) target = $region5
  $region4: #{transformer_lm_forward.1} parent=0 // pred_region
    _
  $region5: #{transformer_lm_forward.1} parent=0 // pred_fallthru
    _
  // Predicated region
  $region6: #{transformer_lm_forward.1} parent=0 // pred_check
    _
  $region7: #{transformer_lm_forward.1} parent=0 // pred_check_branch
    %13 = sbr.rel (0) target = $region9
  $region8: #{transformer_lm_forward.1} parent=0 // pred_region
    _
  $region9: #{transformer_lm_forward.1} parent=0 // pred_fallthru
    _
  // Predicated region
  $region10: #{transformer_lm_forward.1} parent=0 // pred_check
    _
  $region11: #{transformer_lm_forward.1} parent=0 // pred_check_branch
    %15 = sbr.rel (0) target = $region13
  $region12: #{transformer_lm_forward.1} parent=0 // pred_region
    _
  $region13: #{transformer_lm_forward.1} parent=0 // pred_fallthru
    _
  // Predicated region
  $region14: #{transformer_lm_forward.1} parent=0 // pred_check
    _
  $region15: #{transformer_lm_forward.1} parent=0 // pred_check_branch
    %17 = sbr.rel (0) target = $region17
  $region16: #{transformer_lm_forward.1} parent=0 // pred_region
    _
  $region17: #{transformer_lm_forward.1} parent=0 // pred_fallthru
    _
  // Predicated region
  $region18: #{transformer_lm_forward.1} parent=0 // pred_check
    _
  $region19: #{transformer_lm_forward.1} parent=0 // pred_check_branch
    %19 = sbr.rel (0) target = $region21
  $region20: #{transformer_lm_forward.1} parent=0 // pred_region
    _
  $region21: #{transformer_lm_forward.1} parent=0 // pred_fallthru
    _
  %v20 = vld [vmem:[%s0] sm:$0xff]
  %v21 = vld [vmem:[%s0 + $0x8] sm:$0xff]
  %v22 = vlaneseq
  %v23 = vand.u32 %v22, 127
  %24 = vset.pattern.permute.xlu0 0
  %25 = vperm.xlu0 %24, %v20
  %v26 = vpop.permute.xlu0 %25
  %27 = vset.pattern.permute.xlu0 0
  %28 = vperm.xlu0 %27, %v21
  %v29 = vpop.permute.xlu0 %28
  %vm30 = vcmp.eq.s32.totalorder %v26, %v23
  %vm31 = vcmp.eq.s32.totalorder %v29, %v23
  %v32 = vsel %vm30, 1, 0
  %v33 = vsel %vm31, 1, 0
  %v34 = vcvt.s32.f32 %v32
  %v35 = vcvt.s32.f32 %v33
  %v36 = vld [vmem:[%s1] sm:$0xff]
  %v37 = vld [vmem:[%s1 + $0x8] sm:$0xff]
  %v38 = vld [vmem:[%s1 + $0x10] sm:$0xff]
  %v39 = vld [vmem:[%s1 + $0x18] sm:$0xff]
  %v40 = vld [vmem:[%s1 + $0x20] sm:$0xff]
  %v41 = vld [vmem:[%s1 + $0x28] sm:$0xff]
  %v42 = vld [vmem:[%s1 + $0x30] sm:$0xff]
  %v43 = vld [vmem:[%s1 + $0x38] sm:$0xff]
  %v44 = vld [vmem:[%s1 + $0x40] sm:$0xff]
  %vm45 = vcmask 523264
  %v47 = vsel %vm45, %v34, 0
  %v50 = vsel %vm45, %v35, 0
  %52 = vmatprep.subr.mxu0 0.0
  %53 = vmatpush1.msra.mxu0 %v36
  %54 = vmatprep.subr.mxu0 0.0
  %55 = vmatpush1.msra.mxu0 %v37
  %56 = vmatprep.subr.mxu0 0.0
  %57 = vmatpush1.msra.mxu0 %v38
  %58 = vmatprep.subr.mxu0 0.0
  %59 = vmatpush1.msra.mxu0 %v39
  %60 = vmatprep.subr.mxu0 0.0
  %61 = vmatpush1.msra.mxu0 %v40
  %62 = vmatprep.subr.mxu0 0.0
  %63 = vmatpush1.msra.mxu0 %v41
  %64 = vmatprep.subr.mxu0 0.0
  %65 = vmatpush1.msra.mxu0 %v42
  %66 = vmatprep.subr.mxu0 0.0
  %67 = vmatpush1.msra.mxu0 %v43
  %68 = vmatprep.subr.mxu0 0.0
  %69 = vmatpush1.msra.mxu0 0.0
  %70 = vmatprep.subr.mxu0 0.0
  %71 = vmatpush1.msra.mxu0 0.0
  %72 = vmatprep.subr.mxu0 0.0
  %73 = vmatpush1.msra.mxu0 0.0
  %74 = vmatprep.subr.mxu0 0.0
  %75 = vmatpush1.msra.mxu0 0.0
  %76 = vmatprep.subr.mxu0 0.0
  %77 = vmatpush1.msra.mxu0 0.0
  %78 = vmatprep.subr.mxu0 0.0
  %79 = vmatpush1.msra.mxu0 0.0
  %80 = vmatprep.subr.mxu0 0.0
  %81 = vmatpush1.msra.mxu0 0.0
  %82 = vmatprep.subr.mxu0 0.0
  %83 = vmatpush1.msra.mxu0 0.0
  %84 = vmatprep.subr.mxu0 0.0
  %85 = vmatpush1.msra.mxu0 0.0
  %86 = vmatprep.subr.mxu0 0.0
  %87 = vmatpush1.msra.mxu0 0.0
  %88 = vmatprep.subr.mxu0 0.0
  %89 = vmatpush1.msra.mxu0 0.0
  %90 = vmatprep.subr.mxu0 0.0
  %91 = vmatpush1.msra.mxu0 0.0
  %92 = vmatprep.subr.mxu0 0.0
  %93 = vmatpush1.msra.mxu0 0.0
  %94 = vmatprep.subr.mxu0 0.0
  %95 = vmatpush1.msra.mxu0 0.0
  %96 = vmatprep.subr.mxu0 0.0
  %97 = vmatpush1.msra.mxu0 0.0
  %98 = vmatprep.subr.mxu0 0.0
  %99 = vmatpush1.msra.mxu0 0.0
  %100 = vmatprep.subr.mxu0 0.0
  %101 = vmatpush1.msra.mxu0 0.0
  %102 = vmatprep.subr.mxu0 0.0
  %103 = vmatpush1.msra.mxu0 0.0
  %104 = vmatprep.subr.mxu0 0.0
  %105 = vmatpush1.msra.mxu0 0.0
  %106 = vmatprep.subr.mxu0 0.0
  %107 = vmatpush1.msra.mxu0 0.0
  %108 = vmatprep.subr.mxu0 0.0
  %109 = vmatpush1.msra.mxu0 0.0
  %110 = vmatprep.subr.mxu0 0.0
  %111 = vmatpush1.msra.mxu0 0.0
  %112 = vmatprep.subr.mxu0 0.0
  %113 = vmatpush1.msra.mxu0 0.0
  %114 = vmatprep.subr.mxu0 0.0
  %115 = vmatpush1.msra.mxu0 0.0
  %116 = vmatprep.mubr.f32.mxu0 0.0
  %117 = vmatmul.mubr.f32.gmra.mrb[0].mxu0 %v47
  %v118 = vpop.f32.mrb[0].mxu0
  %v119 = vadd.f32 %v44, %v118
  %v120 = vpop.f32.mrb[0].mxu0
  %121 = vmatprep.mubr.f32.mxu0 0.0
  %122 = vmatmul.mubr.f32.gmra.mrb[0].mxu0 %v50
  %v123 = vpop.f32.mrb[0].mxu0
  %v124 = vadd.f32 %v44, %v123
  %v125 = vpop.f32.mrb[0].mxu0
  %126 = vdwg.mxu0
  %v127 = vlaneseq
  %v128 = vshrl.u32 %v127, 7
  %v129 = vadd.s32 %v128, 8
  %v130 = vcvt.s32.f32 %v128
  %v131 = vcvt.s32.f32 %v129
  %v132 = vcvt.s32.f32 %v23
  %v133 = vmul.f32 %v130, 0.125
  %v134 = vmul.f32 %v131, 0.125
  %v135 = vfloor.f32 %v133
  %v136 = vfloor.f32 %v134
  %v137 = vmul.f32 %v132, 0.125
  %v138 = vfloor.f32 %v137
  %vm139 = vcmp.eq.f32.partialorder %v135, %v138
  %vm140 = vcmp.eq.f32.partialorder %v136, %v138
  %v141 = vsel %vm139, 0.0, -1e+30
  %v142 = vsel %vm140, 0.0, -1e+30
  %v143 = vld [vmem:[%s3] sm:$0xff]
  %v144 = vld [vmem:[%s3 + $0x8] sm:$0xff]
  %v145 = vld [vmem:[%s3 + $0x10] sm:$0xff]
  %v146 = vld [vmem:[%s3 + $0x18] sm:$0xff]
  %v147 = vld [vmem:[%s3 + $0x20] sm:$0xff]
  %v148 = vld [vmem:[%s3 + $0x28] sm:$0xff]
  %v149 = vld [vmem:[%s3 + $0x30] sm:$0xff]
  %v150 = vld [vmem:[%s3 + $0x38] sm:$0xff]
  %v151 = vld [vmem:[%s3 + $0x40] sm:$0xff]
  %v152 = vld [vmem:[%s3 + $0x48] sm:$0xff]
  %v153 = vld [vmem:[%s3 + $0x50] sm:$0xff]
  %v154 = vld [vmem:[%s3 + $0x58] sm:$0xff]
  %v155 = vld [vmem:[%s3 + $0x60] sm:$0xff]
  %v156 = vld [vmem:[%s3 + $0x68] sm:$0xff]
  %v157 = vld [vmem:[%s3 + $0x70] sm:$0xff]
  %v158 = vld [vmem:[%s3 + $0x78] sm:$0xff]
  %v159 = vld [vmem:[%s3 + $0x80] sm:$0xff]
  %v160 = vld [vmem:[%s3 + $0x88] sm:$0xff]
  %v161 = vld [vmem:[%s3 + $0x90] sm:$0xff]
  %v162 = vld [vmem:[%s3 + $0x98] sm:$0xff]
  %v163 = vld [vmem:[%s3 + $0xa0] sm:$0xff]
  %v164 = vld [vmem:[%s3 + $0xa8] sm:$0xff]
  %v165 = vld [vmem:[%s3 + $0xb0] sm:$0xff]
  %v166 = vld [vmem:[%s3 + $0xb8] sm:$0xff]
  %v167 = vld [vmem:[%s3 + $0xc0] sm:$0xff]
  %v168 = vld [vmem:[%s3 + $0xc8] sm:$0xff]
  %v169 = vld [vmem:[%s3 + $0xd0] sm:$0xff]
  %v170 = vld [vmem:[%s3 + $0xd8] sm:$0xff]
  %v171 = vld [vmem:[%s3 + $0xe0] sm:$0xff]
  %v172 = vld [vmem:[%s3 + $0xe8] sm:$0xff]
  %v173 = vld [vmem:[%s3 + $0xf0] sm:$0xff]
  %v174 = vld [vmem:[%s3 + $0xf8] sm:$0xff]
  %v175 = vld [vmem:[%s3 + $0x100] sm:$0xff]
  %v176 = vld [vmem:[%s3 + $0x108] sm:$0xff]
  %v177 = vld [vmem:[%s3 + $0x110] sm:$0xff]
  %v178 = vld [vmem:[%s3 + $0x118] sm:$0xff]
  %v179 = vld [vmem:[%s3 + $0x120] sm:$0xff]
  %v180 = vld [vmem:[%s3 + $0x128] sm:$0xff]
  %v181 = vld [vmem:[%s3 + $0x130] sm:$0xff]
  %v182 = vld [vmem:[%s3 + $0x138] sm:$0xff]
  %v183 = vld [vmem:[%s3 + $0x140] sm:$0xff]
  %v184 = vld [vmem:[%s3 + $0x148] sm:$0xff]
  %v185 = vld [vmem:[%s3 + $0x150] sm:$0xff]
  %v186 = vld [vmem:[%s3 + $0x158] sm:$0xff]
  %v187 = vld [vmem:[%s3 + $0x160] sm:$0xff]
  %v188 = vld [vmem:[%s3 + $0x168] sm:$0xff]
  %v189 = vld [vmem:[%s3 + $0x170] sm:$0xff]
  %v190 = vld [vmem:[%s3 + $0x178] sm:$0xff]
  %v191 = vld [vmem:[%s3 + $0x180] sm:$0xff]
  %v192 = vld [vmem:[%s3 + $0x188] sm:$0xff]
  %v193 = vld [vmem:[%s3 + $0x190] sm:$0xff]
  %v194 = vld [vmem:[%s3 + $0x198] sm:$0xff]
  %v195 = vld [vmem:[%s3 + $0x1a0] sm:$0xff]
  %v196 = vld [vmem:[%s3 + $0x1a8] sm:$0xff]
  %v197 = vld [vmem:[%s3 + $0x1b0] sm:$0xff]
  %v198 = vld [vmem:[%s3 + $0x1b8] sm:$0xff]
  %v199 = vld [vmem:[%s3 + $0x1c0] sm:$0xff]
  %v200 = vld [vmem:[%s3 + $0x1c8] sm:$0xff]
  %v201 = vld [vmem:[%s3 + $0x1d0] sm:$0xff]
  %v202 = vld [vmem:[%s3 + $0x1d8] sm:$0xff]
  %v203 = vld [vmem:[%s4] sm:$0xff]
  %v204 = vld [vmem:[%s4 + $0x8] sm:$0xff]
  %v205 = vld [vmem:[%s4 + $0x10] sm:$0xff]
  %v206 = vld [vmem:[%s4 + $0x18] sm:$0xff]
  %v207 = vld [vmem:[%s2] sm:$0x1]
  %v208 = vld [vmem:[%s2 + $0x1] sm:$0x1]
  %v209 = vld [vmem:[%s2 + $0x2] sm:$0x1]
  %v210 = vld [vmem:[%s2 + $0x3] sm:$0x1]
  %v211 = vld [vmem:[%s2 + $0x4] sm:$0x1]
  %v212 = vld [vmem:[%s2 + $0x5] sm:$0x1]
  %v213 = vld [vmem:[%s2 + $0x6] sm:$0x1]
  %vm214 = vcmask 261120
  %v215 = vsel %vm214, %v119, 1.0
  %v216 = vsel %vm214, %v124, 1.0
  %vm217 = vcmask 326656
  %v219 = vsel %vm217, %v215, 0
  %v222 = vsel %vm217, %v216, 0
  %224 = vmatprep.subr.mxu0 0.0
  %225 = vmatpush1.msra.mxu0 %v143
  %226 = vmatprep.subr.mxu0 0.0
  %227 = vmatpush1.msra.mxu0 %v144
  %228 = vmatprep.subr.mxu0 0.0
  %229 = vmatpush1.msra.mxu0 %v145
  %230 = vmatprep.subr.mxu0 0.0
  %231 = vmatpush1.msra.mxu0 %v146
  %232 = vmatprep.subr.mxu0 0.0
  %233 = vmatpush1.msra.mxu0 %v147
  %234 = vmatprep.subr.mxu0 0.0
  %235 = vmatpush1.msra.mxu0 0.0
  %236 = vmatprep.subr.mxu0 0.0
  %237 = vmatpush1.msra.mxu0 0.0
  %238 = vmatprep.subr.mxu0 0.0
  %239 = vmatpush1.msra.mxu0 0.0
  %240 = vmatprep.subr.mxu0 0.0
  %241 = vmatpush1.msra.mxu0 0.0
  %242 = vmatprep.subr.mxu0 0.0
  %243 = vmatpush1.msra.mxu0 0.0
  %244 = vmatprep.subr.mxu0 0.0
  %245 = vmatpush1.msra.mxu0 0.0
  %246 = vmatprep.subr.mxu0 0.0
  %247 = vmatpush1.msra.mxu0 0.0
  %248 = vmatprep.subr.mxu0 0.0
  %249 = vmatpush1.msra.mxu0 0.0
  %250 = vmatprep.subr.mxu0 0.0
  %251 = vmatpush1.msra.mxu0 0.0
  %252 = vmatprep.subr.mxu0 0.0
  %253 = vmatpush1.msra.mxu0 0.0
  %254 = vmatprep.subr.mxu0 0.0
  %255 = vmatpush1.msra.mxu0 0.0
  %256 = vmatprep.subr.mxu0 0.0
  %257 = vmatpush1.msra.mxu0 0.0
  %258 = vmatprep.subr.mxu0 0.0
  %259 = vmatpush1.msra.mxu0 0.0
  %260 = vmatprep.subr.mxu0 0.0
  %261 = vmatpush1.msra.mxu0 0.0
  %262 = vmatprep.subr.mxu0 0.0
  %263 = vmatpush1.msra.mxu0 0.0
  %264 = vmatprep.subr.mxu0 0.0
  %265 = vmatpush1.msra.mxu0 0.0
  %266 = vmatprep.subr.mxu0 0.0
  %267 = vmatpush1.msra.mxu0 0.0
  %268 = vmatprep.subr.mxu0 0.0
  %269 = vmatpush1.msra.mxu0 0.0
  %270 = vmatprep.subr.mxu0 0.0
  %271 = vmatpush1.msra.mxu0 0.0
  %272 = vmatprep.subr.mxu0 0.0
  %273 = vmatpush1.msra.mxu0 0.0
  %274 = vmatprep.subr.mxu0 0.0
  %275 = vmatpush1.msra.mxu0 0.0
  %276 = vmatprep.subr.mxu0 0.0
  %277 = vmatpush1.msra.mxu0 0.0
  %278 = vmatprep.subr.mxu0 0.0
  %279 = vmatpush1.msra.mxu0 0.0
  %280 = vmatprep.subr.mxu0 0.0
  %281 = vmatpush1.msra.mxu0 0.0
  %282 = vmatprep.subr.mxu0 0.0
  %283 = vmatpush1.msra.mxu0 0.0
  %284 = vmatprep.subr.mxu0 0.0
  %285 = vmatpush1.msra.mxu0 0.0
  %286 = vmatprep.subr.mxu0 0.0
  %287 = vmatpush1.msra.mxu0 0.0
  %288 = vmatprep.mubr.f32.mxu0 0.0
  %289 = vmatmul.mubr.f32.gmra.mrb[0].mxu0 %v219
  %v290 = vpop.f32.mrb[0].mxu0
  %v291 = vadd.f32 0.0, %v290
  %v292 = vpop.f32.mrb[0].mxu0
  %293 = vmatprep.mubr.f32.mxu0 0.0
  %294 = vmatmul.mubr.f32.gmra.mrb[0].mxu0 %v222
  %v295 = vpop.f32.mrb[0].mxu0
  %v296 = vadd.f32 0.0, %v295
  %v297 = vpop.f32.mrb[0].mxu0
  %298 = vdwg.mxu0
  %299 = vmatprep.subr.mxu0 0.0
  %300 = vmatpush1.msra.mxu0 %v148
  %301 = vmatprep.subr.mxu0 0.0
  %302 = vmatpush1.msra.mxu0 %v149
  %303 = vmatprep.subr.mxu0 0.0
  %304 = vmatpush1.msra.mxu0 %v150
  %305 = vmatprep.subr.mxu0 0.0
  %306 = vmatpush1.msra.mxu0 %v151
  %307 = vmatprep.subr.mxu0 0.0
  %308 = vmatpush1.msra.mxu0 %v152
  %309 = vmatprep.subr.mxu0 0.0
  %310 = vmatpush1.msra.mxu0 0.0
  %311 = vmatprep.subr.mxu0 0.0
  %312 = vmatpush1.msra.mxu0 0.0
  %313 = vmatprep.subr.mxu0 0.0
  %314 = vmatpush1.msra.mxu0 0.0
  %315 = vmatprep.subr.mxu0 0.0
  %316 = vmatpush1.msra.mxu0 0.0
  %317 = vmatprep.subr.mxu0 0.0
  %318 = vmatpush1.msra.mxu0 0.0
  %319 = vmatprep.subr.mxu0 0.0
  %320 = vmatpush1.msra.mxu0 0.0
  %321 = vmatprep.subr.mxu0 0.0
  %322 = vmatpush1.msra.mxu0 0.0
  %323 = vmatprep.subr.mxu0 0.0
  %324 = vmatpush1.msra.mxu0 0.0
  %325 = vmatprep.subr.mxu0 0.0
  %326 = vmatpush1.msra.mxu0 0.0
  %327 = vmatprep.subr.mxu0 0.0
  %328 = vmatpush1.msra.mxu0 0.0
  %329 = vmatprep.subr.mxu0 0.0
  %330 = vmatpush1.msra.mxu0 0.0
  %331 = vmatprep.subr.mxu0 0.0
  %332 = vmatpush1.msra.mxu0 0.0
  %333 = vmatprep.subr.mxu0 0.0
  %334 = vmatpush1.msra.mxu0 0.0
  %335 = vmatprep.subr.mxu0 0.0
  %336 = vmatpush1.msra.mxu0 0.0
  %337 = vmatprep.subr.mxu0 0.0
  %338 = vmatpush1.msra.mxu0 0.0
  %339 = vmatprep.subr.mxu0 0.0
  %340 = vmatpush1.msra.mxu0 0.0
  %341 = vmatprep.subr.mxu0 0.0
  %342 = vmatpush1.msra.mxu0 0.0
  %343 = vmatprep.subr.mxu0 0.0
  %344 = vmatpush1.msra.mxu0 0.0
  %345 = vmatprep.subr.mxu0 0.0
  %346 = vmatpush1.msra.mxu0 0.0
  %347 = vmatprep.subr.mxu0 0.0
  %348 = vmatpush1.msra.mxu0 0.0
  %349 = vmatprep.subr.mxu0 0.0
  %350 = vmatpush1.msra.mxu0 0.0
  %351 = vmatprep.subr.mxu0 0.0
  %352 = vmatpush1.msra.mxu0 0.0
  %353 = vmatprep.subr.mxu0 0.0
  %354 = vmatpush1.msra.mxu0 0.0
  %355 = vmatprep.subr.mxu0 0.0
  %356 = vmatpush1.msra.mxu0 0.0
  %357 = vmatprep.subr.mxu0 0.0
  %358 = vmatpush1.msra.mxu0 0.0
  %359 = vmatprep.subr.mxu0 0.0
  %360 = vmatpush1.msra.mxu0 0.0
  %361 = vmatprep.subr.mxu0 0.0
  %362 = vmatpush1.msra.mxu0 0.0
  %363 = vmatprep.mubr.f32.mxu0 0.0
  %364 = vmatmul.mubr.f32.gmra.mrb[0].mxu0 %v219
  %v365 = vpop.f32.mrb[0].mxu0
  %v366 = vadd.f32 0.0, %v365
  %v367 = vpop.f32.mrb[0].mxu0
  %368 = vmatprep.mubr.f32.mxu0 0.0
  %369 = vmatmul.mubr.f32.gmra.mrb[0].mxu0 %v222
  %v370 = vpop.f32.mrb[0].mxu0
  %v371 = vadd.f32 0.0, %v370
  %v372 = vpop.f32.mrb[0].mxu0
  %373 = vdwg.mxu0
  %374 = vmatprep.subr.mxu0 0.0
  %375 = vmatpush1.msra.mxu0 %v153
  %376 = vmatprep.subr.mxu0 0.0
  %377 = vmatpush1.msra.mxu0 %v154
  %378 = vmatprep.subr.mxu0 0.0
  %379 = vmatpush1.msra.mxu0 %v155
  %380 = vmatprep.subr.mxu0 0.0
  %381 = vmatpush1.msra.mxu0 %v156
  %382 = vmatprep.subr.mxu0 0.0
  %383 = vmatpush1.msra.mxu0 %v157
  %384 = vmatprep.subr.mxu0 0.0
  %385 = vmatpush1.msra.mxu0 0.0
  %386 = vmatprep.subr.mxu0 0.0
  %387 = vmatpush1.msra.mxu0 0.0
  %388 = vmatprep.subr.mxu0 0.0
  %389 = vmatpush1.msra.mxu0 0.0
  %390 = vmatprep.subr.mxu0 0.0
  %391 = vmatpush1.msra.mxu0 0.0
  %392 = vmatprep.subr.mxu0 0.0
  %393 = vmatpush1.msra.mxu0 0.0
  %394 = vmatprep.subr.mxu0 0.0
  %395 = vmatpush1.msra.mxu0 0.0
  %396 = vmatprep.subr.mxu0 0.0
  %397 = vmatpush1.msra.mxu0 0.0
  %398 = vmatprep.subr.mxu0 0.0
  %399 = vmatpush1.msra.mxu0 0.0
  %400 = vmatprep.subr.mxu0 0.0
  %401 = vmatpush1.msra.mxu0 0.0
  %402 = vmatprep.subr.mxu0 0.0
  %403 = vmatpush1.msra.mxu0 0.0
  %404 = vmatprep.subr.mxu0 0.0
  %405 = vmatpush1.msra.mxu0 0.0
  %406 = vmatprep.subr.mxu0 0.0
  %407 = vmatpush1.msra.mxu0 0.0
  %408 = vmatprep.subr.mxu0 0.0
  %409 = vmatpush1.msra.mxu0 0.0
  %410 = vmatprep.subr.mxu0 0.0
  %411 = vmatpush1.msra.mxu0 0.0
  %412 = vmatprep.subr.mxu0 0.0
  %413 = vmatpush1.msra.mxu0 0.0
  %414 = vmatprep.subr.mxu0 0.0
  %415 = vmatpush1.msra.mxu0 0.0
  %416 = vmatprep.subr.mxu0 0.0
  %417 = vmatpush1.msra.mxu0 0.0
  %418 = vmatprep.subr.mxu0 0.0
  %419 = vmatpush1.msra.mxu0 0.0
  %420 = vmatprep.subr.mxu0 0.0
  %421 = vmatpush1.msra.mxu0 0.0
  %422 = vmatprep.subr.mxu0 0.0
  %423 = vmatpush1.msra.mxu0 0.0
  %424 = vmatprep.subr.mxu0 0.0
  %425 = vmatpush1.msra.mxu0 0.0
  %426 = vmatprep.subr.mxu0 0.0
  %427 = vmatpush1.msra.mxu0 0.0
  %428 = vmatprep.subr.mxu0 0.0
  %429 = vmatpush1.msra.mxu0 0.0
  %430 = vmatprep.subr.mxu0 0.0
  %431 = vmatpush1.msra.mxu0 0.0
  %432 = vmatprep.subr.mxu0 0.0
  %433 = vmatpush1.msra.mxu0 0.0
  %434 = vmatprep.subr.mxu0 0.0
  %435 = vmatpush1.msra.mxu0 0.0
  %436 = vmatprep.subr.mxu0 0.0
  %437 = vmatpush1.msra.mxu0 0.0
  %438 = vmatprep.mubr.f32.mxu0 0.0
  %439 = vmatmul.mubr.f32.gmra.mrb[0].mxu0 %v219
  %v440 = vpop.f32.mrb[0].mxu0
  %v441 = vadd.f32 0.0, %v440
  %v442 = vpop.f32.mrb[0].mxu0
  %443 = vmatprep.mubr.f32.mxu0 0.0
  %444 = vmatmul.mubr.f32.gmra.mrb[0].mxu0 %v222
  %v445 = vpop.f32.mrb[0].mxu0
  %v446 = vadd.f32 0.0, %v445
  %v447 = vpop.f32.mrb[0].mxu0
  %448 = vdwg.mxu0
  %449 = vmatprep.subr.mxu0 0.0
  %450 = vmatpush1.msra.mxu0 %v158
  %451 = vmatprep.subr.mxu0 0.0
  %452 = vmatpush1.msra.mxu0 %v159
  %453 = vmatprep.subr.mxu0 0.0
  %454 = vmatpush1.msra.mxu0 %v160
  %455 = vmatprep.subr.mxu0 0.0
  %456 = vmatpush1.msra.mxu0 %v161
  %457 = vmatprep.subr.mxu0 0.0
  %458 = vmatpush1.msra.mxu0 %v162
  %459 = vmatprep.subr.mxu0 0.0
  %460 = vmatpush1.msra.mxu0 0.0
  %461 = vmatprep.subr.mxu0 0.0
  %462 = vmatpush1.msra.mxu0 0.0
  %463 = vmatprep.subr.mxu0 0.0
  %464 = vmatpush1.msra.mxu0 0.0
  %465 = vmatprep.subr.mxu0 0.0
  %466 = vmatpush1.msra.mxu0 0.0
  %467 = vmatprep.subr.mxu0 0.0
  %468 = vmatpush1.msra.mxu0 0.0
  %469 = vmatprep.subr.mxu0 0.0
  %470 = vmatpush1.msra.mxu0 0.0
  %471 = vmatprep.subr.mxu0 0.0
  %472 = vmatpush1.msra.mxu0 0.0
  %473 = vmatprep.subr.mxu0 0.0
  %474 = vmatpush1.msra.mxu0 0.0
  %475 = vmatprep.subr.mxu0 0.0
  %476 = vmatpush1.msra.mxu0 0.0
  %477 = vmatprep.subr.mxu0 0.0
  %478 = vmatpush1.msra.mxu0 0.0
  %479 = vmatprep.subr.mxu0 0.0
  %480 = vmatpush1.msra.mxu0 0.0
  %481 = vmatprep.subr.mxu0 0.0
  %482 = vmatpush1.msra.mxu0 0.0
  %483 = vmatprep.subr.mxu0 0.0
  %484 = vmatpush1.msra.mxu0 0.0
  %485 = vmatprep.subr.mxu0 0.0
  %486 = vmatpush1.msra.mxu0 0.0
  %487 = vmatprep.subr.mxu0 0.0
  %488 = vmatpush1.msra.mxu0 0.0
  %489 = vmatprep.subr.mxu0 0.0
  %490 = vmatpush1.msra.mxu0 0.0
  %491 = vmatprep.subr.mxu0 0.0
  %492 = vmatpush1.msra.mxu0 0.0
  %493 = vmatprep.subr.mxu0 0.0
  %494 = vmatpush1.msra.mxu0 0.0
  %495 = vmatprep.subr.mxu0 0.0
  %496 = vmatpush1.msra.mxu0 0.0
  %497 = vmatprep.subr.mxu0 0.0
  %498 = vmatpush1.msra.mxu0 0.0
  %499 = vmatprep.subr.mxu0 0.0
  %500 = vmatpush1.msra.mxu0 0.0
  %501 = vmatprep.subr.mxu0 0.0
  %502 = vmatpush1.msra.mxu0 0.0
  %503 = vmatprep.subr.mxu0 0.0
  %504 = vmatpush1.msra.mxu0 0.0
  %505 = vmatprep.subr.mxu0 0.0
  %506 = vmatpush1.msra.mxu0 0.0
  %507 = vmatprep.subr.mxu0 0.0
  %508 = vmatpush1.msra.mxu0 0.0
  %509 = vmatprep.subr.mxu0 0.0
  %510 = vmatpush1.msra.mxu0 0.0
  %511 = vmatprep.subr.mxu0 0.0
  %512 = vmatpush1.msra.mxu0 0.0
  %513 = vmatprep.mubr.f32.mxu0 0.0
  %514 = vmatmul.mubr.f32.gmra.mrb[0].mxu0 %v219
  %v515 = vpop.f32.mrb[0].mxu0
  %v516 = vadd.f32 0.0, %v515
  %v517 = vpop.f32.mrb[0].mxu0
  %518 = vmatprep.mubr.f32.mxu0 0.0
  %519 = vmatmul.mubr.f32.gmra.mrb[0].mxu0 %v222
  %v520 = vpop.f32.mrb[0].mxu0
  %v521 = vadd.f32 0.0, %v520
  %v522 = vpop.f32.mrb[0].mxu0
  %523 = vdwg.mxu0
  %524 = vmatprep.subr.mxu0 0.0
  %525 = vmatpush1.msra.mxu0 %v163
  %526 = vmatprep.subr.mxu0 0.0
  %527 = vmatpush1.msra.mxu0 %v164
  %528 = vmatprep.subr.mxu0 0.0
  %529 = vmatpush1.msra.mxu0 %v165
  %530 = vmatprep.subr.mxu0 0.0
  %531 = vmatpush1.msra.mxu0 %v166
  %532 = vmatprep.subr.mxu0 0.0
  %533 = vmatpush1.msra.mxu0 %v167
  %534 = vmatprep.subr.mxu0 0.0
  %535 = vmatpush1.msra.mxu0 0.0
  %536 = vmatprep.subr.mxu0 0.0
  %537 = vmatpush1.msra.mxu0 0.0
  %538 = vmatprep.subr.mxu0 0.0
  %539 = vmatpush1.msra.mxu0 0.0
  %540 = vmatprep.subr.mxu0 0.0
  %541 = vmatpush1.msra.mxu0 0.0
  %542 = vmatprep.subr.mxu0 0.0
  %543 = vmatpush1.msra.mxu0 0.0
  %544 = vmatprep.subr.mxu0 0.0
  %545 = vmatpush1.msra.mxu0 0.0
  %546 = vmatprep.subr.mxu0 0.0
  %547 = vmatpush1.msra.mxu0 0.0
  %548 = vmatprep.subr.mxu0 0.0
  %549 = vmatpush1.msra.mxu0 0.0
  %550 = vmatprep.subr.mxu0 0.0
  %551 = vmatpush1.msra.mxu0 0.0
  %552 = vmatprep.subr.mxu0 0.0
  %553 = vmatpush1.msra.mxu0 0.0
  %554 = vmatprep.subr.mxu0 0.0
  %555 = vmatpush1.msra.mxu0 0.0
  %556 = vmatprep.subr.mxu0 0.0
  %557 = vmatpush1.msra.mxu0 0.0
  %558 = vmatprep.subr.mxu0 0.0
  %559 = vmatpush1.msra.mxu0 0.0
  %560 = vmatprep.subr.mxu0 0.0
  %561 = vmatpush1.msra.mxu0 0.0
  %562 = vmatprep.subr.mxu0 0.0
  %563 = vmatpush1.msra.mxu0 0.0
  %564 = vmatprep.subr.mxu0 0.0
  %565 = vmatpush1.msra.mxu0 0.0
  %566 = vmatprep.subr.mxu0 0.0
  %567 = vmatpush1.msra.mxu0 0.0
  %568 = vmatprep.subr.mxu0 0.0
  %569 = vmatpush1.msra.mxu0 0.0
  %570 = vmatprep.subr.mxu0 0.0
  %571 = vmatpush1.msra.mxu0 0.0
  %572 = vmatprep.subr.mxu0 0.0
  %573 = vmatpush1.msra.mxu0 0.0
  %574 = vmatprep.subr.mxu0 0.0
  %575 = vmatpush1.msra.mxu0 0.0
  %576 = vmatprep.subr.mxu0 0.0
  %577 = vmatpush1.msra.mxu0 0.0
  %578 = vmatprep.subr.mxu0 0.0
  %579 = vmatpush1.msra.mxu0 0.0
  %580 = vmatprep.subr.mxu0 0.0
  %581 = vmatpush1.msra.mxu0 0.0
  %582 = vmatprep.subr.mxu0 0.0
  %583 = vmatpush1.msra.mxu0 0.0
  %584 = vmatprep.subr.mxu0 0.0
  %585 = vmatpush1.msra.mxu0 0.0
  %586 = vmatprep.subr.mxu0 0.0
  %587 = vmatpush1.msra.mxu0 0.0
  %588 = vmatprep.mubr.f32.mxu0 0.0
  %589 = vmatmul.mubr.f32.gmra.mrb[0].mxu0 %v219
  %v590 = vpop.f32.mrb[0].mxu0
  %v591 = vadd.f32 0.0, %v590
  %v592 = vpop.f32.mrb[0].mxu0
  %593 = vmatprep.mubr.f32.mxu0 0.0
  %594 = vmatmul.mubr.f32.gmra.mrb[0].mxu0 %v222
  %v595 = vpop.f32.mrb[0].mxu0
  %v596 = vadd.f32 0.0, %v595
  %v597 = vpop.f32.mrb[0].mxu0
  %598 = vdwg.mxu0
  %599 = vmatprep.subr.mxu0 0.0
  %600 = vmatpush1.msra.mxu0 %v168
  %601 = vmatprep.subr.mxu0 0.0
  %602 = vmatpush1.msra.mxu0 %v169
  %603 = vmatprep.subr.mxu0 0.0
  %604 = vmatpush1.msra.mxu0 %v170
  %605 = vmatprep.subr.mxu0 0.0
  %606 = vmatpush1.msra.mxu0 %v171
  %607 = vmatprep.subr.mxu0 0.0
  %608 = vmatpush1.msra.mxu0 %v172
  %609 = vmatprep.subr.mxu0 0.0
  %610 = vmatpush1.msra.mxu0 0.0
  %611 = vmatprep.subr.mxu0 0.0
  %612 = vmatpush1.msra.mxu0 0.0
  %613 = vmatprep.subr.mxu0 0.0
  %614 = vmatpush1.msra.mxu0 0.0
  %615 = vmatprep.subr.mxu0 0.0
  %616 = vmatpush1.msra.mxu0 0.0
  %617 = vmatprep.subr.mxu0 0.0
  %618 = vmatpush1.msra.mxu0 0.0
  %619 = vmatprep.subr.mxu0 0.0
  %620 = vmatpush1.msra.mxu0 0.0
  %621 = vmatprep.subr.mxu0 0.0
  %622 = vmatpush1.msra.mxu0 0.0
  %623 = vmatprep.subr.mxu0 0.0
  %624 = vmatpush1.msra.mxu0 0.0
  %625 = vmatprep.subr.mxu0 0.0
  %626 = vmatpush1.msra.mxu0 0.0
  %627 = vmatprep.subr.mxu0 0.0
  %628 = vmatpush1.msra.mxu0 0.0
  %629 = vmatprep.subr.mxu0 0.0
  %630 = vmatpush1.msra.mxu0 0.0
  %631 = vmatprep.subr.mxu0 0.0
  %632 = vmatpush1.msra.mxu0 0.0
  %633 = vmatprep.subr.mxu0 0.0
  %634 = vmatpush1.msra.mxu0 0.0
  %635 = vmatprep.subr.mxu0 0.0
  %636 = vmatpush1.msra.mxu0 0.0
  %637 = vmatprep.subr.mxu0 0.0
  %638 = vmatpush1.msra.mxu0 0.0
  %639 = vmatprep.subr.mxu0 0.0
  %640 = vmatpush1.msra.mxu0 0.0
  %641 = vmatprep.subr.mxu0 0.0
  %642 = vmatpush1.msra.mxu0 0.0
  %643 = vmatprep.subr.mxu0 0.0
  %644 = vmatpush1.msra.mxu0 0.0
  %645 = vmatprep.subr.mxu0 0.0
  %646 = vmatpush1.msra.mxu0 0.0
  %647 = vmatprep.subr.mxu0 0.0
  %648 = vmatpush1.msra.mxu0 0.0
  %649 = vmatprep.subr.mxu0 0.0
  %650 = vmatpush1.msra.mxu0 0.0
  %651 = vmatprep.subr.mxu0 0.0
  %652 = vmatpush1.msra.mxu0 0.0
  %653 = vmatprep.subr.mxu0 0.0
  %654 = vmatpush1.msra.mxu0 0.0
  %655 = vmatprep.subr.mxu0 0.0
  %656 = vmatpush1.msra.mxu0 0.0
  %657 = vmatprep.subr.mxu0 0.0
  %658 = vmatpush1.msra.mxu0 0.0
  %659 = vmatprep.subr.mxu0 0.0
  %660 = vmatpush1.msra.mxu0 0.0
  %661 = vmatprep.subr.mxu0 0.0
  %662 = vmatpush1.msra.mxu0 0.0
  %663 = vmatprep.mubr.f32.mxu0 0.0
  %664 = vmatmul.mubr.f32.gmra.mrb[0].mxu0 %v219
  %v665 = vpop.f32.mrb[0].mxu0
  %v666 = vadd.f32 0.0, %v665
  %v667 = vpop.f32.mrb[0].mxu0
  %668 = vmatprep.mubr.f32.mxu0 0.0
  %669 = vmatmul.mubr.f32.gmra.mrb[0].mxu0 %v222
  %v670 = vpop.f32.mrb[0].mxu0
  %v671 = vadd.f32 0.0, %v670
  %v672 = vpop.f32.mrb[0].mxu0
  %673 = vdwg.mxu0
  %674 = vmatprep.subr.mxu0 0.0
  %675 = vmatpush1.msra.mxu0 %v173
  %676 = vmatprep.subr.mxu0 0.0
  %677 = vmatpush1.msra.mxu0 %v174
  %678 = vmatprep.subr.mxu0 0.0
  %679 = vmatpush1.msra.mxu0 %v175
  %680 = vmatprep.subr.mxu0 0.0
  %681 = vmatpush1.msra.mxu0 %v176
  %682 = vmatprep.subr.mxu0 0.0
  %683 = vmatpush1.msra.mxu0 %v177
  %684 = vmatprep.subr.mxu0 0.0
  %685 = vmatpush1.msra.mxu0 0.0
  %686 = vmatprep.subr.mxu0 0.0
  %687 = vmatpush1.msra.mxu0 0.0
  %688 = vmatprep.subr.mxu0 0.0
  %689 = vmatpush1.msra.mxu0 0.0
  %690 = vmatprep.subr.mxu0 0.0
  %691 = vmatpush1.msra.mxu0 0.0
  %692 = vmatprep.subr.mxu0 0.0
  %693 = vmatpush1.msra.mxu0 0.0
  %694 = vmatprep.subr.mxu0 0.0
  %695 = vmatpush1.msra.mxu0 0.0
  %696 = vmatprep.subr.mxu0 0.0
  %697 = vmatpush1.msra.mxu0 0.0
  %698 = vmatprep.subr.mxu0 0.0
  %699 = vmatpush1.msra.mxu0 0.0
  %700 = vmatprep.subr.mxu0 0.0
  %701 = vmatpush1.msra.mxu0 0.0
  %702 = vmatprep.subr.mxu0 0.0
  %703 = vmatpush1.msra.mxu0 0.0
  %704 = vmatprep.subr.mxu0 0.0
  %705 = vmatpush1.msra.mxu0 0.0
  %706 = vmatprep.subr.mxu0 0.0
  %707 = vmatpush1.msra.mxu0 0.0
  %708 = vmatprep.subr.mxu0 0.0
  %709 = vmatpush1.msra.mxu0 0.0
  %710 = vmatprep.subr.mxu0 0.0
  %711 = vmatpush1.msra.mxu0 0.0
  %712 = vmatprep.subr.mxu0 0.0
  %713 = vmatpush1.msra.mxu0 0.0
  %714 = vmatprep.subr.mxu0 0.0
  %715 = vmatpush1.msra.mxu0 0.0
  %716 = vmatprep.subr.mxu0 0.0
  %717 = vmatpush1.msra.mxu0 0.0
  %718 = vmatprep.subr.mxu0 0.0
  %719 = vmatpush1.msra.mxu0 0.0
  %720 = vmatprep.subr.mxu0 0.0
  %721 = vmatpush1.msra.mxu0 0.0
  %722 = vmatprep.subr.mxu0 0.0
  %723 = vmatpush1.msra.mxu0 0.0
  %724 = vmatprep.subr.mxu0 0.0
  %725 = vmatpush1.msra.mxu0 0.0
  %726 = vmatprep.subr.mxu0 0.0
  %727 = vmatpush1.msra.mxu0 0.0
  %728 = vmatprep.subr.mxu0 0.0
  %729 = vmatpush1.msra.mxu0 0.0
  %730 = vmatprep.subr.mxu0 0.0
  %731 = vmatpush1.msra.mxu0 0.0
  %732 = vmatprep.subr.mxu0 0.0
  %733 = vmatpush1.msra.mxu0 0.0
  %734 = vmatprep.subr.mxu0 0.0
  %735 = vmatpush1.msra.mxu0 0.0
  %736 = vmatprep.subr.mxu0 0.0
  %737 = vmatpush1.msra.mxu0 0.0
  %738 = vmatprep.mubr.f32.mxu0 0.0
  %739 = vmatmul.mubr.f32.gmra.mrb[0].mxu0 %v219
  %v740 = vpop.f32.mrb[0].mxu0
  %v741 = vadd.f32 0.0, %v740
  %v742 = vpop.f32.mrb[0].mxu0
  %743 = vmatprep.mubr.f32.mxu0 0.0
  %744 = vmatmul.mubr.f32.gmra.mrb[0].mxu0 %v222
  %v745 = vpop.f32.mrb[0].mxu0
  %v746 = vadd.f32 0.0, %v745
  %v747 = vpop.f32.mrb[0].mxu0
  %748 = vdwg.mxu0
  %749 = vmatprep.subr.mxu0 0.0
  %750 = vmatpush1.msra.mxu0 %v178
  %751 = vmatprep.subr.mxu0 0.0
  %752 = vmatpush1.msra.mxu0 %v179
  %753 = vmatprep.subr.mxu0 0.0
  %754 = vmatpush1.msra.mxu0 %v180
  %755 = vmatprep.subr.mxu0 0.0
  %756 = vmatpush1.msra.mxu0 %v181
  %757 = vmatprep.subr.mxu0 0.0
  %758 = vmatpush1.msra.mxu0 %v182
  %759 = vmatprep.subr.mxu0 0.0
  %760 = vmatpush1.msra.mxu0 0.0
  %761 = vmatprep.subr.mxu0 0.0
  %762 = vmatpush1.msra.mxu0 0.0
  %763 = vmatprep.subr.mxu0 0.0
  %764 = vmatpush1.msra.mxu0 0.0
  %765 = vmatprep.subr.mxu0 0.0
  %766 = vmatpush1.msra.mxu0 0.0
  %767 = vmatprep.subr.mxu0 0.0
  %768 = vmatpush1.msra.mxu0 0.0
  %769 = vmatprep.subr.mxu0 0.0
  %770 = vmatpush1.msra.mxu0 0.0
  %771 = vmatprep.subr.mxu0 0.0
  %772 = vmatpush1.msra.mxu0 0.0
  %773 = vmatprep.subr.mxu0 0.0
  %774 = vmatpush1.msra.mxu0 0.0
  %775 = vmatprep.subr.mxu0 0.0
  %776 = vmatpush1.msra.mxu0 0.0
  %777 = vmatprep.subr.mxu0 0.0
  %778 = vmatpush1.msra.mxu0 0.0
  %779 = vmatprep.subr.mxu0 0.0
  %780 = vmatpush1.msra.mxu0 0.0
  %781 = vmatprep.subr.mxu0 0.0
  %782 = vmatpush1.msra.mxu0 0.0
  %783 = vmatprep.subr.mxu0 0.0
  %784 = vmatpush1.msra.mxu0 0.0
  %785 = vmatprep.subr.mxu0 0.0
  %786 = vmatpush1.msra.mxu0 0.0
  %787 = vmatprep.subr.mxu0 0.0
  %788 = vmatpush1.msra.mxu0 0.0
  %789 = vmatprep.subr.mxu0 0.0
  %790 = vmatpush1.msra.mxu0 0.0
  %791 = vmatprep.subr.mxu0 0.0
  %792 = vmatpush1.msra.mxu0 0.0
  %793 = vmatprep.subr.mxu0 0.0
  %794 = vmatpush1.msra.mxu0 0.0
  %795 = vmatprep.subr.mxu0 0.0
  %796 = vmatpush1.msra.mxu0 0.0
  %797 = vmatprep.subr.mxu0 0.0
  %798 = vmatpush1.msra.mxu0 0.0
  %799 = vmatprep.subr.mxu0 0.0
  %800 = vmatpush1.msra.mxu0 0.0
  %801 = vmatprep.subr.mxu0 0.0
  %802 = vmatpush1.msra.mxu0 0.0
  %803 = vmatprep.subr.mxu0 0.0
  %804 = vmatpush1.msra.mxu0 0.0
  %805 = vmatprep.subr.mxu0 0.0
  %806 = vmatpush1.msra.mxu0 0.0
  %807 = vmatprep.subr.mxu0 0.0
  %808 = vmatpush1.msra.mxu0 0.0
  %809 = vmatprep.subr.mxu0 0.0
  %810 = vmatpush1.msra.mxu0 0.0
  %811 = vmatprep.subr.mxu0 0.0
  %812 = vmatpush1.msra.mxu0 0.0
  %813 = vmatprep.mubr.f32.mxu0 0.0
  %814 = vmatmul.mubr.f32.gmra.mrb[0].mxu0 %v219
  %v815 = vpop.f32.mrb[0].mxu0
  %v816 = vadd.f32 0.0, %v815
  %v817 = vpop.f32.mrb[0].mxu0
  %818 = vmatprep.mubr.f32.mxu0 0.0
  %819 = vmatmul.mubr.f32.gmra.mrb[0].mxu0 %v222
  %v820 = vpop.f32.mrb[0].mxu0
  %v821 = vadd.f32 0.0, %v820
  %v822 = vpop.f32.mrb[0].mxu0
  %823 = vdwg.mxu0
  %824 = vmatprep.subr.mxu0 0.0
  %825 = vmatpush1.msra.mxu0 %v183
  %826 = vmatprep.subr.mxu0 0.0
  %827 = vmatpush1.msra.mxu0 %v184
  %828 = vmatprep.subr.mxu0 0.0
  %829 = vmatpush1.msra.mxu0 %v185
  %830 = vmatprep.subr.mxu0 0.0
  %831 = vmatpush1.msra.mxu0 %v186
  %832 = vmatprep.subr.mxu0 0.0
  %833 = vmatpush1.msra.mxu0 %v187
  %834 = vmatprep.subr.mxu0 0.0
  %835 = vmatpush1.msra.mxu0 0.0
  %836 = vmatprep.subr.mxu0 0.0
  %837 = vmatpush1.msra.mxu0 0.0
  %838 = vmatprep.subr.mxu0 0.0
  %839 = vmatpush1.msra.mxu0 0.0
  %840 = vmatprep.subr.mxu0 0.0
  %841 = vmatpush1.msra.mxu0 0.0
  %842 = vmatprep.subr.mxu0 0.0
  %843 = vmatpush1.msra.mxu0 0.0
  %844 = vmatprep.subr.mxu0 0.0
  %845 = vmatpush1.msra.mxu0 0.0
  %846 = vmatprep.subr.mxu0 0.0
  %847 = vmatpush1.msra.mxu0 0.0
  %848 = vmatprep.subr.mxu0 0.0
  %849 = vmatpush1.msra.mxu0 0.0
  %850 = vmatprep.subr.mxu0 0.0
  %851 = vmatpush1.msra.mxu0 0.0
  %852 = vmatprep.subr.mxu0 0.0
  %853 = vmatpush1.msra.mxu0 0.0
  %854 = vmatprep.subr.mxu0 0.0
  %855 = vmatpush1.msra.mxu0 0.0
  %856 = vmatprep.subr.mxu0 0.0
  %857 = vmatpush1.msra.mxu0 0.0
  %858 = vmatprep.subr.mxu0 0.0
  %859 = vmatpush1.msra.mxu0 0.0
  %860 = vmatprep.subr.mxu0 0.0
  %861 = vmatpush1.msra.mxu0 0.0
  %862 = vmatprep.subr.mxu0 0.0
  %863 = vmatpush1.msra.mxu0 0.0
  %864 = vmatprep.subr.mxu0 0.0
  %865 = vmatpush1.msra.mxu0 0.0
  %866 = vmatprep.subr.mxu0 0.0
  %867 = vmatpush1.msra.mxu0 0.0
  %868 = vmatprep.subr.mxu0 0.0
  %869 = vmatpush1.msra.mxu0 0.0
  %870 = vmatprep.subr.mxu0 0.0
  %871 = vmatpush1.msra.mxu0 0.0
  %872 = vmatprep.subr.mxu0 0.0
  %873 = vmatpush1.msra.mxu0 0.0
  %874 = vmatprep.subr.mxu0 0.0
  %875 = vmatpush1.msra.mxu0 0.0
  %876 = vmatprep.subr.mxu0 0.0
  %877 = vmatpush1.msra.mxu0 0.0
  %878 = vmatprep.subr.mxu0 0.0
  %879 = vmatpush1.msra.mxu0 0.0
  %880 = vmatprep.subr.mxu0 0.0
  %881 = vmatpush1.msra.mxu0 0.0
  %882 = vmatprep.subr.mxu0 0.0
  %883 = vmatpush1.msra.mxu0 0.0
  %884 = vmatprep.subr.mxu0 0.0
  %885 = vmatpush1.msra.mxu0 0.0
  %886 = vmatprep.subr.mxu0 0.0
  %887 = vmatpush1.msra.mxu0 0.0
  %888 = vmatprep.mubr.f32.mxu0 0.0
  %889 = vmatmul.mubr.f32.gmra.mrb[0].mxu0 %v219
  %v890 = vpop.f32.mrb[0].mxu0
  %v891 = vadd.f32 0.0, %v890
  %v892 = vpop.f32.mrb[0].mxu0
  %893 = vmatprep.mubr.f32.mxu0 0.0
  %894 = vmatmul.mubr.f32.gmra.mrb[0].mxu0 %v222
  %v895 = vpop.f32.mrb[0].mxu0
  %v896 = vadd.f32 0.0, %v895
  %v897 = vpop.f32.mrb[0].mxu0
  %898 = vdwg.mxu0
  %899 = vmatprep.subr.mxu0 0.0
  %900 = vmatpush1.msra.mxu0 %v188
  %901 = vmatprep.subr.mxu0 0.0
  %902 = vmatpush1.msra.mxu0 %v189
  %903 = vmatprep.subr.mxu0 0.0
  %904 = vmatpush1.msra.mxu0 %v190
  %905 = vmatprep.subr.mxu0 0.0
  %906 = vmatpush1.msra.mxu0 %v191
  %907 = vmatprep.subr.mxu0 0.0
  %908 = vmatpush1.msra.mxu0 %v192
  %909 = vmatprep.subr.mxu0 0.0
  %910 = vmatpush1.msra.mxu0 0.0
  %911 = vmatprep.subr.mxu0 0.0
  %912 = vmatpush1.msra.mxu0 0.0
  %913 = vmatprep.subr.mxu0 0.0
  %914 = vmatpush1.msra.mxu0 0.0
  %915 = vmatprep.subr.mxu0 0.0
  %916 = vmatpush1.msra.mxu0 0.0
  %917 = vmatprep.subr.mxu0 0.0
  %918 = vmatpush1.msra.mxu0 0.0
  %919 = vmatprep.subr.mxu0 0.0
  %920 = vmatpush1.msra.mxu0 0.0
  %921 = vmatprep.subr.mxu0 0.0
  %922 = vmatpush1.msra.mxu0 0.0
  %923 = vmatprep.subr.mxu0 0.0
  %924 = vmatpush1.msra.mxu0 0.0
  %925 = vmatprep.subr.mxu0 0.0
  %926 = vmatpush1.msra.mxu0 0.0
  %927 = vmatprep.subr.mxu0 0.0
  %928 = vmatpush1.msra.mxu0 0.0
  %929 = vmatprep.subr.mxu0 0.0
  %930 = vmatpush1.msra.mxu0 0.0
  %931 = vmatprep.subr.mxu0 0.0
  %932 = vmatpush1.msra.mxu0 0.0
  %933 = vmatprep.subr.mxu0 0.0
  %934 = vmatpush1.msra.mxu0 0.0
  %935 = vmatprep.subr.mxu0 0.0
  %936 = vmatpush1.msra.mxu0 0.0
  %937 = vmatprep.subr.mxu0 0.0
  %938 = vmatpush1.msra.mxu0 0.0
  %939 = vmatprep.subr.mxu0 0.0
  %940 = vmatpush1.msra.mxu0 0.0
  %941 = vmatprep.subr.mxu0 0.0
  %942 = vmatpush1.msra.mxu0 0.0
  %943 = vmatprep.subr.mxu0 0.0
  %944 = vmatpush1.msra.mxu0 0.0
  %945 = vmatprep.subr.mxu0 0.0
  %946 = vmatpush1.msra.mxu0 0.0
  %947 = vmatprep.subr.mxu0 0.0
  %948 = vmatpush1.msra.mxu0 0.0
  %949 = vmatprep.subr.mxu0 0.0
  %950 = vmatpush1.msra.mxu0 0.0
  %951 = vmatprep.subr.mxu0 0.0
  %952 = vmatpush1.msra.mxu0 0.0
  %953 = vmatprep.subr.mxu0 0.0
  %954 = vmatpush1.msra.mxu0 0.0
  %955 = vmatprep.subr.mxu0 0.0
  %956 = vmatpush1.msra.mxu0 0.0
  %957 = vmatprep.subr.mxu0 0.0
  %958 = vmatpush1.msra.mxu0 0.0
  %959 = vmatprep.subr.mxu0 0.0
  %960 = vmatpush1.msra.mxu0 0.0
  %961 = vmatprep.subr.mxu0 0.0
  %962 = vmatpush1.msra.mxu0 0.0
  %963 = vmatprep.mubr.f32.mxu0 0.0
  %964 = vmatmul.mubr.f32.gmra.mrb[0].mxu0 %v219
  %v965 = vpop.f32.mrb[0].mxu0
  %v966 = vadd.f32 0.0, %v965
  %v967 = vpop.f32.mrb[0].mxu0
  %968 = vmatprep.mubr.f32.mxu0 0.0
  %969 = vmatmul.mubr.f32.gmra.mrb[0].mxu0 %v222
  %v970 = vpop.f32.mrb[0].mxu0
  %v971 = vadd.f32 0.0, %v970
  %v972 = vpop.f32.mrb[0].mxu0
  %973 = vdwg.mxu0
  %974 = vmatprep.subr.mxu0 0.0
  %975 = vmatpush1.msra.mxu0 %v193
  %976 = vmatprep.subr.mxu0 0.0
  %977 = vmatpush1.msra.mxu0 %v194
  %978 = vmatprep.subr.mxu0 0.0
  %979 = vmatpush1.msra.mxu0 %v195
  %980 = vmatprep.subr.mxu0 0.0
  %981 = vmatpush1.msra.mxu0 %v196
  %982 = vmatprep.subr.mxu0 0.0
  %983 = vmatpush1.msra.mxu0 %v197
  %984 = vmatprep.subr.mxu0 0.0
  %985 = vmatpush1.msra.mxu0 0.0
  %986 = vmatprep.subr.mxu0 0.0
  %987 = vmatpush1.msra.mxu0 0.0
  %988 = vmatprep.subr.mxu0 0.0
  %989 = vmatpush1.msra.mxu0 0.0
  %990 = vmatprep.subr.mxu0 0.0
  %991 = vmatpush1.msra.mxu0 0.0
  %992 = vmatprep.subr.mxu0 0.0
  %993 = vmatpush1.msra.mxu0 0.0
  %994 = vmatprep.subr.mxu0 0.0
  %995 = vmatpush1.msra.mxu0 0.0
  %996 = vmatprep.subr.mxu0 0.0
  %997 = vmatpush1.msra.mxu0 0.0
  %998 = vmatprep.subr.mxu0 0.0
  %999 = vmatpush1.msra.mxu0 0.0
  %1000 = vmatprep.subr.mxu0 0.0
  %1001 = vmatpush1.msra.mxu0 0.0
  %1002 = vmatprep.subr.mxu0 0.0
  %1003 = vmatpush1.msra.mxu0 0.0
  %1004 = vmatprep.subr.mxu0 0.0
  %1005 = vmatpush1.msra.mxu0 0.0
  %1006 = vmatprep.subr.mxu0 0.0
  %1007 = vmatpush1.msra.mxu0 0.0
  %1008 = vmatprep.subr.mxu0 0.0
  %1009 = vmatpush1.msra.mxu0 0.0
  %1010 = vmatprep.subr.mxu0 0.0
  %1011 = vmatpush1.msra.mxu0 0.0
  %1012 = vmatprep.subr.mxu0 0.0
  %1013 = vmatpush1.msra.mxu0 0.0
  %1014 = vmatprep.subr.mxu0 0.0
  %1015 = vmatpush1.msra.mxu0 0.0
  %1016 = vmatprep.subr.mxu0 0.0
  %1017 = vmatpush1.msra.mxu0 0.0
  %1018 = vmatprep.subr.mxu0 0.0
  %1019 = vmatpush1.msra.mxu0 0.0
  %1020 = vmatprep.subr.mxu0 0.0
  %1021 = vmatpush1.msra.mxu0 0.0
  %1022 = vmatprep.subr.mxu0 0.0
  %1023 = vmatpush1.msra.mxu0 0.0
  %1024 = vmatprep.subr.mxu0 0.0
  %1025 = vmatpush1.msra.mxu0 0.0
  %1026 = vmatprep.subr.mxu0 0.0
  %1027 = vmatpush1.msra.mxu0 0.0
  %1028 = vmatprep.subr.mxu0 0.0
  %1029 = vmatpush1.msra.mxu0 0.0
  %1030 = vmatprep.subr.mxu0 0.0
  %1031 = vmatpush1.msra.mxu0 0.0
  %1032 = vmatprep.subr.mxu0 0.0
  %1033 = vmatpush1.msra.mxu0 0.0
  %1034 = vmatprep.subr.mxu0 0.0
  %1035 = vmatpush1.msra.mxu0 0.0
  %1036 = vmatprep.subr.mxu0 0.0
  %1037 = vmatpush1.msra.mxu0 0.0
  %1038 = vmatprep.mubr.f32.mxu0 0.0
  %1039 = vmatmul.mubr.f32.gmra.mrb[0].mxu0 %v219
  %v1040 = vpop.f32.mrb[0].mxu0
  %v1041 = vadd.f32 0.0, %v1040
  %v1042 = vpop.f32.mrb[0].mxu0
  %1043 = vmatprep.mubr.f32.mxu0 0.0
  %1044 = vmatmul.mubr.f32.gmra.mrb[0].mxu0 %v222
  %v1045 = vpop.f32.mrb[0].mxu0
  %v1046 = vadd.f32 0.0, %v1045
  %v1047 = vpop.f32.mrb[0].mxu0
  %1048 = vdwg.mxu0
  %1049 = vmatprep.subr.mxu0 0.0
  %1050 = vmatpush1.msra.mxu0 %v198
  %1051 = vmatprep.subr.mxu0 0.0
  %1052 = vmatpush1.msra.mxu0 %v199
  %1053 = vmatprep.subr.mxu0 0.0
  %1054 = vmatpush1.msra.mxu0 %v200
  %1055 = vmatprep.subr.mxu0 0.0
  %1056 = vmatpush1.msra.mxu0 %v201
  %1057 = vmatprep.subr.mxu0 0.0
  %1058 = vmatpush1.msra.mxu0 %v202
  %1059 = vmatprep.subr.mxu0 0.0
  %1060 = vmatpush1.msra.mxu0 0.0
  %1061 = vmatprep.subr.mxu0 0.0
  %1062 = vmatpush1.msra.mxu0 0.0
  %1063 = vmatprep.subr.mxu0 0.0
  %1064 = vmatpush1.msra.mxu0 0.0
  %1065 = vmatprep.subr.mxu0 0.0
  %1066 = vmatpush1.msra.mxu0 0.0
  %1067 = vmatprep.subr.mxu0 0.0
  %1068 = vmatpush1.msra.mxu0 0.0
  %1069 = vmatprep.subr.mxu0 0.0
  %1070 = vmatpush1.msra.mxu0 0.0
  %1071 = vmatprep.subr.mxu0 0.0
  %1072 = vmatpush1.msra.mxu0 0.0
  %1073 = vmatprep.subr.mxu0 0.0
  %1074 = vmatpush1.msra.mxu0 0.0
  %1075 = vmatprep.subr.mxu0 0.0
  %1076 = vmatpush1.msra.mxu0 0.0
  %1077 = vmatprep.subr.mxu0 0.0
  %1078 = vmatpush1.msra.mxu0 0.0
  %1079 = vmatprep.subr.mxu0 0.0
  %1080 = vmatpush1.msra.mxu0 0.0
  %1081 = vmatprep.subr.mxu0 0.0
  %1082 = vmatpush1.msra.mxu0 0.0
  %1083 = vmatprep.subr.mxu0 0.0
  %1084 = vmatpush1.msra.mxu0 0.0
  %1085 = vmatprep.subr.mxu0 0.0
  %1086 = vmatpush1.msra.mxu0 0.0
  %1087 = vmatprep.subr.mxu0 0.0
  %1088 = vmatpush1.msra.mxu0 0.0
  %1089 = vmatprep.subr.mxu0 0.0
  %1090 = vmatpush1.msra.mxu0 0.0
  %1091 = vmatprep.subr.mxu0 0.0
  %1092 = vmatpush1.msra.mxu0 0.0
  %1093 = vmatprep.subr.mxu0 0.0
  %1094 = vmatpush1.msra.mxu0 0.0
  %1095 = vmatprep.subr.mxu0 0.0
  %1096 = vmatpush1.msra.mxu0 0.0
  %1097 = vmatprep.subr.mxu0 0.0
  %1098 = vmatpush1.msra.mxu0 0.0
  %1099 = vmatprep.subr.mxu0 0.0
  %1100 = vmatpush1.msra.mxu0 0.0
  %1101 = vmatprep.subr.mxu0 0.0
  %1102 = vmatpush1.msra.mxu0 0.0
  %1103 = vmatprep.subr.mxu0 0.0
  %1104 = vmatpush1.msra.mxu0 0.0
  %1105 = vmatprep.subr.mxu0 0.0
  %1106 = vmatpush1.msra.mxu0 0.0
  %1107 = vmatprep.subr.mxu0 0.0
  %1108 = vmatpush1.msra.mxu0 0.0
  %1109 = vmatprep.subr.mxu0 0.0
  %1110 = vmatpush1.msra.mxu0 0.0
  %1111 = vmatprep.subr.mxu0 0.0
  %1112 = vmatpush1.msra.mxu0 0.0
  %1113 = vmatprep.mubr.f32.mxu0 0.0
  %1114 = vmatmul.mubr.f32.gmra.mrb[0].mxu0 %v219
  %v1115 = vpop.f32.mrb[0].mxu0
  %v1116 = vadd.f32 0.0, %v1115
  %v1117 = vpop.f32.mrb[0].mxu0
  %1118 = vmatprep.mubr.f32.mxu0 0.0
  %1119 = vmatmul.mubr.f32.gmra.mrb[0].mxu0 %v222
  %v1120 = vpop.f32.mrb[0].mxu0
  %v1121 = vadd.f32 0.0, %v1120
  %v1122 = vpop.f32.mrb[0].mxu0
  %1123 = vdwg.mxu0
  %vm1124 = vcmask 64512
  %v1126 = vsel %vm1124, %v291, 0
  %v1129 = vsel %vm1124, %v296, 0
  %v1132 = vsel %vm1124, %v591, 0
  %v1135 = vsel %vm1124, %v596, 0
  %1137 = vmatprep.subr.mxu0 0.0
  %1138 = vmatpush1.xpose.msra.mxu0 %v1132
  %1139 = vmatprep.subr.mxu0 0.0
  %1140 = vmatpush1.xpose.msra.mxu0 %v1135
  %1141 = vmatprep.subr.mxu0 0.0
  %1142 = vmatpush1.xpose.msra.mxu0 0.0
  %1143 = vmatprep.subr.mxu0 0.0
  %1144 = vmatpush1.xpose.msra.mxu0 0.0
  %1145 = vmatprep.subr.mxu0 0.0
  %1146 = vmatpush1.xpose.msra.mxu0 0.0
  %1147 = vmatprep.subr.mxu0 0.0
  %1148 = vmatpush1.xpose.msra.mxu0 0.0
  %1149 = vmatprep.subr.mxu0 0.0
  %1150 = vmatpush1.xpose.msra.mxu0 0.0
  %1151 = vmatprep.subr.mxu0 0.0
  %1152 = vmatpush1.xpose.msra.mxu0 0.0
  %1153 = vmatprep.subr.mxu0 0.0
  %1154 = vmatpush1.xpose.msra.mxu0 0.0
  %1155 = vmatprep.subr.mxu0 0.0
  %1156 = vmatpush1.xpose.msra.mxu0 0.0
  %1157 = vmatprep.subr.mxu0 0.0
  %1158 = vmatpush1.xpose.msra.mxu0 0.0
  %1159 = vmatprep.subr.mxu0 0.0
  %1160 = vmatpush1.xpose.msra.mxu0 0.0
  %1161 = vmatprep.subr.mxu0 0.0
  %1162 = vmatpush1.xpose.msra.mxu0 0.0
  %1163 = vmatprep.subr.mxu0 0.0
  %1164 = vmatpush1.xpose.msra.mxu0 0.0
  %1165 = vmatprep.subr.mxu0 0.0
  %1166 = vmatpush1.xpose.msra.mxu0 0.0
  %1167 = vmatprep.subr.mxu0 0.0
  %1168 = vmatpush1.xpose.msra.mxu0 0.0
  %1169 = vmatprep.subr.mxu0 0.0
  %1170 = vmatpush1.xpose.msra.mxu0 0.0
  %1171 = vmatprep.subr.mxu0 0.0
  %1172 = vmatpush1.xpose.msra.mxu0 0.0
  %1173 = vmatprep.subr.mxu0 0.0
  %1174 = vmatpush1.xpose.msra.mxu0 0.0
  %1175 = vmatprep.subr.mxu0 0.0
  %1176 = vmatpush1.xpose.msra.mxu0 0.0
  %1177 = vmatprep.subr.mxu0 0.0
  %1178 = vmatpush1.xpose.msra.mxu0 0.0
  %1179 = vmatprep.subr.mxu0 0.0
  %1180 = vmatpush1.xpose.msra.mxu0 0.0
  %1181 = vmatprep.subr.mxu0 0.0
  %1182 = vmatpush1.xpose.msra.mxu0 0.0
  %1183 = vmatprep.subr.mxu0 0.0
  %1184 = vmatpush1.xpose.msra.mxu0 0.0
  %1185 = vmatprep.subr.mxu0 0.0
  %1186 = vmatpush1.xpose.msra.mxu0 0.0
  %1187 = vmatprep.subr.mxu0 0.0
  %1188 = vmatpush1.xpose.msra.mxu0 0.0
  %1189 = vmatprep.subr.mxu0 0.0
  %1190 = vmatpush1.xpose.msra.mxu0 0.0
  %1191 = vmatprep.subr.mxu0 0.0
  %1192 = vmatpush1.xpose.msra.mxu0 0.0
  %1193 = vmatprep.subr.mxu0 0.0
  %1194 = vmatpush1.xpose.msra.mxu0 0.0
  %1195 = vmatprep.subr.mxu0 0.0
  %1196 = vmatpush1.xpose.msra.mxu0 0.0
  %1197 = vmatprep.subr.mxu0 0.0
  %1198 = vmatpush1.xpose.msra.mxu0 0.0
  %1199 = vmatprep.subr.mxu0 0.0
  %1200 = vmatpush1.xpose.msra.mxu0 0.0
  %1201 = vmatprep.mubr.f32.mxu0 0.0
  %1202 = vmatmul.mubr.f32.gmra.mrb[0].mxu0 %v1126
  %v1203 = vpop.f32.mrb[0].mxu0
  %v1204 = vadd.f32 %v141, %v1203
  %v1205 = vpop.f32.mrb[0].mxu0
  %1206 = vmatprep.mubr.f32.mxu0 0.0
  %1207 = vmatmul.mubr.f32.gmra.mrb[0].mxu0 %v1129
  %v1208 = vpop.f32.mrb[0].mxu0
  %v1209 = vadd.f32 %v142, %v1208
  %v1210 = vpop.f32.mrb[0].mxu0
  %1211 = vdwg.mxu0
  %v1213 = vsel %vm1124, %v366, 0
  %v1216 = vsel %vm1124, %v371, 0
  %v1219 = vsel %vm1124, %v666, 0
  %v1222 = vsel %vm1124, %v671, 0
  %1224 = vmatprep.subr.mxu0 0.0
  %1225 = vmatpush1.xpose.msra.mxu0 %v1219
  %1226 = vmatprep.subr.mxu0 0.0
  %1227 = vmatpush1.xpose.msra.mxu0 %v1222
  %1228 = vmatprep.subr.mxu0 0.0
  %1229 = vmatpush1.xpose.msra.mxu0 0.0
  %1230 = vmatprep.subr.mxu0 0.0
  %1231 = vmatpush1.xpose.msra.mxu0 0.0
  %1232 = vmatprep.subr.mxu0 0.0
  %1233 = vmatpush1.xpose.msra.mxu0 0.0
  %1234 = vmatprep.subr.mxu0 0.0
  %1235 = vmatpush1.xpose.msra.mxu0 0.0
  %1236 = vmatprep.subr.mxu0 0.0
  %1237 = vmatpush1.xpose.msra.mxu0 0.0
  %1238 = vmatprep.subr.mxu0 0.0
  %1239 = vmatpush1.xpose.msra.mxu0 0.0
  %1240 = vmatprep.subr.mxu0 0.0
  %1241 = vmatpush1.xpose.msra.mxu0 0.0
  %1242 = vmatprep.subr.mxu0 0.0
  %1243 = vmatpush1.xpose.msra.mxu0 0.0
  %1244 = vmatprep.subr.mxu0 0.0
  %1245 = vmatpush1.xpose.msra.mxu0 0.0
  %1246 = vmatprep.subr.mxu0 0.0
  %1247 = vmatpush1.xpose.msra.mxu0 0.0
  %1248 = vmatprep.subr.mxu0 0.0
  %1249 = vmatpush1.xpose.msra.mxu0 0.0
  %1250 = vmatprep.subr.mxu0 0.0
  %1251 = vmatpush1.xpose.msra.mxu0 0.0
  %1252 = vmatprep.subr.mxu0 0.0
  %1253 = vmatpush1.xpose.msra.mxu0 0.0
  %1254 = vmatprep.subr.mxu0 0.0
  %1255 = vmatpush1.xpose.msra.mxu0 0.0
  %1256 = vmatprep.subr.mxu0 0.0
  %1257 = vmatpush1.xpose.msra.mxu0 0.0
  %1258 = vmatprep.subr.mxu0 0.0
  %1259 = vmatpush1.xpose.msra.mxu0 0.0
  %1260 = vmatprep.subr.mxu0 0.0
  %1261 = vmatpush1.xpose.msra.mxu0 0.0
  %1262 = vmatprep.subr.mxu0 0.0
  %1263 = vmatpush1.xpose.msra.mxu0 0.0
  %1264 = vmatprep.subr.mxu0 0.0
  %1265 = vmatpush1.xpose.msra.mxu0 0.0
  %1266 = vmatprep.subr.mxu0 0.0
  %1267 = vmatpush1.xpose.msra.mxu0 0.0
  %1268 = vmatprep.subr.mxu0 0.0
  %1269 = vmatpush1.xpose.msra.mxu0 0.0
  %1270 = vmatprep.subr.mxu0 0.0
  %1271 = vmatpush1.xpose.msra.mxu0 0.0
  %1272 = vmatprep.subr.mxu0 0.0
  %1273 = vmatpush1.xpose.msra.mxu0 0.0
  %1274 = vmatprep.subr.mxu0 0.0
  %1275 = vmatpush1.xpose.msra.mxu0 0.0
  %1276 = vmatprep.subr.mxu0 0.0
  %1277 = vmatpush1.xpose.msra.mxu0 0.0
  %1278 = vmatprep.subr.mxu0 0.0
  %1279 = vmatpush1.xpose.msra.mxu0 0.0
  %1280 = vmatprep.subr.mxu0 0.0
  %1281 = vmatpush1.xpose.msra.mxu0 0.0
  %1282 = vmatprep.subr.mxu0 0.0
  %1283 = vmatpush1.xpose.msra.mxu0 0.0
  %1284 = vmatprep.subr.mxu0 0.0
  %1285 = vmatpush1.xpose.msra.mxu0 0.0
  %1286 = vmatprep.subr.mxu0 0.0
  %1287 = vmatpush1.xpose.msra.mxu0 0.0
  %1288 = vmatprep.mubr.f32.mxu0 0.0
  %1289 = vmatmul.mubr.f32.gmra.mrb[0].mxu0 %v1213
  %v1290 = vpop.f32.mrb[0].mxu0
  %v1291 = vadd.f32 %v141, %v1290
  %v1292 = vpop.f32.mrb[0].mxu0
  %1293 = vmatprep.mubr.f32.mxu0 0.0
  %1294 = vmatmul.mubr.f32.gmra.mrb[0].mxu0 %v1216
  %v1295 = vpop.f32.mrb[0].mxu0
  %v1296 = vadd.f32 %v142, %v1295
  %v1297 = vpop.f32.mrb[0].mxu0
  %1298 = vdwg.mxu0
  %v1300 = vsel %vm1124, %v441, 0
  %v1303 = vsel %vm1124, %v446, 0
  %v1306 = vsel %vm1124, %v741, 0
  %v1309 = vsel %vm1124, %v746, 0
  %1311 = vmatprep.subr.mxu0 0.0
  %1312 = vmatpush1.xpose.msra.mxu0 %v1306
  %1313 = vmatprep.subr.mxu0 0.0
  %1314 = vmatpush1.xpose.msra.mxu0 %v1309
  %1315 = vmatprep.subr.mxu0 0.0
  %1316 = vmatpush1.xpose.msra.mxu0 0.0
  %1317 = vmatprep.subr.mxu0 0.0
  %1318 = vmatpush1.xpose.msra.mxu0 0.0
  %1319 = vmatprep.subr.mxu0 0.0
  %1320 = vmatpush1.xpose.msra.mxu0 0.0
  %1321 = vmatprep.subr.mxu0 0.0
  %1322 = vmatpush1.xpose.msra.mxu0 0.0
  %1323 = vmatprep.subr.mxu0 0.0
  %1324 = vmatpush1.xpose.msra.mxu0 0.0
  %1325 = vmatprep.subr.mxu0 0.0
  %1326 = vmatpush1.xpose.msra.mxu0 0.0
  %1327 = vmatprep.subr.mxu0 0.0
  %1328 = vmatpush1.xpose.msra.mxu0 0.0
  %1329 = vmatprep.subr.mxu0 0.0
  %1330 = vmatpush1.xpose.msra.mxu0 0.0
  %1331 = vmatprep.subr.mxu0 0.0
  %1332 = vmatpush1.xpose.msra.mxu0 0.0
  %1333 = vmatprep.subr.mxu0 0.0
  %1334 = vmatpush1.xpose.msra.mxu0 0.0
  %1335 = vmatprep.subr.mxu0 0.0
  %1336 = vmatpush1.xpose.msra.mxu0 0.0
  %1337 = vmatprep.subr.mxu0 0.0
  %1338 = vmatpush1.xpose.msra.mxu0 0.0
  %1339 = vmatprep.subr.mxu0 0.0
  %1340 = vmatpush1.xpose.msra.mxu0 0.0
  %1341 = vmatprep.subr.mxu0 0.0
  %1342 = vmatpush1.xpose.msra.mxu0 0.0
  %1343 = vmatprep.subr.mxu0 0.0
  %1344 = vmatpush1.xpose.msra.mxu0 0.0
  %1345 = vmatprep.subr.mxu0 0.0
  %1346 = vmatpush1.xpose.msra.mxu0 0.0
  %1347 = vmatprep.subr.mxu0 0.0
  %1348 = vmatpush1.xpose.msra.mxu0 0.0
  %1349 = vmatprep.subr.mxu0 0.0
  %1350 = vmatpush1.xpose.msra.mxu0 0.0
  %1351 = vmatprep.subr.mxu0 0.0
  %1352 = vmatpush1.xpose.msra.mxu0 0.0
  %1353 = vmatprep.subr.mxu0 0.0
  %1354 = vmatpush1.xpose.msra.mxu0 0.0
  %1355 = vmatprep.subr.mxu0 0.0
  %1356 = vmatpush1.xpose.msra.mxu0 0.0
  %1357 = vmatprep.subr.mxu0 0.0
  %1358 = vmatpush1.xpose.msra.mxu0 0.0
  %1359 = vmatprep.subr.mxu0 0.0
  %1360 = vmatpush1.xpose.msra.mxu0 0.0
  %1361 = vmatprep.subr.mxu0 0.0
  %1362 = vmatpush1.xpose.msra.mxu0 0.0
  %1363 = vmatprep.subr.mxu0 0.0
  %1364 = vmatpush1.xpose.msra.mxu0 0.0
  %1365 = vmatprep.subr.mxu0 0.0
  %1366 = vmatpush1.xpose.msra.mxu0 0.0
  %1367 = vmatprep.subr.mxu0 0.0
  %1368 = vmatpush1.xpose.msra.mxu0 0.0
  %1369 = vmatprep.subr.mxu0 0.0
  %1370 = vmatpush1.xpose.msra.mxu0 0.0
  %1371 = vmatprep.subr.mxu0 0.0
  %1372 = vmatpush1.xpose.msra.mxu0 0.0
  %1373 = vmatprep.subr.mxu0 0.0
  %1374 = vmatpush1.xpose.msra.mxu0 0.0
  %1375 = vmatprep.mubr.f32.mxu0 0.0
  %1376 = vmatmul.mubr.f32.gmra.mrb[0].mxu0 %v1300
  %v1377 = vpop.f32.mrb[0].mxu0
  %v1378 = vadd.f32 %v141, %v1377
  %v1379 = vpop.f32.mrb[0].mxu0
  %1380 = vmatprep.mubr.f32.mxu0 0.0
  %1381 = vmatmul.mubr.f32.gmra.mrb[0].mxu0 %v1303
  %v1382 = vpop.f32.mrb[0].mxu0
  %v1383 = vadd.f32 %v142, %v1382
  %v1384 = vpop.f32.mrb[0].mxu0
  %1385 = vdwg.mxu0
  %v1387 = vsel %vm1124, %v516, 0
  %v1390 = vsel %vm1124, %v521, 0
  %v1393 = vsel %vm1124, %v816, 0
  %v1396 = vsel %vm1124, %v821, 0
  %1398 = vmatprep.subr.mxu0 0.0
  %1399 = vmatpush1.xpose.msra.mxu0 %v1393
  %1400 = vmatprep.subr.mxu0 0.0
  %1401 = vmatpush1.xpose.msra.mxu0 %v1396
  %1402 = vmatprep.subr.mxu0 0.0
  %1403 = vmatpush1.xpose.msra.mxu0 0.0
  %1404 = vmatprep.subr.mxu0 0.0
  %1405 = vmatpush1.xpose.msra.mxu0 0.0
  %1406 = vmatprep.subr.mxu0 0.0
  %1407 = vmatpush1.xpose.msra.mxu0 0.0
  %1408 = vmatprep.subr.mxu0 0.0
  %1409 = vmatpush1.xpose.msra.mxu0 0.0
  %1410 = vmatprep.subr.mxu0 0.0
  %1411 = vmatpush1.xpose.msra.mxu0 0.0
  %1412 = vmatprep.subr.mxu0 0.0
  %1413 = vmatpush1.xpose.msra.mxu0 0.0
  %1414 = vmatprep.subr.mxu0 0.0
  %1415 = vmatpush1.xpose.msra.mxu0 0.0
  %1416 = vmatprep.subr.mxu0 0.0
  %1417 = vmatpush1.xpose.msra.mxu0 0.0
  %1418 = vmatprep.subr.mxu0 0.0
  %1419 = vmatpush1.xpose.msra.mxu0 0.0
  %1420 = vmatprep.subr.mxu0 0.0
  %1421 = vmatpush1.xpose.msra.mxu0 0.0
  %1422 = vmatprep.subr.mxu0 0.0
  %1423 = vmatpush1.xpose.msra.mxu0 0.0
  %1424 = vmatprep.subr.mxu0 0.0
  %1425 = vmatpush1.xpose.msra.mxu0 0.0
  %1426 = vmatprep.subr.mxu0 0.0
  %1427 = vmatpush1.xpose.msra.mxu0 0.0
  %1428 = vmatprep.subr.mxu0 0.0
  %1429 = vmatpush1.xpose.msra.mxu0 0.0
  %1430 = vmatprep.subr.mxu0 0.0
  %1431 = vmatpush1.xpose.msra.mxu0 0.0
  %1432 = vmatprep.subr.mxu0 0.0
  %1433 = vmatpush1.xpose.msra.mxu0 0.0
  %1434 = vmatprep.subr.mxu0 0.0
  %1435 = vmatpush1.xpose.msra.mxu0 0.0
  %1436 = vmatprep.subr.mxu0 0.0
  %1437 = vmatpush1.xpose.msra.mxu0 0.0
  %1438 = vmatprep.subr.mxu0 0.0
  %1439 = vmatpush1.xpose.msra.mxu0 0.0
  %1440 = vmatprep.subr.mxu0 0.0
  %1441 = vmatpush1.xpose.msra.mxu0 0.0
  %1442 = vmatprep.subr.mxu0 0.0
  %1443 = vmatpush1.xpose.msra.mxu0 0.0
  %1444 = vmatprep.subr.mxu0 0.0
  %1445 = vmatpush1.xpose.msra.mxu0 0.0
  %1446 = vmatprep.subr.mxu0 0.0
  %1447 = vmatpush1.xpose.msra.mxu0 0.0
  %1448 = vmatprep.subr.mxu0 0.0
  %1449 = vmatpush1.xpose.msra.mxu0 0.0
  %1450 = vmatprep.subr.mxu0 0.0
  %1451 = vmatpush1.xpose.msra.mxu0 0.0
  %1452 = vmatprep.subr.mxu0 0.0
  %1453 = vmatpush1.xpose.msra.mxu0 0.0
  %1454 = vmatprep.subr.mxu0 0.0
  %1455 = vmatpush1.xpose.msra.mxu0 0.0
  %1456 = vmatprep.subr.mxu0 0.0
  %1457 = vmatpush1.xpose.msra.mxu0 0.0
  %1458 = vmatprep.subr.mxu0 0.0
  %1459 = vmatpush1.xpose.msra.mxu0 0.0
  %1460 = vmatprep.subr.mxu0 0.0
  %1461 = vmatpush1.xpose.msra.mxu0 0.0
  %1462 = vmatprep.mubr.f32.mxu0 0.0
  %1463 = vmatmul.mubr.f32.gmra.mrb[0].mxu0 %v1387
  %v1464 = vpop.f32.mrb[0].mxu0
  %v1465 = vadd.f32 %v141, %v1464
  %v1466 = vpop.f32.mrb[0].mxu0
  %1467 = vmatprep.mubr.f32.mxu0 0.0
  %1468 = vmatmul.mubr.f32.gmra.mrb[0].mxu0 %v1390
  %v1469 = vpop.f32.mrb[0].mxu0
  %v1470 = vadd.f32 %v142, %v1469
  %v1471 = vpop.f32.mrb[0].mxu0
  %1472 = vdwg.mxu0
  %vm1473 = vcmask 130048
  %v1474 = vsel %vm1473, %v1204, -inf
  %1475 = vmax.xlane.f32.xlu0 %v1474
  %v1476 = vpop.xlane.xlu0 %1475
  %v1477 = vsel %vm1473, %v1209, -inf
  %1478 = vmax.xlane.f32.xlu0 %v1477
  %v1479 = vpop.xlane.xlu0 %1478
  %v1480 = vsel %vm1473, %v1291, -inf
  %1481 = vmax.xlane.f32.xlu0 %v1480
  %v1482 = vpop.xlane.xlu0 %1481
  %v1483 = vsel %vm1473, %v1296, -inf
  %1484 = vmax.xlane.f32.xlu0 %v1483
  %v1485 = vpop.xlane.xlu0 %1484
  %v1486 = vsel %vm1473, %v1378, -inf
  %1487 = vmax.xlane.f32.xlu0 %v1486
  %v1488 = vpop.xlane.xlu0 %1487
  %v1489 = vsel %vm1473, %v1383, -inf
  %1490 = vmax.xlane.f32.xlu0 %v1489
  %v1491 = vpop.xlane.xlu0 %1490
  %v1492 = vsel %vm1473, %v1465, -inf
  %1493 = vmax.xlane.f32.xlu0 %v1492
  %v1494 = vpop.xlane.xlu0 %1493
  %v1495 = vsel %vm1473, %v1470, -inf
  %1496 = vmax.xlane.f32.xlu0 %v1495
  %v1497 = vpop.xlane.xlu0 %1496
  %v1498 = vsub.f32 %v1204, %v1476
  %v1499 = vsub.f32 %v1209, %v1479
  %v1500 = vsub.f32 %v1291, %v1482
  %v1501 = vsub.f32 %v1296, %v1485
  %v1502 = vsub.f32 %v1378, %v1488
  %v1503 = vsub.f32 %v1383, %v1491
  %v1504 = vsub.f32 %v1465, %v1494
  %v1505 = vsub.f32 %v1470, %v1497
  %v1506 = vmul.f32 %v1498, 1.442695
  %v1507 = vpow.pop %v1506
  %v1508 = vmul.f32 %v1499, 1.442695
  %v1509 = vpow.pop %v1508
  %v1510 = vmul.f32 %v1500, 1.442695
  %v1511 = vpow.pop %v1510
  %v1512 = vmul.f32 %v1501, 1.442695
  %v1513 = vpow.pop %v1512
  %v1514 = vmul.f32 %v1502, 1.442695
  %v1515 = vpow.pop %v1514
  %v1516 = vmul.f32 %v1503, 1.442695
  %v1517 = vpow.pop %v1516
  %v1518 = vmul.f32 %v1504, 1.442695
  %v1519 = vpow.pop %v1518
  %v1520 = vmul.f32 %v1505, 1.442695
  %v1521 = vpow.pop %v1520
  %v1522 = vsel %vm1473, %v1507, 0.0
  %1523 = vadd.xlane.f32.xlu0 %v1522
  %v1524 = vpop.xlane.xlu0 %1523
  %v1525 = vsel %vm1473, %v1509, 0.0
  %1526 = vadd.xlane.f32.xlu0 %v1525
  %v1527 = vpop.xlane.xlu0 %1526
  %v1528 = vsel %vm1473, %v1511, 0.0
  %1529 = vadd.xlane.f32.xlu0 %v1528
  %v1530 = vpop.xlane.xlu0 %1529
  %v1531 = vsel %vm1473, %v1513, 0.0
  %1532 = vadd.xlane.f32.xlu0 %v1531
  %v1533 = vpop.xlane.xlu0 %1532
  %v1534 = vsel %vm1473, %v1515, 0.0
  %1535 = vadd.xlane.f32.xlu0 %v1534
  %v1536 = vpop.xlane.xlu0 %1535
  %v1537 = vsel %vm1473, %v1517, 0.0
  %1538 = vadd.xlane.f32.xlu0 %v1537
  %v1539 = vpop.xlane.xlu0 %1538
  %v1540 = vsel %vm1473, %v1519, 0.0
  %1541 = vadd.xlane.f32.xlu0 %v1540
  %v1542 = vpop.xlane.xlu0 %1541
  %v1543 = vsel %vm1473, %v1521, 0.0
  %1544 = vadd.xlane.f32.xlu0 %v1543
  %v1545 = vpop.xlane.xlu0 %1544
  %v1546 = vrcp.pop %v1524
  %v1547 = vrcp.pop %v1527
  %v1548 = vrcp.pop %v1530
  %v1549 = vrcp.pop %v1533
  %v1550 = vrcp.pop %v1536
  %v1551 = vrcp.pop %v1539
  %v1552 = vrcp.pop %v1542
  %v1553 = vrcp.pop %v1545
  %v1554 = vmul.f32 %v1507, %v1546
  %v1555 = vmul.f32 %v1509, %v1547
  %v1556 = vmul.f32 %v1511, %v1548
  %v1557 = vmul.f32 %v1513, %v1549
  %v1558 = vmul.f32 %v1515, %v1550
  %v1559 = vmul.f32 %v1517, %v1551
  %v1560 = vmul.f32 %v1519, %v1552
  %v1561 = vmul.f32 %v1521, %v1553
  %v1563 = vsel %vm1473, %v1554, 0
  %v1566 = vsel %vm1473, %v1555, 0
  %1568 = vmatprep.subr.mxu0 0.0
  %1569 = vmatpush1.msra.mxu0 %v891
  %1570 = vmatprep.subr.mxu0 0.0
  %1571 = vmatpush1.msra.mxu0 %v896
  %1572 = vmatprep.subr.mxu0 0.0
  %1573 = vmatpush1.msra.mxu0 0.0
  %1574 = vmatprep.subr.mxu0 0.0
  %1575 = vmatpush1.msra.mxu0 0.0
  %1576 = vmatprep.subr.mxu0 0.0
  %1577 = vmatpush1.msra.mxu0 0.0
  %1578 = vmatprep.subr.mxu0 0.0
  %1579 = vmatpush1.msra.mxu0 0.0
  %1580 = vmatprep.subr.mxu0 0.0
  %1581 = vmatpush1.msra.mxu0 0.0
  %1582 = vmatprep.subr.mxu0 0.0
  %1583 = vmatpush1.msra.mxu0 0.0
  %1584 = vmatprep.subr.mxu0 0.0
  %1585 = vmatpush1.msra.mxu0 0.0
  %1586 = vmatprep.subr.mxu0 0.0
  %1587 = vmatpush1.msra.mxu0 0.0
  %1588 = vmatprep.subr.mxu0 0.0
  %1589 = vmatpush1.msra.mxu0 0.0
  %1590 = vmatprep.subr.mxu0 0.0
  %1591 = vmatpush1.msra.mxu0 0.0
  %1592 = vmatprep.subr.mxu0 0.0
  %1593 = vmatpush1.msra.mxu0 0.0
  %1594 = vmatprep.subr.mxu0 0.0
  %1595 = vmatpush1.msra.mxu0 0.0
  %1596 = vmatprep.subr.mxu0 0.0
  %1597 = vmatpush1.msra.mxu0 0.0
  %1598 = vmatprep.subr.mxu0 0.0
  %1599 = vmatpush1.msra.mxu0 0.0
  %1600 = vmatprep.subr.mxu0 0.0
  %1601 = vmatpush1.msra.mxu0 0.0
  %1602 = vmatprep.subr.mxu0 0.0
  %1603 = vmatpush1.msra.mxu0 0.0
  %1604 = vmatprep.subr.mxu0 0.0
  %1605 = vmatpush1.msra.mxu0 0.0
  %1606 = vmatprep.subr.mxu0 0.0
  %1607 = vmatpush1.msra.mxu0 0.0
  %1608 = vmatprep.subr.mxu0 0.0
  %1609 = vmatpush1.msra.mxu0 0.0
  %1610 = vmatprep.subr.mxu0 0.0
  %1611 = vmatpush1.msra.mxu0 0.0
  %1612 = vmatprep.subr.mxu0 0.0
  %1613 = vmatpush1.msra.mxu0 0.0
  %1614 = vmatprep.subr.mxu0 0.0
  %1615 = vmatpush1.msra.mxu0 0.0
  %1616 = vmatprep.subr.mxu0 0.0
  %1617 = vmatpush1.msra.mxu0 0.0
  %1618 = vmatprep.subr.mxu0 0.0
  %1619 = vmatpush1.msra.mxu0 0.0
  %1620 = vmatprep.subr.mxu0 0.0
  %1621 = vmatpush1.msra.mxu0 0.0
  %1622 = vmatprep.subr.mxu0 0.0
  %1623 = vmatpush1.msra.mxu0 0.0
  %1624 = vmatprep.subr.mxu0 0.0
  %1625 = vmatpush1.msra.mxu0 0.0
  %1626 = vmatprep.subr.mxu0 0.0
  %1627 = vmatpush1.msra.mxu0 0.0
  %1628 = vmatprep.subr.mxu0 0.0
  %1629 = vmatpush1.msra.mxu0 0.0
  %1630 = vmatprep.subr.mxu0 0.0
  %1631 = vmatpush1.msra.mxu0 0.0
  %1632 = vmatprep.mubr.f32.mxu0 0.0
  %1633 = vmatmul.mubr.f32.gmra.mrb[0].mxu0 %v1563
  %v1634 = vpop.f32.mrb[0].mxu0
  %v1635 = vadd.f32 0.0, %v1634
  %v1636 = vpop.f32.mrb[0].mxu0
  %1637 = vmatprep.mubr.f32.mxu0 0.0
  %1638 = vmatmul.mubr.f32.gmra.mrb[0].mxu0 %v1566
  %v1639 = vpop.f32.mrb[0].mxu0
  %v1640 = vadd.f32 0.0, %v1639
  %v1641 = vpop.f32.mrb[0].mxu0
  %1642 = vdwg.mxu0
  %v1644 = vsel %vm1473, %v1556, 0
  %v1647 = vsel %vm1473, %v1557, 0
  %1649 = vmatprep.subr.mxu0 0.0
  %1650 = vmatpush1.msra.mxu0 %v966
  %1651 = vmatprep.subr.mxu0 0.0
  %1652 = vmatpush1.msra.mxu0 %v971
  %1653 = vmatprep.subr.mxu0 0.0
  %1654 = vmatpush1.msra.mxu0 0.0
  %1655 = vmatprep.subr.mxu0 0.0
  %1656 = vmatpush1.msra.mxu0 0.0
  %1657 = vmatprep.subr.mxu0 0.0
  %1658 = vmatpush1.msra.mxu0 0.0
  %1659 = vmatprep.subr.mxu0 0.0
  %1660 = vmatpush1.msra.mxu0 0.0
  %1661 = vmatprep.subr.mxu0 0.0
  %1662 = vmatpush1.msra.mxu0 0.0
  %1663 = vmatprep.subr.mxu0 0.0
  %1664 = vmatpush1.msra.mxu0 0.0
  %1665 = vmatprep.subr.mxu0 0.0
  %1666 = vmatpush1.msra.mxu0 0.0
  %1667 = vmatprep.subr.mxu0 0.0
  %1668 = vmatpush1.msra.mxu0 0.0
  %1669 = vmatprep.subr.mxu0 0.0
  %1670 = vmatpush1.msra.mxu0 0.0
  %1671 = vmatprep.subr.mxu0 0.0
  %1672 = vmatpush1.msra.mxu0 0.0
  %1673 = vmatprep.subr.mxu0 0.0
  %1674 = vmatpush1.msra.mxu0 0.0
  %1675 = vmatprep.subr.mxu0 0.0
  %1676 = vmatpush1.msra.mxu0 0.0
  %1677 = vmatprep.subr.mxu0 0.0
  %1678 = vmatpush1.msra.mxu0 0.0
  %1679 = vmatprep.subr.mxu0 0.0
  %1680 = vmatpush1.msra.mxu0 0.0
  %1681 = vmatprep.subr.mxu0 0.0
  %1682 = vmatpush1.msra.mxu0 0.0
  %1683 = vmatprep.subr.mxu0 0.0
  %1684 = vmatpush1.msra.mxu0 0.0
  %1685 = vmatprep.subr.mxu0 0.0
  %1686 = vmatpush1.msra.mxu0 0.0
  %1687 = vmatprep.subr.mxu0 0.0
  %1688 = vmatpush1.msra.mxu0 0.0
  %1689 = vmatprep.subr.mxu0 0.0
  %1690 = vmatpush1.msra.mxu0 0.0
  %1691 = vmatprep.subr.mxu0 0.0
  %1692 = vmatpush1.msra.mxu0 0.0
  %1693 = vmatprep.subr.mxu0 0.0
  %1694 = vmatpush1.msra.mxu0 0.0
  %1695 = vmatprep.subr.mxu0 0.0
  %1696 = vmatpush1.msra.mxu0 0.0
  %1697 = vmatprep.subr.mxu0 0.0
  %1698 = vmatpush1.msra.mxu0 0.0
  %1699 = vmatprep.subr.mxu0 0.0
  %1700 = vmatpush1.msra.mxu0 0.0
  %1701 = vmatprep.subr.mxu0 0.0
  %1702 = vmatpush1.msra.mxu0 0.0
  %1703 = vmatprep.subr.mxu0 0.0
  %1704 = vmatpush1.msra.mxu0 0.0
  %1705 = vmatprep.subr.mxu0 0.0
  %1706 = vmatpush1.msra.mxu0 0.0
  %1707 = vmatprep.subr.mxu0 0.0
  %1708 = vmatpush1.msra.mxu0 0.0
  %1709 = vmatprep.subr.mxu0 0.0
  %1710 = vmatpush1.msra.mxu0 0.0
  %1711 = vmatprep.subr.mxu0 0.0
  %1712 = vmatpush1.msra.mxu0 0.0
  %1713 = vmatprep.mubr.f32.mxu0 0.0
  %1714 = vmatmul.mubr.f32.gmra.mrb[0].mxu0 %v1644
  %v1715 = vpop.f32.mrb[0].mxu0
  %v1716 = vadd.f32 0.0, %v1715
  %v1717 = vpop.f32.mrb[0].mxu0
  %1718 = vmatprep.mubr.f32.mxu0 0.0
  %1719 = vmatmul.mubr.f32.gmra.mrb[0].mxu0 %v1647
  %v1720 = vpop.f32.mrb[0].mxu0
  %v1721 = vadd.f32 0.0, %v1720
  %v1722 = vpop.f32.mrb[0].mxu0
  %1723 = vdwg.mxu0
  %v1725 = vsel %vm1473, %v1558, 0
  %v1728 = vsel %vm1473, %v1559, 0
  %1730 = vmatprep.subr.mxu0 0.0
  %1731 = vmatpush1.msra.mxu0 %v1041
  %1732 = vmatprep.subr.mxu0 0.0
  %1733 = vmatpush1.msra.mxu0 %v1046
  %1734 = vmatprep.subr.mxu0 0.0
  %1735 = vmatpush1.msra.mxu0 0.0
  %1736 = vmatprep.subr.mxu0 0.0
  %1737 = vmatpush1.msra.mxu0 0.0
  %1738 = vmatprep.subr.mxu0 0.0
  %1739 = vmatpush1.msra.mxu0 0.0
  %1740 = vmatprep.subr.mxu0 0.0
  %1741 = vmatpush1.msra.mxu0 0.0
  %1742 = vmatprep.subr.mxu0 0.0
  %1743 = vmatpush1.msra.mxu0 0.0
  %1744 = vmatprep.subr.mxu0 0.0
  %1745 = vmatpush1.msra.mxu0 0.0
  %1746 = vmatprep.subr.mxu0 0.0
  %1747 = vmatpush1.msra.mxu0 0.0
  %1748 = vmatprep.subr.mxu0 0.0
  %1749 = vmatpush1.msra.mxu0 0.0
  %1750 = vmatprep.subr.mxu0 0.0
  %1751 = vmatpush1.msra.mxu0 0.0
  %1752 = vmatprep.subr.mxu0 0.0
  %1753 = vmatpush1.msra.mxu0 0.0
  %1754 = vmatprep.subr.mxu0 0.0
  %1755 = vmatpush1.msra.mxu0 0.0
  %1756 = vmatprep.subr.mxu0 0.0
  %1757 = vmatpush1.msra.mxu0 0.0
  %1758 = vmatprep.subr.mxu0 0.0
  %1759 = vmatpush1.msra.mxu0 0.0
  %1760 = vmatprep.subr.mxu0 0.0
  %1761 = vmatpush1.msra.mxu0 0.0
  %1762 = vmatprep.subr.mxu0 0.0
  %1763 = vmatpush1.msra.mxu0 0.0
  %1764 = vmatprep.subr.mxu0 0.0
  %1765 = vmatpush1.msra.mxu0 0.0
  %1766 = vmatprep.subr.mxu0 0.0
  %1767 = vmatpush1.msra.mxu0 0.0
  %1768 = vmatprep.subr.mxu0 0.0
  %1769 = vmatpush1.msra.mxu0 0.0
  %1770 = vmatprep.subr.mxu0 0.0
  %1771 = vmatpush1.msra.mxu0 0.0
  %1772 = vmatprep.subr.mxu0 0.0
  %1773 = vmatpush1.msra.mxu0 0.0
  %1774 = vmatprep.subr.mxu0 0.0
  %1775 = vmatpush1.msra.mxu0 0.0
  %1776 = vmatprep.subr.mxu0 0.0
  %1777 = vmatpush1.msra.mxu0 0.0
  %1778 = vmatprep.subr.mxu0 0.0
  %1779 = vmatpush1.msra.mxu0 0.0
  %1780 = vmatprep.subr.mxu0 0.0
  %1781 = vmatpush1.msra.mxu0 0.0
  %1782 = vmatprep.subr.mxu0 0.0
  %1783 = vmatpush1.msra.mxu0 0.0
  %1784 = vmatprep.subr.mxu0 0.0
  %1785 = vmatpush1.msra.mxu0 0.0
  %1786 = vmatprep.subr.mxu0 0.0
  %1787 = vmatpush1.msra.mxu0 0.0
  %1788 = vmatprep.subr.mxu0 0.0
  %1789 = vmatpush1.msra.mxu0 0.0
  %1790 = vmatprep.subr.mxu0 0.0
  %1791 = vmatpush1.msra.mxu0 0.0
  %1792 = vmatprep.subr.mxu0 0.0
  %1793 = vmatpush1.msra.mxu0 0.0
  %1794 = vmatprep.mubr.f32.mxu0 0.0
  %1795 = vmatmul.mubr.f32.gmra.mrb[0].mxu0 %v1725
  %v1796 = vpop.f32.mrb[0].mxu0
  %v1797 = vadd.f32 0.0, %v1796
  %v1798 = vpop.f32.mrb[0].mxu0
  %1799 = vmatprep.mubr.f32.mxu0 0.0
  %1800 = vmatmul.mubr.f32.gmra.mrb[0].mxu0 %v1728
  %v1801 = vpop.f32.mrb[0].mxu0
  %v1802 = vadd.f32 0.0, %v1801
  %v1803 = vpop.f32.mrb[0].mxu0
  %1804 = vdwg.mxu0
  %v1806 = vsel %vm1473, %v1560, 0
  %v1809 = vsel %vm1473, %v1561, 0
  %1811 = vmatprep.subr.mxu0 0.0
  %1812 = vmatpush1.msra.mxu0 %v1116
  %1813 = vmatprep.subr.mxu0 0.0
  %1814 = vmatpush1.msra.mxu0 %v1121
  %1815 = vmatprep.subr.mxu0 0.0
  %1816 = vmatpush1.msra.mxu0 0.0
  %1817 = vmatprep.subr.mxu0 0.0
  %1818 = vmatpush1.msra.mxu0 0.0
  %1819 = vmatprep.subr.mxu0 0.0
  %1820 = vmatpush1.msra.mxu0 0.0
  %1821 = vmatprep.subr.mxu0 0.0
  %1822 = vmatpush1.msra.mxu0 0.0
  %1823 = vmatprep.subr.mxu0 0.0
  %1824 = vmatpush1.msra.mxu0 0.0
  %1825 = vmatprep.subr.mxu0 0.0
  %1826 = vmatpush1.msra.mxu0 0.0
  %1827 = vmatprep.subr.mxu0 0.0
  %1828 = vmatpush1.msra.mxu0 0.0
  %1829 = vmatprep.subr.mxu0 0.0
  %1830 = vmatpush1.msra.mxu0 0.0
  %1831 = vmatprep.subr.mxu0 0.0
  %1832 = vmatpush1.msra.mxu0 0.0
  %1833 = vmatprep.subr.mxu0 0.0
  %1834 = vmatpush1.msra.mxu0 0.0
  %1835 = vmatprep.subr.mxu0 0.0
  %1836 = vmatpush1.msra.mxu0 0.0
  %1837 = vmatprep.subr.mxu0 0.0
  %1838 = vmatpush1.msra.mxu0 0.0
  %1839 = vmatprep.subr.mxu0 0.0
  %1840 = vmatpush1.msra.mxu0 0.0
  %1841 = vmatprep.subr.mxu0 0.0
  %1842 = vmatpush1.msra.mxu0 0.0
  %1843 = vmatprep.subr.mxu0 0.0
  %1844 = vmatpush1.msra.mxu0 0.0
  %1845 = vmatprep.subr.mxu0 0.0
  %1846 = vmatpush1.msra.mxu0 0.0
  %1847 = vmatprep.subr.mxu0 0.0
  %1848 = vmatpush1.msra.mxu0 0.0
  %1849 = vmatprep.subr.mxu0 0.0
  %1850 = vmatpush1.msra.mxu0 0.0
  %1851 = vmatprep.subr.mxu0 0.0
  %1852 = vmatpush1.msra.mxu0 0.0
  %1853 = vmatprep.subr.mxu0 0.0
  %1854 = vmatpush1.msra.mxu0 0.0
  %1855 = vmatprep.subr.mxu0 0.0
  %1856 = vmatpush1.msra.mxu0 0.0
  %1857 = vmatprep.subr.mxu0 0.0
  %1858 = vmatpush1.msra.mxu0 0.0
  %1859 = vmatprep.subr.mxu0 0.0
  %1860 = vmatpush1.msra.mxu0 0.0
  %1861 = vmatprep.subr.mxu0 0.0
  %1862 = vmatpush1.msra.mxu0 0.0
  %1863 = vmatprep.subr.mxu0 0.0
  %1864 = vmatpush1.msra.mxu0 0.0
  %1865 = vmatprep.subr.mxu0 0.0
  %1866 = vmatpush1.msra.mxu0 0.0
  %1867 = vmatprep.subr.mxu0 0.0
  %1868 = vmatpush1.msra.mxu0 0.0
  %1869 = vmatprep.subr.mxu0 0.0
  %1870 = vmatpush1.msra.mxu0 0.0
  %1871 = vmatprep.subr.mxu0 0.0
  %1872 = vmatpush1.msra.mxu0 0.0
  %1873 = vmatprep.subr.mxu0 0.0
  %1874 = vmatpush1.msra.mxu0 0.0
  %1875 = vmatprep.mubr.f32.mxu0 0.0
  %1876 = vmatmul.mubr.f32.gmra.mrb[0].mxu0 %v1806
  %v1877 = vpop.f32.mrb[0].mxu0
  %v1878 = vadd.f32 0.0, %v1877
  %v1879 = vpop.f32.mrb[0].mxu0
  %1880 = vmatprep.mubr.f32.mxu0 0.0
  %1881 = vmatmul.mubr.f32.gmra.mrb[0].mxu0 %v1809
  %v1882 = vpop.f32.mrb[0].mxu0
  %v1883 = vadd.f32 0.0, %v1882
  %v1884 = vpop.f32.mrb[0].mxu0
  %1885 = vdwg.mxu0
  %v1887 = vsel %vm1124, %v1635, 0
  %v1890 = vsel %vm1124, %v1640, 0
  %1892 = vmatprep.subr.mxu0 0.0
  %1893 = vmatpush1.msra.mxu0 %v203
  %1894 = vmatprep.subr.mxu0 0.0
  %1895 = vmatpush1.msra.mxu0 0.0
  %1896 = vmatprep.subr.mxu0 0.0
  %1897 = vmatpush1.msra.mxu0 0.0
  %1898 = vmatprep.subr.mxu0 0.0
  %1899 = vmatpush1.msra.mxu0 0.0
  %1900 = vmatprep.subr.mxu0 0.0
  %1901 = vmatpush1.msra.mxu0 0.0
  %1902 = vmatprep.subr.mxu0 0.0
  %1903 = vmatpush1.msra.mxu0 0.0
  %1904 = vmatprep.subr.mxu0 0.0
  %1905 = vmatpush1.msra.mxu0 0.0
  %1906 = vmatprep.subr.mxu0 0.0
  %1907 = vmatpush1.msra.mxu0 0.0
  %1908 = vmatprep.subr.mxu0 0.0
  %1909 = vmatpush1.msra.mxu0 0.0
  %1910 = vmatprep.subr.mxu0 0.0
  %1911 = vmatpush1.msra.mxu0 0.0
  %1912 = vmatprep.subr.mxu0 0.0
  %1913 = vmatpush1.msra.mxu0 0.0
  %1914 = vmatprep.subr.mxu0 0.0
  %1915 = vmatpush1.msra.mxu0 0.0
  %1916 = vmatprep.subr.mxu0 0.0
  %1917 = vmatpush1.msra.mxu0 0.0
  %1918 = vmatprep.subr.mxu0 0.0
  %1919 = vmatpush1.msra.mxu0 0.0
  %1920 = vmatprep.subr.mxu0 0.0
  %1921 = vmatpush1.msra.mxu0 0.0
  %1922 = vmatprep.subr.mxu0 0.0
  %1923 = vmatpush1.msra.mxu0 0.0
  %1924 = vmatprep.subr.mxu0 0.0
  %1925 = vmatpush1.msra.mxu0 0.0
  %1926 = vmatprep.subr.mxu0 0.0
  %1927 = vmatpush1.msra.mxu0 0.0
  %1928 = vmatprep.subr.mxu0 0.0
  %1929 = vmatpush1.msra.mxu0 0.0
  %1930 = vmatprep.subr.mxu0 0.0
  %1931 = vmatpush1.msra.mxu0 0.0
  %1932 = vmatprep.subr.mxu0 0.0
  %1933 = vmatpush1.msra.mxu0 0.0
  %1934 = vmatprep.subr.mxu0 0.0
  %1935 = vmatpush1.msra.mxu0 0.0
  %1936 = vmatprep.subr.mxu0 0.0
  %1937 = vmatpush1.msra.mxu0 0.0
  %1938 = vmatprep.subr.mxu0 0.0
  %1939 = vmatpush1.msra.mxu0 0.0
  %1940 = vmatprep.subr.mxu0 0.0
  %1941 = vmatpush1.msra.mxu0 0.0
  %1942 = vmatprep.subr.mxu0 0.0
  %1943 = vmatpush1.msra.mxu0 0.0
  %1944 = vmatprep.subr.mxu0 0.0
  %1945 = vmatpush1.msra.mxu0 0.0
  %1946 = vmatprep.subr.mxu0 0.0
  %1947 = vmatpush1.msra.mxu0 0.0
  %1948 = vmatprep.subr.mxu0 0.0
  %1949 = vmatpush1.msra.mxu0 0.0
  %1950 = vmatprep.subr.mxu0 0.0
  %1951 = vmatpush1.msra.mxu0 0.0
  %1952 = vmatprep.subr.mxu0 0.0
  %1953 = vmatpush1.msra.mxu0 0.0
  %1954 = vmatprep.subr.mxu0 0.0
  %1955 = vmatpush1.msra.mxu0 0.0
  %1956 = vmatprep.mubr.f32.mxu0 0.0
  %1957 = vmatmul.mubr.f32.gmra.mrb[0].mxu0 %v1887
  %v1958 = vpop.f32.mrb[0].mxu0
  %v1959 = vadd.f32 0.0, %v1958
  %v1960 = vpop.f32.mrb[0].mxu0
  %1961 = vmatprep.mubr.f32.mxu0 0.0
  %1962 = vmatmul.mubr.f32.gmra.mrb[0].mxu0 %v1890
  %v1963 = vpop.f32.mrb[0].mxu0
  %v1964 = vadd.f32 0.0, %v1963
  %v1965 = vpop.f32.mrb[0].mxu0
  %1966 = vdwg.mxu0
  %v1968 = vsel %vm1124, %v1716, 0
  %v1971 = vsel %vm1124, %v1721, 0
  %1973 = vmatprep.subr.mxu0 0.0
  %1974 = vmatpush1.msra.mxu0 %v204
  %1975 = vmatprep.subr.mxu0 0.0
  %1976 = vmatpush1.msra.mxu0 0.0
  %1977 = vmatprep.subr.mxu0 0.0
  %1978 = vmatpush1.msra.mxu0 0.0
  %1979 = vmatprep.subr.mxu0 0.0
  %1980 = vmatpush1.msra.mxu0 0.0
  %1981 = vmatprep.subr.mxu0 0.0
  %1982 = vmatpush1.msra.mxu0 0.0
  %1983 = vmatprep.subr.mxu0 0.0
  %1984 = vmatpush1.msra.mxu0 0.0
  %1985 = vmatprep.subr.mxu0 0.0
  %1986 = vmatpush1.msra.mxu0 0.0
  %1987 = vmatprep.subr.mxu0 0.0
  %1988 = vmatpush1.msra.mxu0 0.0
  %1989 = vmatprep.subr.mxu0 0.0
  %1990 = vmatpush1.msra.mxu0 0.0
  %1991 = vmatprep.subr.mxu0 0.0
  %1992 = vmatpush1.msra.mxu0 0.0
  %1993 = vmatprep.subr.mxu0 0.0
  %1994 = vmatpush1.msra.mxu0 0.0
  %1995 = vmatprep.subr.mxu0 0.0
  %1996 = vmatpush1.msra.mxu0 0.0
  %1997 = vmatprep.subr.mxu0 0.0
  %1998 = vmatpush1.msra.mxu0 0.0
  %1999 = vmatprep.subr.mxu0 0.0
  %2000 = vmatpush1.msra.mxu0 0.0
  %2001 = vmatprep.subr.mxu0 0.0
  %2002 = vmatpush1.msra.mxu0 0.0
  %2003 = vmatprep.subr.mxu0 0.0
  %2004 = vmatpush1.msra.mxu0 0.0
  %2005 = vmatprep.subr.mxu0 0.0
  %2006 = vmatpush1.msra.mxu0 0.0
  %2007 = vmatprep.subr.mxu0 0.0
  %2008 = vmatpush1.msra.mxu0 0.0
  %2009 = vmatprep.subr.mxu0 0.0
  %2010 = vmatpush1.msra.mxu0 0.0
  %2011 = vmatprep.subr.mxu0 0.0
  %2012 = vmatpush1.msra.mxu0 0.0
  %2013 = vmatprep.subr.mxu0 0.0
  %2014 = vmatpush1.msra.mxu0 0.0
  %2015 = vmatprep.subr.mxu0 0.0
  %2016 = vmatpush1.msra.mxu0 0.0
  %2017 = vmatprep.subr.mxu0 0.0
  %2018 = vmatpush1.msra.mxu0 0.0
  %2019 = vmatprep.subr.mxu0 0.0
  %2020 = vmatpush1.msra.mxu0 0.0
  %2021 = vmatprep.subr.mxu0 0.0
  %2022 = vmatpush1.msra.mxu0 0.0
  %2023 = vmatprep.subr.mxu0 0.0
  %2024 = vmatpush1.msra.mxu0 0.0
  %2025 = vmatprep.subr.mxu0 0.0
  %2026 = vmatpush1.msra.mxu0 0.0
  %2027 = vmatprep.subr.mxu0 0.0
  %2028 = vmatpush1.msra.mxu0 0.0
  %2029 = vmatprep.subr.mxu0 0.0
  %2030 = vmatpush1.msra.mxu0 0.0
  %2031 = vmatprep.subr.mxu0 0.0
  %2032 = vmatpush1.msra.mxu0 0.0
  %2033 = vmatprep.subr.mxu0 0.0
  %2034 = vmatpush1.msra.mxu0 0.0
  %2035 = vmatprep.subr.mxu0 0.0
  %2036 = vmatpush1.msra.mxu0 0.0
  %2037 = vmatprep.mubr.f32.mxu0 0.0
  %2038 = vmatmul.mubr.f32.gmra.mrb[0].mxu0 %v1968
  %v2039 = vpop.f32.mrb[0].mxu0
  %v2040 = vadd.f32 0.0, %v2039
  %v2041 = vpop.f32.mrb[0].mxu0
  %2042 = vmatprep.mubr.f32.mxu0 0.0
  %2043 = vmatmul.mubr.f32.gmra.mrb[0].mxu0 %v1971
  %v2044 = vpop.f32.mrb[0].mxu0
  %v2045 = vadd.f32 0.0, %v2044
  %v2046 = vpop.f32.mrb[0].mxu0
  %2047 = vdwg.mxu0
  %v2049 = vsel %vm1124, %v1797, 0
  %v2052 = vsel %vm1124, %v1802, 0
  %2054 = vmatprep.subr.mxu0 0.0
  %2055 = vmatpush1.msra.mxu0 %v205
  %2056 = vmatprep.subr.mxu0 0.0
  %2057 = vmatpush1.msra.mxu0 0.0
  %2058 = vmatprep.subr.mxu0 0.0
  %2059 = vmatpush1.msra.mxu0 0.0
  %2060 = vmatprep.subr.mxu0 0.0
  %2061 = vmatpush1.msra.mxu0 0.0
  %2062 = vmatprep.subr.mxu0 0.0
  %2063 = vmatpush1.msra.mxu0 0.0
  %2064 = vmatprep.subr.mxu0 0.0
  %2065 = vmatpush1.msra.mxu0 0.0
  %2066 = vmatprep.subr.mxu0 0.0
  %2067 = vmatpush1.msra.mxu0 0.0
  %2068 = vmatprep.subr.mxu0 0.0
  %2069 = vmatpush1.msra.mxu0 0.0
  %2070 = vmatprep.subr.mxu0 0.0
  %2071 = vmatpush1.msra.mxu0 0.0
  %2072 = vmatprep.subr.mxu0 0.0
  %2073 = vmatpush1.msra.mxu0 0.0
  %2074 = vmatprep.subr.mxu0 0.0
  %2075 = vmatpush1.msra.mxu0 0.0
  %2076 = vmatprep.subr.mxu0 0.0
  %2077 = vmatpush1.msra.mxu0 0.0
  %2078 = vmatprep.subr.mxu0 0.0
  %2079 = vmatpush1.msra.mxu0 0.0
  %2080 = vmatprep.subr.mxu0 0.0
  %2081 = vmatpush1.msra.mxu0 0.0
  %2082 = vmatprep.subr.mxu0 0.0
  %2083 = vmatpush1.msra.mxu0 0.0
  %2084 = vmatprep.subr.mxu0 0.0
  %2085 = vmatpush1.msra.mxu0 0.0
  %2086 = vmatprep.subr.mxu0 0.0
  %2087 = vmatpush1.msra.mxu0 0.0
  %2088 = vmatprep.subr.mxu0 0.0
  %2089 = vmatpush1.msra.mxu0 0.0
  %2090 = vmatprep.subr.mxu0 0.0
  %2091 = vmatpush1.msra.mxu0 0.0
  %2092 = vmatprep.subr.mxu0 0.0
  %2093 = vmatpush1.msra.mxu0 0.0
  %2094 = vmatprep.subr.mxu0 0.0
  %2095 = vmatpush1.msra.mxu0 0.0
  %2096 = vmatprep.subr.mxu0 0.0
  %2097 = vmatpush1.msra.mxu0 0.0
  %2098 = vmatprep.subr.mxu0 0.0
  %2099 = vmatpush1.msra.mxu0 0.0
  %2100 = vmatprep.subr.mxu0 0.0
  %2101 = vmatpush1.msra.mxu0 0.0
  %2102 = vmatprep.subr.mxu0 0.0
  %2103 = vmatpush1.msra.mxu0 0.0
  %2104 = vmatprep.subr.mxu0 0.0
  %2105 = vmatpush1.msra.mxu0 0.0
  %2106 = vmatprep.subr.mxu0 0.0
  %2107 = vmatpush1.msra.mxu0 0.0
  %2108 = vmatprep.subr.mxu0 0.0
  %2109 = vmatpush1.msra.mxu0 0.0
  %2110 = vmatprep.subr.mxu0 0.0
  %2111 = vmatpush1.msra.mxu0 0.0
  %2112 = vmatprep.subr.mxu0 0.0
  %2113 = vmatpush1.msra.mxu0 0.0
  %2114 = vmatprep.subr.mxu0 0.0
  %2115 = vmatpush1.msra.mxu0 0.0
  %2116 = vmatprep.subr.mxu0 0.0
  %2117 = vmatpush1.msra.mxu0 0.0
  %2118 = vmatprep.mubr.f32.mxu0 0.0
  %2119 = vmatmul.mubr.f32.gmra.mrb[0].mxu0 %v2049
  %v2120 = vpop.f32.mrb[0].mxu0
  %v2121 = vadd.f32 0.0, %v2120
  %v2122 = vpop.f32.mrb[0].mxu0
  %2123 = vmatprep.mubr.f32.mxu0 0.0
  %2124 = vmatmul.mubr.f32.gmra.mrb[0].mxu0 %v2052
  %v2125 = vpop.f32.mrb[0].mxu0
  %v2126 = vadd.f32 0.0, %v2125
  %v2127 = vpop.f32.mrb[0].mxu0
  %2128 = vdwg.mxu0
  %v2130 = vsel %vm1124, %v1878, 0
  %v2133 = vsel %vm1124, %v1883, 0
  %2135 = vmatprep.subr.mxu0 0.0
  %2136 = vmatpush1.msra.mxu0 %v206
  %2137 = vmatprep.subr.mxu0 0.0
  %2138 = vmatpush1.msra.mxu0 0.0
  %2139 = vmatprep.subr.mxu0 0.0
  %2140 = vmatpush1.msra.mxu0 0.0
  %2141 = vmatprep.subr.mxu0 0.0
  %2142 = vmatpush1.msra.mxu0 0.0
  %2143 = vmatprep.subr.mxu0 0.0
  %2144 = vmatpush1.msra.mxu0 0.0
  %2145 = vmatprep.subr.mxu0 0.0
  %2146 = vmatpush1.msra.mxu0 0.0
  %2147 = vmatprep.subr.mxu0 0.0
  %2148 = vmatpush1.msra.mxu0 0.0
  %2149 = vmatprep.subr.mxu0 0.0
  %2150 = vmatpush1.msra.mxu0 0.0
  %2151 = vmatprep.subr.mxu0 0.0
  %2152 = vmatpush1.msra.mxu0 0.0
  %2153 = vmatprep.subr.mxu0 0.0
  %2154 = vmatpush1.msra.mxu0 0.0
  %2155 = vmatprep.subr.mxu0 0.0
  %2156 = vmatpush1.msra.mxu0 0.0
  %2157 = vmatprep.subr.mxu0 0.0
  %2158 = vmatpush1.msra.mxu0 0.0
  %2159 = vmatprep.subr.mxu0 0.0
  %2160 = vmatpush1.msra.mxu0 0.0
  %2161 = vmatprep.subr.mxu0 0.0
  %2162 = vmatpush1.msra.mxu0 0.0
  %2163 = vmatprep.subr.mxu0 0.0
  %2164 = vmatpush1.msra.mxu0 0.0
  %2165 = vmatprep.subr.mxu0 0.0
  %2166 = vmatpush1.msra.mxu0 0.0
  %2167 = vmatprep.subr.mxu0 0.0
  %2168 = vmatpush1.msra.mxu0 0.0
  %2169 = vmatprep.subr.mxu0 0.0
  %2170 = vmatpush1.msra.mxu0 0.0
  %2171 = vmatprep.subr.mxu0 0.0
  %2172 = vmatpush1.msra.mxu0 0.0
  %2173 = vmatprep.subr.mxu0 0.0
  %2174 = vmatpush1.msra.mxu0 0.0
  %2175 = vmatprep.subr.mxu0 0.0
  %2176 = vmatpush1.msra.mxu0 0.0
  %2177 = vmatprep.subr.mxu0 0.0
  %2178 = vmatpush1.msra.mxu0 0.0
  %2179 = vmatprep.subr.mxu0 0.0
  %2180 = vmatpush1.msra.mxu0 0.0
  %2181 = vmatprep.subr.mxu0 0.0
  %2182 = vmatpush1.msra.mxu0 0.0
  %2183 = vmatprep.subr.mxu0 0.0
  %2184 = vmatpush1.msra.mxu0 0.0
  %2185 = vmatprep.subr.mxu0 0.0
  %2186 = vmatpush1.msra.mxu0 0.0
  %2187 = vmatprep.subr.mxu0 0.0
  %2188 = vmatpush1.msra.mxu0 0.0
  %2189 = vmatprep.subr.mxu0 0.0
  %2190 = vmatpush1.msra.mxu0 0.0
  %2191 = vmatprep.subr.mxu0 0.0
  %2192 = vmatpush1.msra.mxu0 0.0
  %2193 = vmatprep.subr.mxu0 0.0
  %2194 = vmatpush1.msra.mxu0 0.0
  %2195 = vmatprep.subr.mxu0 0.0
  %2196 = vmatpush1.msra.mxu0 0.0
  %2197 = vmatprep.subr.mxu0 0.0
  %2198 = vmatpush1.msra.mxu0 0.0
  %2199 = vmatprep.mubr.f32.mxu0 0.0
  %2200 = vmatmul.mubr.f32.gmra.mrb[0].mxu0 %v2130
  %v2201 = vpop.f32.mrb[0].mxu0
  %v2202 = vadd.f32 0.0, %v2201
  %v2203 = vpop.f32.mrb[0].mxu0
  %2204 = vmatprep.mubr.f32.mxu0 0.0
  %2205 = vmatmul.mubr.f32.gmra.mrb[0].mxu0 %v2133
  %v2206 = vpop.f32.mrb[0].mxu0
  %v2207 = vadd.f32 0.0, %v2206
  %v2208 = vpop.f32.mrb[0].mxu0
  %2209 = vdwg.mxu0
  %v2210 = vadd.f32 %v1959, %v2040
  %v2211 = vadd.f32 %v1964, %v2045
  %v2212 = vadd.f32 %v2210, %v2121
  %v2213 = vadd.f32 %v2211, %v2126
  %v2214 = vadd.f32 %v2212, %v2202
  %v2215 = vadd.f32 %v2213, %v2207
  %v2216 = vlaneseq
  %v2217 = vshrl.u32 %v2216, 7
  %v2218 = vsub.s32 0, %v2217
  %v2219 = vrot.slane %v207, %v2218
  %v2220 = vadd.f32 %v2214, %v2219
  %v2221 = vadd.f32 %v2215, %v2219
  %v2222 = vadd.f32 %v119, %v2220
  %v2223 = vadd.f32 %v124, %v2221
  %v2224 = vsel %vm214, %v2222, 0.0
  %2225 = vadd.xlane.f32.xlu0 %v2224
  %v2226 = vpop.xlane.xlu0 %2225
  %v2227 = vsel %vm214, %v2223, 0.0
  %2228 = vadd.xlane.f32.xlu0 %v2227
  %v2229 = vpop.xlane.xlu0 %2228
  %v2230 = vrcp.pop 32.0
  %v2231 = vmul.f32 %v2226, %v2230
  %v2232 = vmul.f32 %v2229, %v2230
  %v2233 = vsub.f32 %v2222, %v2231
  %v2234 = vsub.f32 %v2223, %v2232
  %v2235 = vmul.f32 %v2233, %v2233
  %v2236 = vmul.f32 %v2234, %v2234
  %v2237 = vsel %vm214, %v2235, 0.0
  %2238 = vadd.xlane.f32.xlu0 %v2237
  %v2239 = vpop.xlane.xlu0 %2238
  %v2240 = vsel %vm214, %v2236, 0.0
  %2241 = vadd.xlane.f32.xlu0 %v2240
  %v2242 = vpop.xlane.xlu0 %2241
  %v2243 = vmul.f32 %v2239, %v2230
  %v2244 = vmul.f32 %v2242, %v2230
  %v2245 = vadd.f32 %v2243, 1e-05
  %v2246 = vadd.f32 %v2244, 1e-05
  %v2247 = vrsqrt.pop %v2245
  %v2248 = vrsqrt.pop %v2246
  %v2249 = vmul.f32 %v2233, %v2247
  %v2250 = vmul.f32 %v2234, %v2248
  %v2251 = vlaneseq
  %v2252 = vshrl.u32 %v2251, 7
  %v2253 = vsub.s32 0, %v2252
  %v2254 = vrot.slane %v208, %v2253
  %v2255 = vmul.f32 %v2249, %v2254
  %v2256 = vmul.f32 %v2250, %v2254
  %v2257 = vlaneseq
  %v2258 = vshrl.u32 %v2257, 7
  %v2259 = vsub.s32 0, %v2258
  %v2260 = vrot.slane %v209, %v2259
  %v2261 = vadd.f32 %v2255, %v2260
  %v2262 = vadd.f32 %v2256, %v2260
  %v2263 = vld [vmem:[%s1 + $0x70] sm:$0xff]
  %v2264 = vld [vmem:[%s1 + $0x78] sm:$0xff]
  %v2265 = vld [vmem:[%s1 + $0x80] sm:$0xff]
  %v2266 = vld [vmem:[%s1 + $0x88] sm:$0xff]
  %v2267 = vld [vmem:[%s1 + $0x90] sm:$0xff]
  %v2268 = vld [vmem:[%s1 + $0x98] sm:$0xff]
  %v2269 = vld [vmem:[%s1 + $0xa0] sm:$0xff]
  %v2270 = vld [vmem:[%s1 + $0xa8] sm:$0xff]
  %v2271 = vld [vmem:[%s1 + $0xb0] sm:$0xff]
  %v2272 = vld [vmem:[%s1 + $0xb8] sm:$0xff]
  %v2273 = vld [vmem:[%s1 + $0xc0] sm:$0xff]
  %v2274 = vld [vmem:[%s1 + $0xc8] sm:$0xff]
  %v2275 = vlaneseq
  %v2276 = vshrl.u32 %v2275, 7
  %v2277 = vsub.s32 0, %v2276
  %v2278 = vrot.slane %v212, %v2277
  %v2280 = vsel %vm214, %v2261, 0
  %v2283 = vsel %vm214, %v2262, 0
  %2285 = vmatprep.subr.mxu0 0.0
  %2286 = vmatpush1.msra.mxu0 %v2263
  %2287 = vmatprep.subr.mxu0 0.0
  %2288 = vmatpush1.msra.mxu0 %v2264
  %2289 = vmatprep.subr.mxu0 0.0
  %2290 = vmatpush1.msra.mxu0 %v2265
  %2291 = vmatprep.subr.mxu0 0.0
  %2292 = vmatpush1.msra.mxu0 %v2266
  %2293 = vmatprep.subr.mxu0 0.0
  %2294 = vmatpush1.msra.mxu0 0.0
  %2295 = vmatprep.subr.mxu0 0.0
  %2296 = vmatpush1.msra.mxu0 0.0
  %2297 = vmatprep.subr.mxu0 0.0
  %2298 = vmatpush1.msra.mxu0 0.0
  %2299 = vmatprep.subr.mxu0 0.0
  %2300 = vmatpush1.msra.mxu0 0.0
  %2301 = vmatprep.subr.mxu0 0.0
  %2302 = vmatpush1.msra.mxu0 0.0
  %2303 = vmatprep.subr.mxu0 0.0
  %2304 = vmatpush1.msra.mxu0 0.0
  %2305 = vmatprep.subr.mxu0 0.0
  %2306 = vmatpush1.msra.mxu0 0.0
  %2307 = vmatprep.subr.mxu0 0.0
  %2308 = vmatpush1.msra.mxu0 0.0
  %2309 = vmatprep.subr.mxu0 0.0
  %2310 = vmatpush1.msra.mxu0 0.0
  %2311 = vmatprep.subr.mxu0 0.0
  %2312 = vmatpush1.msra.mxu0 0.0
  %2313 = vmatprep.subr.mxu0 0.0
  %2314 = vmatpush1.msra.mxu0 0.0
  %2315 = vmatprep.subr.mxu0 0.0
  %2316 = vmatpush1.msra.mxu0 0.0
  %2317 = vmatprep.subr.mxu0 0.0
  %2318 = vmatpush1.msra.mxu0 0.0
  %2319 = vmatprep.subr.mxu0 0.0
  %2320 = vmatpush1.msra.mxu0 0.0
  %2321 = vmatprep.subr.mxu0 0.0
  %2322 = vmatpush1.msra.mxu0 0.0
  %2323 = vmatprep.subr.mxu0 0.0
  %2324 = vmatpush1.msra.mxu0 0.0
  %2325 = vmatprep.subr.mxu0 0.0
  %2326 = vmatpush1.msra.mxu0 0.0
  %2327 = vmatprep.subr.mxu0 0.0
  %2328 = vmatpush1.msra.mxu0 0.0
  %2329 = vmatprep.subr.mxu0 0.0
  %2330 = vmatpush1.msra.mxu0 0.0
  %2331 = vmatprep.subr.mxu0 0.0
  %2332 = vmatpush1.msra.mxu0 0.0
  %2333 = vmatprep.subr.mxu0 0.0
  %2334 = vmatpush1.msra.mxu0 0.0
  %2335 = vmatprep.subr.mxu0 0.0
  %2336 = vmatpush1.msra.mxu0 0.0
  %2337 = vmatprep.subr.mxu0 0.0
  %2338 = vmatpush1.msra.mxu0 0.0
  %2339 = vmatprep.subr.mxu0 0.0
  %2340 = vmatpush1.msra.mxu0 0.0
  %2341 = vmatprep.subr.mxu0 0.0
  %2342 = vmatpush1.msra.mxu0 0.0
  %2343 = vmatprep.subr.mxu0 0.0
  %2344 = vmatpush1.msra.mxu0 0.0
  %2345 = vmatprep.subr.mxu0 0.0
  %2346 = vmatpush1.msra.mxu0 0.0
  %2347 = vmatprep.subr.mxu0 0.0
  %2348 = vmatpush1.msra.mxu0 0.0
  %2349 = vmatprep.mubr.f32.mxu0 0.0
  %2350 = vmatmul.mubr.f32.gmra.mrb[0].mxu0 %v2280
  %v2351 = vpop.f32.mrb[0].mxu0
  %v2352 = vadd.f32 %v2278, %v2351
  %v2353 = vpop.f32.mrb[0].mxu0
  %2354 = vmatprep.mubr.f32.mxu0 0.0
  %2355 = vmatmul.mubr.f32.gmra.mrb[0].mxu0 %v2283
  %v2356 = vpop.f32.mrb[0].mxu0
  %v2357 = vadd.f32 %v2278, %v2356
  %v2358 = vpop.f32.mrb[0].mxu0
  %2359 = vdwg.mxu0
  %v2360 = vmax.f32 %v2352, 0.0
  %v2361 = vmax.f32 %v2357, 0.0
  %v2362 = vlaneseq
  %v2363 = vshrl.u32 %v2362, 7
  %v2364 = vsub.s32 0, %v2363
  %v2365 = vrot.slane %v213, %v2364
  %v2367 = vsel %vm45, %v2360, 0
  %v2370 = vsel %vm45, %v2361, 0
  %2372 = vmatprep.subr.mxu0 0.0
  %2373 = vmatpush1.msra.mxu0 %v2267
  %2374 = vmatprep.subr.mxu0 0.0
  %2375 = vmatpush1.msra.mxu0 %v2268
  %2376 = vmatprep.subr.mxu0 0.0
  %2377 = vmatpush1.msra.mxu0 %v2269
  %2378 = vmatprep.subr.mxu0 0.0
  %2379 = vmatpush1.msra.mxu0 %v2270
  %2380 = vmatprep.subr.mxu0 0.0
  %2381 = vmatpush1.msra.mxu0 %v2271
  %2382 = vmatprep.subr.mxu0 0.0
  %2383 = vmatpush1.msra.mxu0 %v2272
  %2384 = vmatprep.subr.mxu0 0.0
  %2385 = vmatpush1.msra.mxu0 %v2273
  %2386 = vmatprep.subr.mxu0 0.0
  %2387 = vmatpush1.msra.mxu0 %v2274
  %2388 = vmatprep.subr.mxu0 0.0
  %2389 = vmatpush1.msra.mxu0 0.0
  %2390 = vmatprep.subr.mxu0 0.0
  %2391 = vmatpush1.msra.mxu0 0.0
  %2392 = vmatprep.subr.mxu0 0.0
  %2393 = vmatpush1.msra.mxu0 0.0
  %2394 = vmatprep.subr.mxu0 0.0
  %2395 = vmatpush1.msra.mxu0 0.0
  %2396 = vmatprep.subr.mxu0 0.0
  %2397 = vmatpush1.msra.mxu0 0.0
  %2398 = vmatprep.subr.mxu0 0.0
  %2399 = vmatpush1.msra.mxu0 0.0
  %2400 = vmatprep.subr.mxu0 0.0
  %2401 = vmatpush1.msra.mxu0 0.0
  %2402 = vmatprep.subr.mxu0 0.0
  %2403 = vmatpush1.msra.mxu0 0.0
  %2404 = vmatprep.subr.mxu0 0.0
  %2405 = vmatpush1.msra.mxu0 0.0
  %2406 = vmatprep.subr.mxu0 0.0
  %2407 = vmatpush1.msra.mxu0 0.0
  %2408 = vmatprep.subr.mxu0 0.0
  %2409 = vmatpush1.msra.mxu0 0.0
  %2410 = vmatprep.subr.mxu0 0.0
  %2411 = vmatpush1.msra.mxu0 0.0
  %2412 = vmatprep.subr.mxu0 0.0
  %2413 = vmatpush1.msra.mxu0 0.0
  %2414 = vmatprep.subr.mxu0 0.0
  %2415 = vmatpush1.msra.mxu0 0.0
  %2416 = vmatprep.subr.mxu0 0.0
  %2417 = vmatpush1.msra.mxu0 0.0
  %2418 = vmatprep.subr.mxu0 0.0
  %2419 = vmatpush1.msra.mxu0 0.0
  %2420 = vmatprep.subr.mxu0 0.0
  %2421 = vmatpush1.msra.mxu0 0.0
  %2422 = vmatprep.subr.mxu0 0.0
  %2423 = vmatpush1.msra.mxu0 0.0
  %2424 = vmatprep.subr.mxu0 0.0
  %2425 = vmatpush1.msra.mxu0 0.0
  %2426 = vmatprep.subr.mxu0 0.0
  %2427 = vmatpush1.msra.mxu0 0.0
  %2428 = vmatprep.subr.mxu0 0.0
  %2429 = vmatpush1.msra.mxu0 0.0
  %2430 = vmatprep.subr.mxu0 0.0
  %2431 = vmatpush1.msra.mxu0 0.0
  %2432 = vmatprep.subr.mxu0 0.0
  %2433 = vmatpush1.msra.mxu0 0.0
  %2434 = vmatprep.subr.mxu0 0.0
  %2435 = vmatpush1.msra.mxu0 0.0
  %2436 = vmatprep.mubr.f32.mxu0 0.0
  %2437 = vmatmul.mubr.f32.gmra.mrb[0].mxu0 %v2367
  %v2438 = vpop.f32.mrb[0].mxu0
  %v2439 = vadd.f32 %v2365, %v2438
  %v2440 = vpop.f32.mrb[0].mxu0
  %2441 = vmatprep.mubr.f32.mxu0 0.0
  %2442 = vmatmul.mubr.f32.gmra.mrb[0].mxu0 %v2370
  %v2443 = vpop.f32.mrb[0].mxu0
  %v2444 = vadd.f32 %v2365, %v2443
  %v2445 = vpop.f32.mrb[0].mxu0
  %2446 = vdwg.mxu0
  %v2447 = vadd.f32 %v2261, %v2439
  %v2448 = vadd.f32 %v2262, %v2444
  %v2449 = vsel %vm214, %v2447, 0.0
  %2450 = vadd.xlane.f32.xlu0 %v2449
  %v2451 = vpop.xlane.xlu0 %2450
  %v2452 = vsel %vm214, %v2448, 0.0
  %2453 = vadd.xlane.f32.xlu0 %v2452
  %v2454 = vpop.xlane.xlu0 %2453
  %v2455 = vmul.f32 %v2451, %v2230
  %v2456 = vmul.f32 %v2454, %v2230
  %v2457 = vsub.f32 %v2447, %v2455
  %v2458 = vsub.f32 %v2448, %v2456
  %v2459 = vmul.f32 %v2457, %v2457
  %v2460 = vmul.f32 %v2458, %v2458
  %v2461 = vsel %vm214, %v2459, 0.0
  %2462 = vadd.xlane.f32.xlu0 %v2461
  %v2463 = vpop.xlane.xlu0 %2462
  %v2464 = vsel %vm214, %v2460, 0.0
  %2465 = vadd.xlane.f32.xlu0 %v2464
  %v2466 = vpop.xlane.xlu0 %2465
  %v2467 = vmul.f32 %v2463, %v2230
  %v2468 = vmul.f32 %v2466, %v2230
  %v2469 = vadd.f32 %v2467, 1e-05
  %v2470 = vadd.f32 %v2468, 1e-05
  %v2471 = vrsqrt.pop %v2469
  %v2472 = vrsqrt.pop %v2470
  %v2473 = vmul.f32 %v2457, %v2471
  %v2474 = vmul.f32 %v2458, %v2472
  %v2475 = vlaneseq
  %v2476 = vshrl.u32 %v2475, 7
  %v2477 = vsub.s32 0, %v2476
  %v2478 = vrot.slane %v210, %v2477
  %v2479 = vmul.f32 %v2473, %v2478
  %v2480 = vmul.f32 %v2474, %v2478
  %v2481 = vlaneseq
  %v2482 = vshrl.u32 %v2481, 7
  %v2483 = vsub.s32 0, %v2482
  %v2484 = vrot.slane %v211, %v2483
  %v2485 = vadd.f32 %v2479, %v2484
  %v2486 = vadd.f32 %v2480, %v2484
  %s2487 = scalar_lea.vmem %s3, 480
  %v2488 = vld [vmem:[%s2487] sm:$0xff]
  %v2489 = vld [vmem:[%s2487 + $0x8] sm:$0xff]
  %v2490 = vld [vmem:[%s2487 + $0x10] sm:$0xff]
  %v2491 = vld [vmem:[%s2487 + $0x18] sm:$0xff]
  %v2492 = vld [vmem:[%s2487 + $0x20] sm:$0xff]
  %v2493 = vld [vmem:[%s2487 + $0x28] sm:$0xff]
  %v2494 = vld [vmem:[%s2487 + $0x30] sm:$0xff]
  %v2495 = vld [vmem:[%s2487 + $0x38] sm:$0xff]
  %v2496 = vld [vmem:[%s2487 + $0x40] sm:$0xff]
  %v2497 = vld [vmem:[%s2487 + $0x48] sm:$0xff]
  %v2498 = vld [vmem:[%s2487 + $0x50] sm:$0xff]
  %v2499 = vld [vmem:[%s2487 + $0x58] sm:$0xff]
  %v2500 = vld [vmem:[%s2487 + $0x60] sm:$0xff]
  %v2501 = vld [vmem:[%s2487 + $0x68] sm:$0xff]
  %v2502 = vld [vmem:[%s2487 + $0x70] sm:$0xff]
  %v2503 = vld [vmem:[%s2487 + $0x78] sm:$0xff]
  %v2504 = vld [vmem:[%s2487 + $0x80] sm:$0xff]
  %v2505 = vld [vmem:[%s2487 + $0x88] sm:$0xff]
  %v2506 = vld [vmem:[%s2487 + $0x90] sm:$0xff]
  %v2507 = vld [vmem:[%s2487 + $0x98] sm:$0xff]
  %v2508 = vld [vmem:[%s2487 + $0xa0] sm:$0xff]
  %v2509 = vld [vmem:[%s2487 + $0xa8] sm:$0xff]
  %v2510 = vld [vmem:[%s2487 + $0xb0] sm:$0xff]
  %v2511 = vld [vmem:[%s2487 + $0xb8] sm:$0xff]
  %v2512 = vld [vmem:[%s2487 + $0xc0] sm:$0xff]
  %v2513 = vld [vmem:[%s2487 + $0xc8] sm:$0xff]
  %v2514 = vld [vmem:[%s2487 + $0xd0] sm:$0xff]
  %v2515 = vld [vmem:[%s2487 + $0xd8] sm:$0xff]
  %v2516 = vld [vmem:[%s2487 + $0xe0] sm:$0xff]
  %v2517 = vld [vmem:[%s2487 + $0xe8] sm:$0xff]
  %v2518 = vld [vmem:[%s2487 + $0xf0] sm:$0xff]
  %v2519 = vld [vmem:[%s2487 + $0xf8] sm:$0xff]
  %v2520 = vld [vmem:[%s2487 + $0x100] sm:$0xff]
  %v2521 = vld [vmem:[%s2487 + $0x108] sm:$0xff]
  %v2522 = vld [vmem:[%s2487 + $0x110] sm:$0xff]
  %v2523 = vld [vmem:[%s2487 + $0x118] sm:$0xff]
  %v2524 = vld [vmem:[%s2487 + $0x120] sm:$0xff]
  %v2525 = vld [vmem:[%s2487 + $0x128] sm:$0xff]
  %v2526 = vld [vmem:[%s2487 + $0x130] sm:$0xff]
  %v2527 = vld [vmem:[%s2487 + $0x138] sm:$0xff]
  %v2528 = vld [vmem:[%s2487 + $0x140] sm:$0xff]
  %v2529 = vld [vmem:[%s2487 + $0x148] sm:$0xff]
  %v2530 = vld [vmem:[%s2487 + $0x150] sm:$0xff]
  %v2531 = vld [vmem:[%s2487 + $0x158] sm:$0xff]
  %v2532 = vld [vmem:[%s2487 + $0x160] sm:$0xff]
  %v2533 = vld [vmem:[%s2487 + $0x168] sm:$0xff]
  %v2534 = vld [vmem:[%s2487 + $0x170] sm:$0xff]
  %v2535 = vld [vmem:[%s2487 + $0x178] sm:$0xff]
  %v2536 = vld [vmem:[%s2487 + $0x180] sm:$0xff]
  %v2537 = vld [vmem:[%s2487 + $0x188] sm:$0xff]
  %v2538 = vld [vmem:[%s2487 + $0x190] sm:$0xff]
  %v2539 = vld [vmem:[%s2487 + $0x198] sm:$0xff]
  %v2540 = vld [vmem:[%s2487 + $0x1a0] sm:$0xff]
  %v2541 = vld [vmem:[%s2487 + $0x1a8] sm:$0xff]
  %v2542 = vld [vmem:[%s2487 + $0x1b0] sm:$0xff]
  %v2543 = vld [vmem:[%s2487 + $0x1b8] sm:$0xff]
  %v2544 = vld [vmem:[%s2487 + $0x1c0] sm:$0xff]
  %v2545 = vld [vmem:[%s2487 + $0x1c8] sm:$0xff]
  %v2546 = vld [vmem:[%s2487 + $0x1d0] sm:$0xff]
  %v2547 = vld [vmem:[%s2487 + $0x1d8] sm:$0xff]
  %s2548 = scalar_lea.vmem %s4, 32
  %v2549 = vld [vmem:[%s2548] sm:$0xff]
  %v2550 = vld [vmem:[%s2548 + $0x8] sm:$0xff]
  %v2551 = vld [vmem:[%s2548 + $0x10] sm:$0xff]
  %v2552 = vld [vmem:[%s2548 + $0x18] sm:$0xff]
  %v2553 = vld [vmem:[%s2 + $0x8] sm:$0x1]
  %v2554 = vld [vmem:[%s2 + $0x9] sm:$0x1]
  %v2555 = vld [vmem:[%s2 + $0xa] sm:$0x1]
  %v2556 = vld [vmem:[%s2 + $0xb] sm:$0x1]
  %v2557 = vld [vmem:[%s2 + $0xc] sm:$0x1]
  %v2558 = vld [vmem:[%s2 + $0xd] sm:$0x1]
  %v2559 = vld [vmem:[%s2 + $0xe] sm:$0x1]
  %v2560 = vsel %vm214, %v2485, 1.0
  %v2561 = vsel %vm214, %v2486, 1.0
  %v2563 = vsel %vm217, %v2560, 0
  %v2566 = vsel %vm217, %v2561, 0
  %2568 = vmatprep.subr.mxu0 0.0
  %2569 = vmatpush1.msra.mxu0 %v2488
  %2570 = vmatprep.subr.mxu0 0.0
  %2571 = vmatpush1.msra.mxu0 %v2489
  %2572 = vmatprep.subr.mxu0 0.0
  %2573 = vmatpush1.msra.mxu0 %v2490
  %2574 = vmatprep.subr.mxu0 0.0
  %2575 = vmatpush1.msra.mxu0 %v2491
  %2576 = vmatprep.subr.mxu0 0.0
  %2577 = vmatpush1.msra.mxu0 %v2492
  %2578 = vmatprep.subr.mxu0 0.0
  %2579 = vmatpush1.msra.mxu0 0.0
  %2580 = vmatprep.subr.mxu0 0.0
  %2581 = vmatpush1.msra.mxu0 0.0
  %2582 = vmatprep.subr.mxu0 0.0
  %2583 = vmatpush1.msra.mxu0 0.0
  %2584 = vmatprep.subr.mxu0 0.0
  %2585 = vmatpush1.msra.mxu0 0.0
  %2586 = vmatprep.subr.mxu0 0.0
  %2587 = vmatpush1.msra.mxu0 0.0
  %2588 = vmatprep.subr.mxu0 0.0
  %2589 = vmatpush1.msra.mxu0 0.0
  %2590 = vmatprep.subr.mxu0 0.0
  %2591 = vmatpush1.msra.mxu0 0.0
  %2592 = vmatprep.subr.mxu0 0.0
  %2593 = vmatpush1.msra.mxu0 0.0
  %2594 = vmatprep.subr.mxu0 0.0
  %2595 = vmatpush1.msra.mxu0 0.0
  %2596 = vmatprep.subr.mxu0 0.0
  %2597 = vmatpush1.msra.mxu0 0.0
  %2598 = vmatprep.subr.mxu0 0.0
  %2599 = vmatpush1.msra.mxu0 0.0
  %2600 = vmatprep.subr.mxu0 0.0
  %2601 = vmatpush1.msra.mxu0 0.0
  %2602 = vmatprep.subr.mxu0 0.0
  %2603 = vmatpush1.msra.mxu0 0.0
  %2604 = vmatprep.subr.mxu0 0.0
  %2605 = vmatpush1.msra.mxu0 0.0
  %2606 = vmatprep.subr.mxu0 0.0
  %2607 = vmatpush1.msra.mxu0 0.0
  %2608 = vmatprep.subr.mxu0 0.0
  %2609 = vmatpush1.msra.mxu0 0.0
  %2610 = vmatprep.subr.mxu0 0.0
  %2611 = vmatpush1.msra.mxu0 0.0
  %2612 = vmatprep.subr.mxu0 0.0
  %2613 = vmatpush1.msra.mxu0 0.0
  %2614 = vmatprep.subr.mxu0 0.0
  %2615 = vmatpush1.msra.mxu0 0.0
  %2616 = vmatprep.subr.mxu0 0.0
  %2617 = vmatpush1.msra.mxu0 0.0
  %2618 = vmatprep.subr.mxu0 0.0
  %2619 = vmatpush1.msra.mxu0 0.0
  %2620 = vmatprep.subr.mxu0 0.0
  %2621 = vmatpush1.msra.mxu0 0.0
  %2622 = vmatprep.subr.mxu0 0.0
  %2623 = vmatpush1.msra.mxu0 0.0
  %2624 = vmatprep.subr.mxu0 0.0
  %2625 = vmatpush1.msra.mxu0 0.0
  %2626 = vmatprep.subr.mxu0 0.0
  %2627 = vmatpush1.msra.mxu0 0.0
  %2628 = vmatprep.subr.mxu0 0.0
  %2629 = vmatpush1.msra.mxu0 0.0
  %2630 = vmatprep.subr.mxu0 0.0
  %2631 = vmatpush1.msra.mxu0 0.0
  %2632 = vmatprep.mubr.f32.mxu0 0.0
  %2633 = vmatmul.mubr.f32.gmra.mrb[0].mxu0 %v2563
  %v2634 = vpop.f32.mrb[0].mxu0
  %v2635 = vadd.f32 0.0, %v2634
  %v2636 = vpop.f32.mrb[0].mxu0
  %2637 = vmatprep.mubr.f32.mxu0 0.0
  %2638 = vmatmul.mubr.f32.gmra.mrb[0].mxu0 %v2566
  %v2639 = vpop.f32.mrb[0].mxu0
  %v2640 = vadd.f32 0.0, %v2639
  %v2641 = vpop.f32.mrb[0].mxu0
  %2642 = vdwg.mxu0
  %2643 = vmatprep.subr.mxu0 0.0
  %2644 = vmatpush1.msra.mxu0 %v2493
  %2645 = vmatprep.subr.mxu0 0.0
  %2646 = vmatpush1.msra.mxu0 %v2494
  %2647 = vmatprep.subr.mxu0 0.0
  %2648 = vmatpush1.msra.mxu0 %v2495
  %2649 = vmatprep.subr.mxu0 0.0
  %2650 = vmatpush1.msra.mxu0 %v2496
  %2651 = vmatprep.subr.mxu0 0.0
  %2652 = vmatpush1.msra.mxu0 %v2497
  %2653 = vmatprep.subr.mxu0 0.0
  %2654 = vmatpush1.msra.mxu0 0.0
  %2655 = vmatprep.subr.mxu0 0.0
  %2656 = vmatpush1.msra.mxu0 0.0
  %2657 = vmatprep.subr.mxu0 0.0
  %2658 = vmatpush1.msra.mxu0 0.0
  %2659 = vmatprep.subr.mxu0 0.0
  %2660 = vmatpush1.msra.mxu0 0.0
  %2661 = vmatprep.subr.mxu0 0.0
  %2662 = vmatpush1.msra.mxu0 0.0
  %2663 = vmatprep.subr.mxu0 0.0
  %2664 = vmatpush1.msra.mxu0 0.0
  %2665 = vmatprep.subr.mxu0 0.0
  %2666 = vmatpush1.msra.mxu0 0.0
  %2667 = vmatprep.subr.mxu0 0.0
  %2668 = vmatpush1.msra.mxu0 0.0
  %2669 = vmatprep.subr.mxu0 0.0
  %2670 = vmatpush1.msra.mxu0 0.0
  %2671 = vmatprep.subr.mxu0 0.0
  %2672 = vmatpush1.msra.mxu0 0.0
  %2673 = vmatprep.subr.mxu0 0.0
  %2674 = vmatpush1.msra.mxu0 0.0
  %2675 = vmatprep.subr.mxu0 0.0
  %2676 = vmatpush1.msra.mxu0 0.0
  %2677 = vmatprep.subr.mxu0 0.0
  %2678 = vmatpush1.msra.mxu0 0.0
  %2679 = vmatprep.subr.mxu0 0.0
  %2680 = vmatpush1.msra.mxu0 0.0
  %2681 = vmatprep.subr.mxu0 0.0
  %2682 = vmatpush1.msra.mxu0 0.0
  %2683 = vmatprep.subr.mxu0 0.0
  %2684 = vmatpush1.msra.mxu0 0.0
  %2685 = vmatprep.subr.mxu0 0.0
  %2686 = vmatpush1.msra.mxu0 0.0
  %2687 = vmatprep.subr.mxu0 0.0
  %2688 = vmatpush1.msra.mxu0 0.0
  %2689 = vmatprep.subr.mxu0 0.0
  %2690 = vmatpush1.msra.mxu0 0.0
  %2691 = vmatprep.subr.mxu0 0.0
  %2692 = vmatpush1.msra.mxu0 0.0
  %2693 = vmatprep.subr.mxu0 0.0
  %2694 = vmatpush1.msra.mxu0 0.0
  %2695 = vmatprep.subr.mxu0 0.0
  %2696 = vmatpush1.msra.mxu0 0.0
  %2697 = vmatprep.subr.mxu0 0.0
  %2698 = vmatpush1.msra.mxu0 0.0
  %2699 = vmatprep.subr.mxu0 0.0
  %2700 = vmatpush1.msra.mxu0 0.0
  %2701 = vmatprep.subr.mxu0 0.0
  %2702 = vmatpush1.msra.mxu0 0.0
  %2703 = vmatprep.subr.mxu0 0.0
  %2704 = vmatpush1.msra.mxu0 0.0
  %2705 = vmatprep.subr.mxu0 0.0
  %2706 = vmatpush1.msra.mxu0 0.0
  %2707 = vmatprep.mubr.f32.mxu0 0.0
  %2708 = vmatmul.mubr.f32.gmra.mrb[0].mxu0 %v2563
  %v2709 = vpop.f32.mrb[0].mxu0
  %v2710 = vadd.f32 0.0, %v2709
  %v2711 = vpop.f32.mrb[0].mxu0
  %2712 = vmatprep.mubr.f32.mxu0 0.0
  %2713 = vmatmul.mubr.f32.gmra.mrb[0].mxu0 %v2566
  %v2714 = vpop.f32.mrb[0].mxu0
  %v2715 = vadd.f32 0.0, %v2714
  %v2716 = vpop.f32.mrb[0].mxu0
  %2717 = vdwg.mxu0
  %2718 = vmatprep.subr.mxu0 0.0
  %2719 = vmatpush1.msra.mxu0 %v2498
  %2720 = vmatprep.subr.mxu0 0.0
  %2721 = vmatpush1.msra.mxu0 %v2499
  %2722 = vmatprep.subr.mxu0 0.0
  %2723 = vmatpush1.msra.mxu0 %v2500
  %2724 = vmatprep.subr.mxu0 0.0
  %2725 = vmatpush1.msra.mxu0 %v2501
  %2726 = vmatprep.subr.mxu0 0.0
  %2727 = vmatpush1.msra.mxu0 %v2502
  %2728 = vmatprep.subr.mxu0 0.0
  %2729 = vmatpush1.msra.mxu0 0.0
  %2730 = vmatprep.subr.mxu0 0.0
  %2731 = vmatpush1.msra.mxu0 0.0
  %2732 = vmatprep.subr.mxu0 0.0
  %2733 = vmatpush1.msra.mxu0 0.0
  %2734 = vmatprep.subr.mxu0 0.0
  %2735 = vmatpush1.msra.mxu0 0.0
  %2736 = vmatprep.subr.mxu0 0.0
  %2737 = vmatpush1.msra.mxu0 0.0
  %2738 = vmatprep.subr.mxu0 0.0
  %2739 = vmatpush1.msra.mxu0 0.0
  %2740 = vmatprep.subr.mxu0 0.0
  %2741 = vmatpush1.msra.mxu0 0.0
  %2742 = vmatprep.subr.mxu0 0.0
  %2743 = vmatpush1.msra.mxu0 0.0
  %2744 = vmatprep.subr.mxu0 0.0
  %2745 = vmatpush1.msra.mxu0 0.0
  %2746 = vmatprep.subr.mxu0 0.0
  %2747 = vmatpush1.msra.mxu0 0.0
  %2748 = vmatprep.subr.mxu0 0.0
  %2749 = vmatpush1.msra.mxu0 0.0
  %2750 = vmatprep.subr.mxu0 0.0
  %2751 = vmatpush1.msra.mxu0 0.0
  %2752 = vmatprep.subr.mxu0 0.0
  %2753 = vmatpush1.msra.mxu0 0.0
  %2754 = vmatprep.subr.mxu0 0.0
  %2755 = vmatpush1.msra.mxu0 0.0
  %2756 = vmatprep.subr.mxu0 0.0
  %2757 = vmatpush1.msra.mxu0 0.0
  %2758 = vmatprep.subr.mxu0 0.0
  %2759 = vmatpush1.msra.mxu0 0.0
  %2760 = vmatprep.subr.mxu0 0.0
  %2761 = vmatpush1.msra.mxu0 0.0
  %2762 = vmatprep.subr.mxu0 0.0
  %2763 = vmatpush1.msra.mxu0 0.0
  %2764 = vmatprep.subr.mxu0 0.0
  %2765 = vmatpush1.msra.mxu0 0.0
  %2766 = vmatprep.subr.mxu0 0.0
  %2767 = vmatpush1.msra.mxu0 0.0
  %2768 = vmatprep.subr.mxu0 0.0
  %2769 = vmatpush1.msra.mxu0 0.0
  %2770 = vmatprep.subr.mxu0 0.0
  %2771 = vmatpush1.msra.mxu0 0.0
  %2772 = vmatprep.subr.mxu0 0.0
  %2773 = vmatpush1.msra.mxu0 0.0
  %2774 = vmatprep.subr.mxu0 0.0
  %2775 = vmatpush1.msra.mxu0 0.0
  %2776 = vmatprep.subr.mxu0 0.0
  %2777 = vmatpush1.msra.mxu0 0.0
  %2778 = vmatprep.subr.mxu0 0.0
  %2779 = vmatpush1.msra.mxu0 0.0
  %2780 = vmatprep.subr.mxu0 0.0
  %2781 = vmatpush1.msra.mxu0 0.0
  %2782 = vmatprep.mubr.f32.mxu0 0.0
  %2783 = vmatmul.mubr.f32.gmra.mrb[0].mxu0 %v2563
  %v2784 = vpop.f32.mrb[0].mxu0
  %v2785 = vadd.f32 0.0, %v2784
  %v2786 = vpop.f32.mrb[0].mxu0
  %2787 = vmatprep.mubr.f32.mxu0 0.0
  %2788 = vmatmul.mubr.f32.gmra.mrb[0].mxu0 %v2566
  %v2789 = vpop.f32.mrb[0].mxu0
  %v2790 = vadd.f32 0.0, %v2789
  %v2791 = vpop.f32.mrb[0].mxu0
  %2792 = vdwg.mxu0
  %2793 = vmatprep.subr.mxu0 0.0
  %2794 = vmatpush1.msra.mxu0 %v2503
  %2795 = vmatprep.subr.mxu0 0.0
  %2796 = vmatpush1.msra.mxu0 %v2504
  %2797 = vmatprep.subr.mxu0 0.0
  %2798 = vmatpush1.msra.mxu0 %v2505
  %2799 = vmatprep.subr.mxu0 0.0
  %2800 = vmatpush1.msra.mxu0 %v2506
  %2801 = vmatprep.subr.mxu0 0.0
  %2802 = vmatpush1.msra.mxu0 %v2507
  %2803 = vmatprep.subr.mxu0 0.0
  %2804 = vmatpush1.msra.mxu0 0.0
  %2805 = vmatprep.subr.mxu0 0.0
  %2806 = vmatpush1.msra.mxu0 0.0
  %2807 = vmatprep.subr.mxu0 0.0
  %2808 = vmatpush1.msra.mxu0 0.0
  %2809 = vmatprep.subr.mxu0 0.0
  %2810 = vmatpush1.msra.mxu0 0.0
  %2811 = vmatprep.subr.mxu0 0.0
  %2812 = vmatpush1.msra.mxu0 0.0
  %2813 = vmatprep.subr.mxu0 0.0
  %2814 = vmatpush1.msra.mxu0 0.0
  %2815 = vmatprep.subr.mxu0 0.0
  %2816 = vmatpush1.msra.mxu0 0.0
  %2817 = vmatprep.subr.mxu0 0.0
  %2818 = vmatpush1.msra.mxu0 0.0
  %2819 = vmatprep.subr.mxu0 0.0
  %2820 = vmatpush1.msra.mxu0 0.0
  %2821 = vmatprep.subr.mxu0 0.0
  %2822 = vmatpush1.msra.mxu0 0.0
  %2823 = vmatprep.subr.mxu0 0.0
  %2824 = vmatpush1.msra.mxu0 0.0
  %2825 = vmatprep.subr.mxu0 0.0
  %2826 = vmatpush1.msra.mxu0 0.0
  %2827 = vmatprep.subr.mxu0 0.0
  %2828 = vmatpush1.msra.mxu0 0.0
  %2829 = vmatprep.subr.mxu0 0.0
  %2830 = vmatpush1.msra.mxu0 0.0
  %2831 = vmatprep.subr.mxu0 0.0
  %2832 = vmatpush1.msra.mxu0 0.0
  %2833 = vmatprep.subr.mxu0 0.0
  %2834 = vmatpush1.msra.mxu0 0.0
  %2835 = vmatprep.subr.mxu0 0.0
  %2836 = vmatpush1.msra.mxu0 0.0
  %2837 = vmatprep.subr.mxu0 0.0
  %2838 = vmatpush1.msra.mxu0 0.0
  %2839 = vmatprep.subr.mxu0 0.0
  %2840 = vmatpush1.msra.mxu0 0.0
  %2841 = vmatprep.subr.mxu0 0.0
  %2842 = vmatpush1.msra.mxu0 0.0
  %2843 = vmatprep.subr.mxu0 0.0
  %2844 = vmatpush1.msra.mxu0 0.0
  %2845 = vmatprep.subr.mxu0 0.0
  %2846 = vmatpush1.msra.mxu0 0.0
  %2847 = vmatprep.subr.mxu0 0.0
  %2848 = vmatpush1.msra.mxu0 0.0
  %2849 = vmatprep.subr.mxu0 0.0
  %2850 = vmatpush1.msra.mxu0 0.0
  %2851 = vmatprep.subr.mxu0 0.0
  %2852 = vmatpush1.msra.mxu0 0.0
  %2853 = vmatprep.subr.mxu0 0.0
  %2854 = vmatpush1.msra.mxu0 0.0
  %2855 = vmatprep.subr.mxu0 0.0
  %2856 = vmatpush1.msra.mxu0 0.0
  %2857 = vmatprep.mubr.f32.mxu0 0.0
  %2858 = vmatmul.mubr.f32.gmra.mrb[0].mxu0 %v2563
  %v2859 = vpop.f32.mrb[0].mxu0
  %v2860 = vadd.f32 0.0, %v2859
  %v2861 = vpop.f32.mrb[0].mxu0
  %2862 = vmatprep.mubr.f32.mxu0 0.0
  %2863 = vmatmul.mubr.f32.gmra.mrb[0].mxu0 %v2566
  %v2864 = vpop.f32.mrb[0].mxu0
  %v2865 = vadd.f32 0.0, %v2864
  %v2866 = vpop.f32.mrb[0].mxu0
  %2867 = vdwg.mxu0
  %2868 = vmatprep.subr.mxu0 0.0
  %2869 = vmatpush1.msra.mxu0 %v2508
  %2870 = vmatprep.subr.mxu0 0.0
  %2871 = vmatpush1.msra.mxu0 %v2509
  %2872 = vmatprep.subr.mxu0 0.0
  %2873 = vmatpush1.msra.mxu0 %v2510
  %2874 = vmatprep.subr.mxu0 0.0
  %2875 = vmatpush1.msra.mxu0 %v2511
  %2876 = vmatprep.subr.mxu0 0.0
  %2877 = vmatpush1.msra.mxu0 %v2512
  %2878 = vmatprep.subr.mxu0 0.0
  %2879 = vmatpush1.msra.mxu0 0.0
  %2880 = vmatprep.subr.mxu0 0.0
  %2881 = vmatpush1.msra.mxu0 0.0
  %2882 = vmatprep.subr.mxu0 0.0
  %2883 = vmatpush1.msra.mxu0 0.0
  %2884 = vmatprep.subr.mxu0 0.0
  %2885 = vmatpush1.msra.mxu0 0.0
  %2886 = vmatprep.subr.mxu0 0.0
  %2887 = vmatpush1.msra.mxu0 0.0
  %2888 = vmatprep.subr.mxu0 0.0
  %2889 = vmatpush1.msra.mxu0 0.0
  %2890 = vmatprep.subr.mxu0 0.0
  %2891 = vmatpush1.msra.mxu0 0.0
  %2892 = vmatprep.subr.mxu0 0.0
  %2893 = vmatpush1.msra.mxu0 0.0
  %2894 = vmatprep.subr.mxu0 0.0
  %2895 = vmatpush1.msra.mxu0 0.0
  %2896 = vmatprep.subr.mxu0 0.0
  %2897 = vmatpush1.msra.mxu0 0.0
  %2898 = vmatprep.subr.mxu0 0.0
  %2899 = vmatpush1.msra.mxu0 0.0
  %2900 = vmatprep.subr.mxu0 0.0
  %2901 = vmatpush1.msra.mxu0 0.0
  %2902 = vmatprep.subr.mxu0 0.0
  %2903 = vmatpush1.msra.mxu0 0.0
  %2904 = vmatprep.subr.mxu0 0.0
  %2905 = vmatpush1.msra.mxu0 0.0
  %2906 = vmatprep.subr.mxu0 0.0
  %2907 = vmatpush1.msra.mxu0 0.0
  %2908 = vmatprep.subr.mxu0 0.0
  %2909 = vmatpush1.msra.mxu0 0.0
  %2910 = vmatprep.subr.mxu0 0.0
  %2911 = vmatpush1.msra.mxu0 0.0
  %2912 = vmatprep.subr.mxu0 0.0
  %2913 = vmatpush1.msra.mxu0 0.0
  %2914 = vmatprep.subr.mxu0 0.0
  %2915 = vmatpush1.msra.mxu0 0.0
  %2916 = vmatprep.subr.mxu0 0.0
  %2917 = vmatpush1.msra.mxu0 0.0
  %2918 = vmatprep.subr.mxu0 0.0
  %2919 = vmatpush1.msra.mxu0 0.0
  %2920 = vmatprep.subr.mxu0 0.0
  %2921 = vmatpush1.msra.mxu0 0.0
  %2922 = vmatprep.subr.mxu0 0.0
  %2923 = vmatpush1.msra.mxu0 0.0
  %2924 = vmatprep.subr.mxu0 0.0
  %2925 = vmatpush1.msra.mxu0 0.0
  %2926 = vmatprep.subr.mxu0 0.0
  %2927 = vmatpush1.msra.mxu0 0.0
  %2928 = vmatprep.subr.mxu0 0.0
  %2929 = vmatpush1.msra.mxu0 0.0
  %2930 = vmatprep.subr.mxu0 0.0
  %2931 = vmatpush1.msra.mxu0 0.0
  %2932 = vmatprep.mubr.f32.mxu0 0.0
  %2933 = vmatmul.mubr.f32.gmra.mrb[0].mxu0 %v2563
  %v2934 = vpop.f32.mrb[0].mxu0
  %v2935 = vadd.f32 0.0, %v2934
  %v2936 = vpop.f32.mrb[0].mxu0
  %2937 = vmatprep.mubr.f32.mxu0 0.0
  %2938 = vmatmul.mubr.f32.gmra.mrb[0].mxu0 %v2566
  %v2939 = vpop.f32.mrb[0].mxu0
  %v2940 = vadd.f32 0.0, %v2939
  %v2941 = vpop.f32.mrb[0].mxu0
  %2942 = vdwg.mxu0
  %2943 = vmatprep.subr.mxu0 0.0
  %2944 = vmatpush1.msra.mxu0 %v2513
  %2945 = vmatprep.subr.mxu0 0.0
  %2946 = vmatpush1.msra.mxu0 %v2514
  %2947 = vmatprep.subr.mxu0 0.0
  %2948 = vmatpush1.msra.mxu0 %v2515
  %2949 = vmatprep.subr.mxu0 0.0
  %2950 = vmatpush1.msra.mxu0 %v2516
  %2951 = vmatprep.subr.mxu0 0.0
  %2952 = vmatpush1.msra.mxu0 %v2517
  %2953 = vmatprep.subr.mxu0 0.0
  %2954 = vmatpush1.msra.mxu0 0.0
  %2955 = vmatprep.subr.mxu0 0.0
  %2956 = vmatpush1.msra.mxu0 0.0
  %2957 = vmatprep.subr.mxu0 0.0
  %2958 = vmatpush1.msra.mxu0 0.0
  %2959 = vmatprep.subr.mxu0 0.0
  %2960 = vmatpush1.msra.mxu0 0.0
  %2961 = vmatprep.subr.mxu0 0.0
  %2962 = vmatpush1.msra.mxu0 0.0
  %2963 = vmatprep.subr.mxu0 0.0
  %2964 = vmatpush1.msra.mxu0 0.0
  %2965 = vmatprep.subr.mxu0 0.0
  %2966 = vmatpush1.msra.mxu0 0.0
  %2967 = vmatprep.subr.mxu0 0.0
  %2968 = vmatpush1.msra.mxu0 0.0
  %2969 = vmatprep.subr.mxu0 0.0
  %2970 = vmatpush1.msra.mxu0 0.0
  %2971 = vmatprep.subr.mxu0 0.0
  %2972 = vmatpush1.msra.mxu0 0.0
  %2973 = vmatprep.subr.mxu0 0.0
  %2974 = vmatpush1.msra.mxu0 0.0
  %2975 = vmatprep.subr.mxu0 0.0
  %2976 = vmatpush1.msra.mxu0 0.0
  %2977 = vmatprep.subr.mxu0 0.0
  %2978 = vmatpush1.msra.mxu0 0.0
  %2979 = vmatprep.subr.mxu0 0.0
  %2980 = vmatpush1.msra.mxu0 0.0
  %2981 = vmatprep.subr.mxu0 0.0
  %2982 = vmatpush1.msra.mxu0 0.0
  %2983 = vmatprep.subr.mxu0 0.0
  %2984 = vmatpush1.msra.mxu0 0.0
  %2985 = vmatprep.subr.mxu0 0.0
  %2986 = vmatpush1.msra.mxu0 0.0
  %2987 = vmatprep.subr.mxu0 0.0
  %2988 = vmatpush1.msra.mxu0 0.0
  %2989 = vmatprep.subr.mxu0 0.0
  %2990 = vmatpush1.msra.mxu0 0.0
  %2991 = vmatprep.subr.mxu0 0.0
  %2992 = vmatpush1.msra.mxu0 0.0
  %2993 = vmatprep.subr.mxu0 0.0
  %2994 = vmatpush1.msra.mxu0 0.0
  %2995 = vmatprep.subr.mxu0 0.0
  %2996 = vmatpush1.msra.mxu0 0.0
  %2997 = vmatprep.subr.mxu0 0.0
  %2998 = vmatpush1.msra.mxu0 0.0
  %2999 = vmatprep.subr.mxu0 0.0
  %3000 = vmatpush1.msra.mxu0 0.0
  %3001 = vmatprep.subr.mxu0 0.0
  %3002 = vmatpush1.msra.mxu0 0.0
  %3003 = vmatprep.subr.mxu0 0.0
  %3004 = vmatpush1.msra.mxu0 0.0
  %3005 = vmatprep.subr.mxu0 0.0
  %3006 = vmatpush1.msra.mxu0 0.0
  %3007 = vmatprep.mubr.f32.mxu0 0.0
  %3008 = vmatmul.mubr.f32.gmra.mrb[0].mxu0 %v2563
  %v3009 = vpop.f32.mrb[0].mxu0
  %v3010 = vadd.f32 0.0, %v3009
  %v3011 = vpop.f32.mrb[0].mxu0
  %3012 = vmatprep.mubr.f32.mxu0 0.0
  %3013 = vmatmul.mubr.f32.gmra.mrb[0].mxu0 %v2566
  %v3014 = vpop.f32.mrb[0].mxu0
  %v3015 = vadd.f32 0.0, %v3014
  %v3016 = vpop.f32.mrb[0].mxu0
  %3017 = vdwg.mxu0
  %3018 = vmatprep.subr.mxu0 0.0
  %3019 = vmatpush1.msra.mxu0 %v2518
  %3020 = vmatprep.subr.mxu0 0.0
  %3021 = vmatpush1.msra.mxu0 %v2519
  %3022 = vmatprep.subr.mxu0 0.0
  %3023 = vmatpush1.msra.mxu0 %v2520
  %3024 = vmatprep.subr.mxu0 0.0
  %3025 = vmatpush1.msra.mxu0 %v2521
  %3026 = vmatprep.subr.mxu0 0.0
  %3027 = vmatpush1.msra.mxu0 %v2522
  %3028 = vmatprep.subr.mxu0 0.0
  %3029 = vmatpush1.msra.mxu0 0.0
  %3030 = vmatprep.subr.mxu0 0.0
  %3031 = vmatpush1.msra.mxu0 0.0
  %3032 = vmatprep.subr.mxu0 0.0
  %3033 = vmatpush1.msra.mxu0 0.0
  %3034 = vmatprep.subr.mxu0 0.0
  %3035 = vmatpush1.msra.mxu0 0.0
  %3036 = vmatprep.subr.mxu0 0.0
  %3037 = vmatpush1.msra.mxu0 0.0
  %3038 = vmatprep.subr.mxu0 0.0
  %3039 = vmatpush1.msra.mxu0 0.0
  %3040 = vmatprep.subr.mxu0 0.0
  %3041 = vmatpush1.msra.mxu0 0.0
  %3042 = vmatprep.subr.mxu0 0.0
  %3043 = vmatpush1.msra.mxu0 0.0
  %3044 = vmatprep.subr.mxu0 0.0
  %3045 = vmatpush1.msra.mxu0 0.0
  %3046 = vmatprep.subr.mxu0 0.0
  %3047 = vmatpush1.msra.mxu0 0.0
  %3048 = vmatprep.subr.mxu0 0.0
  %3049 = vmatpush1.msra.mxu0 0.0
  %3050 = vmatprep.subr.mxu0 0.0
  %3051 = vmatpush1.msra.mxu0 0.0
  %3052 = vmatprep.subr.mxu0 0.0
  %3053 = vmatpush1.msra.mxu0 0.0
  %3054 = vmatprep.subr.mxu0 0.0
  %3055 = vmatpush1.msra.mxu0 0.0
  %3056 = vmatprep.subr.mxu0 0.0
  %3057 = vmatpush1.msra.mxu0 0.0
  %3058 = vmatprep.subr.mxu0 0.0
  %3059 = vmatpush1.msra.mxu0 0.0
  %3060 = vmatprep.subr.mxu0 0.0
  %3061 = vmatpush1.msra.mxu0 0.0
  %3062 = vmatprep.subr.mxu0 0.0
  %3063 = vmatpush1.msra.mxu0 0.0
  %3064 = vmatprep.subr.mxu0 0.0
  %3065 = vmatpush1.msra.mxu0 0.0
  %3066 = vmatprep.subr.mxu0 0.0
  %3067 = vmatpush1.msra.mxu0 0.0
  %3068 = vmatprep.subr.mxu0 0.0
  %3069 = vmatpush1.msra.mxu0 0.0
  %3070 = vmatprep.subr.mxu0 0.0
  %3071 = vmatpush1.msra.mxu0 0.0
  %3072 = vmatprep.subr.mxu0 0.0
  %3073 = vmatpush1.msra.mxu0 0.0
  %3074 = vmatprep.subr.mxu0 0.0
  %3075 = vmatpush1.msra.mxu0 0.0
  %3076 = vmatprep.subr.mxu0 0.0
  %3077 = vmatpush1.msra.mxu0 0.0
  %3078 = vmatprep.subr.mxu0 0.0
  %3079 = vmatpush1.msra.mxu0 0.0
  %3080 = vmatprep.subr.mxu0 0.0
  %3081 = vmatpush1.msra.mxu0 0.0
  %3082 = vmatprep.mubr.f32.mxu0 0.0
  %3083 = vmatmul.mubr.f32.gmra.mrb[0].mxu0 %v2563
  %v3084 = vpop.f32.mrb[0].mxu0
  %v3085 = vadd.f32 0.0, %v3084
  %v3086 = vpop.f32.mrb[0].mxu0
  %3087 = vmatprep.mubr.f32.mxu0 0.0
  %3088 = vmatmul.mubr.f32.gmra.mrb[0].mxu0 %v2566
  %v3089 = vpop.f32.mrb[0].mxu0
  %v3090 = vadd.f32 0.0, %v3089
  %v3091 = vpop.f32.mrb[0].mxu0
  %3092 = vdwg.mxu0
  %3093 = vmatprep.subr.mxu0 0.0
  %3094 = vmatpush1.msra.mxu0 %v2523
  %3095 = vmatprep.subr.mxu0 0.0
  %3096 = vmatpush1.msra.mxu0 %v2524
  %3097 = vmatprep.subr.mxu0 0.0
  %3098 = vmatpush1.msra.mxu0 %v2525
  %3099 = vmatprep.subr.mxu0 0.0
  %3100 = vmatpush1.msra.mxu0 %v2526
  %3101 = vmatprep.subr.mxu0 0.0
  %3102 = vmatpush1.msra.mxu0 %v2527
  %3103 = vmatprep.subr.mxu0 0.0
  %3104 = vmatpush1.msra.mxu0 0.0
  %3105 = vmatprep.subr.mxu0 0.0
  %3106 = vmatpush1.msra.mxu0 0.0
  %3107 = vmatprep.subr.mxu0 0.0
  %3108 = vmatpush1.msra.mxu0 0.0
  %3109 = vmatprep.subr.mxu0 0.0
  %3110 = vmatpush1.msra.mxu0 0.0
  %3111 = vmatprep.subr.mxu0 0.0
  %3112 = vmatpush1.msra.mxu0 0.0
  %3113 = vmatprep.subr.mxu0 0.0
  %3114 = vmatpush1.msra.mxu0 0.0
  %3115 = vmatprep.subr.mxu0 0.0
  %3116 = vmatpush1.msra.mxu0 0.0
  %3117 = vmatprep.subr.mxu0 0.0
  %3118 = vmatpush1.msra.mxu0 0.0
  %3119 = vmatprep.subr.mxu0 0.0
  %3120 = vmatpush1.msra.mxu0 0.0
  %3121 = vmatprep.subr.mxu0 0.0
  %3122 = vmatpush1.msra.mxu0 0.0
  %3123 = vmatprep.subr.mxu0 0.0
  %3124 = vmatpush1.msra.mxu0 0.0
  %3125 = vmatprep.subr.mxu0 0.0
  %3126 = vmatpush1.msra.mxu0 0.0
  %3127 = vmatprep.subr.mxu0 0.0
  %3128 = vmatpush1.msra.mxu0 0.0
  %3129 = vmatprep.subr.mxu0 0.0
  %3130 = vmatpush1.msra.mxu0 0.0
  %3131 = vmatprep.subr.mxu0 0.0
  %3132 = vmatpush1.msra.mxu0 0.0
  %3133 = vmatprep.subr.mxu0 0.0
  %3134 = vmatpush1.msra.mxu0 0.0
  %3135 = vmatprep.subr.mxu0 0.0
  %3136 = vmatpush1.msra.mxu0 0.0
  %3137 = vmatprep.subr.mxu0 0.0
  %3138 = vmatpush1.msra.mxu0 0.0
  %3139 = vmatprep.subr.mxu0 0.0
  %3140 = vmatpush1.msra.mxu0 0.0
  %3141 = vmatprep.subr.mxu0 0.0
  %3142 = vmatpush1.msra.mxu0 0.0
  %3143 = vmatprep.subr.mxu0 0.0
  %3144 = vmatpush1.msra.mxu0 0.0
  %3145 = vmatprep.subr.mxu0 0.0
  %3146 = vmatpush1.msra.mxu0 0.0
  %3147 = vmatprep.subr.mxu0 0.0
  %3148 = vmatpush1.msra.mxu0 0.0
  %3149 = vmatprep.subr.mxu0 0.0
  %3150 = vmatpush1.msra.mxu0 0.0
  %3151 = vmatprep.subr.mxu0 0.0
  %3152 = vmatpush1.msra.mxu0 0.0
  %3153 = vmatprep.subr.mxu0 0.0
  %3154 = vmatpush1.msra.mxu0 0.0
  %3155 = vmatprep.subr.mxu0 0.0
  %3156 = vmatpush1.msra.mxu0 0.0
  %3157 = vmatprep.mubr.f32.mxu0 0.0
  %3158 = vmatmul.mubr.f32.gmra.mrb[0].mxu0 %v2563
  %v3159 = vpop.f32.mrb[0].mxu0
  %v3160 = vadd.f32 0.0, %v3159
  %v3161 = vpop.f32.mrb[0].mxu0
  %3162 = vmatprep.mubr.f32.mxu0 0.0
  %3163 = vmatmul.mubr.f32.gmra.mrb[0].mxu0 %v2566
  %v3164 = vpop.f32.mrb[0].mxu0
  %v3165 = vadd.f32 0.0, %v3164
  %v3166 = vpop.f32.mrb[0].mxu0
  %3167 = vdwg.mxu0
  %3168 = vmatprep.subr.mxu0 0.0
  %3169 = vmatpush1.msra.mxu0 %v2528
  %3170 = vmatprep.subr.mxu0 0.0
  %3171 = vmatpush1.msra.mxu0 %v2529
  %3172 = vmatprep.subr.mxu0 0.0
  %3173 = vmatpush1.msra.mxu0 %v2530
  %3174 = vmatprep.subr.mxu0 0.0
  %3175 = vmatpush1.msra.mxu0 %v2531
  %3176 = vmatprep.subr.mxu0 0.0
  %3177 = vmatpush1.msra.mxu0 %v2532
  %3178 = vmatprep.subr.mxu0 0.0
  %3179 = vmatpush1.msra.mxu0 0.0
  %3180 = vmatprep.subr.mxu0 0.0
  %3181 = vmatpush1.msra.mxu0 0.0
  %3182 = vmatprep.subr.mxu0 0.0
  %3183 = vmatpush1.msra.mxu0 0.0
  %3184 = vmatprep.subr.mxu0 0.0
  %3185 = vmatpush1.msra.mxu0 0.0
  %3186 = vmatprep.subr.mxu0 0.0
  %3187 = vmatpush1.msra.mxu0 0.0
  %3188 = vmatprep.subr.mxu0 0.0
  %3189 = vmatpush1.msra.mxu0 0.0
  %3190 = vmatprep.subr.mxu0 0.0
  %3191 = vmatpush1.msra.mxu0 0.0
  %3192 = vmatprep.subr.mxu0 0.0
  %3193 = vmatpush1.msra.mxu0 0.0
  %3194 = vmatprep.subr.mxu0 0.0
  %3195 = vmatpush1.msra.mxu0 0.0
  %3196 = vmatprep.subr.mxu0 0.0
  %3197 = vmatpush1.msra.mxu0 0.0
  %3198 = vmatprep.subr.mxu0 0.0
  %3199 = vmatpush1.msra.mxu0 0.0
  %3200 = vmatprep.subr.mxu0 0.0
  %3201 = vmatpush1.msra.mxu0 0.0
  %3202 = vmatprep.subr.mxu0 0.0
  %3203 = vmatpush1.msra.mxu0 0.0
  %3204 = vmatprep.subr.mxu0 0.0
  %3205 = vmatpush1.msra.mxu0 0.0
  %3206 = vmatprep.subr.mxu0 0.0
  %3207 = vmatpush1.msra.mxu0 0.0
  %3208 = vmatprep.subr.mxu0 0.0
  %3209 = vmatpush1.msra.mxu0 0.0
  %3210 = vmatprep.subr.mxu0 0.0
  %3211 = vmatpush1.msra.mxu0 0.0
  %3212 = vmatprep.subr.mxu0 0.0
  %3213 = vmatpush1.msra.mxu0 0.0
  %3214 = vmatprep.subr.mxu0 0.0
  %3215 = vmatpush1.msra.mxu0 0.0
  %3216 = vmatprep.subr.mxu0 0.0
  %3217 = vmatpush1.msra.mxu0 0.0
  %3218 = vmatprep.subr.mxu0 0.0
  %3219 = vmatpush1.msra.mxu0 0.0
  %3220 = vmatprep.subr.mxu0 0.0
  %3221 = vmatpush1.msra.mxu0 0.0
  %3222 = vmatprep.subr.mxu0 0.0
  %3223 = vmatpush1.msra.mxu0 0.0
  %3224 = vmatprep.subr.mxu0 0.0
  %3225 = vmatpush1.msra.mxu0 0.0
  %3226 = vmatprep.subr.mxu0 0.0
  %3227 = vmatpush1.msra.mxu0 0.0
  %3228 = vmatprep.subr.mxu0 0.0
  %3229 = vmatpush1.msra.mxu0 0.0
  %3230 = vmatprep.subr.mxu0 0.0
  %3231 = vmatpush1.msra.mxu0 0.0
  %3232 = vmatprep.mubr.f32.mxu0 0.0
  %3233 = vmatmul.mubr.f32.gmra.mrb[0].mxu0 %v2563
  %v3234 = vpop.f32.mrb[0].mxu0
  %v3235 = vadd.f32 0.0, %v3234
  %v3236 = vpop.f32.mrb[0].mxu0
  %3237 = vmatprep.mubr.f32.mxu0 0.0
  %3238 = vmatmul.mubr.f32.gmra.mrb[0].mxu0 %v2566
  %v3239 = vpop.f32.mrb[0].mxu0
  %v3240 = vadd.f32 0.0, %v3239
  %v3241 = vpop.f32.mrb[0].mxu0
  %3242 = vdwg.mxu0
  %3243 = vmatprep.subr.mxu0 0.0
  %3244 = vmatpush1.msra.mxu0 %v2533
  %3245 = vmatprep.subr.mxu0 0.0
  %3246 = vmatpush1.msra.mxu0 %v2534
  %3247 = vmatprep.subr.mxu0 0.0
  %3248 = vmatpush1.msra.mxu0 %v2535
  %3249 = vmatprep.subr.mxu0 0.0
  %3250 = vmatpush1.msra.mxu0 %v2536
  %3251 = vmatprep.subr.mxu0 0.0
  %3252 = vmatpush1.msra.mxu0 %v2537
  %3253 = vmatprep.subr.mxu0 0.0
  %3254 = vmatpush1.msra.mxu0 0.0
  %3255 = vmatprep.subr.mxu0 0.0
  %3256 = vmatpush1.msra.mxu0 0.0
  %3257 = vmatprep.subr.mxu0 0.0
  %3258 = vmatpush1.msra.mxu0 0.0
  %3259 = vmatprep.subr.mxu0 0.0
  %3260 = vmatpush1.msra.mxu0 0.0
  %3261 = vmatprep.subr.mxu0 0.0
  %3262 = vmatpush1.msra.mxu0 0.0
  %3263 = vmatprep.subr.mxu0 0.0
  %3264 = vmatpush1.msra.mxu0 0.0
  %3265 = vmatprep.subr.mxu0 0.0
  %3266 = vmatpush1.msra.mxu0 0.0
  %3267 = vmatprep.subr.mxu0 0.0
  %3268 = vmatpush1.msra.mxu0 0.0
  %3269 = vmatprep.subr.mxu0 0.0
  %3270 = vmatpush1.msra.mxu0 0.0
  %3271 = vmatprep.subr.mxu0 0.0
  %3272 = vmatpush1.msra.mxu0 0.0
  %3273 = vmatprep.subr.mxu0 0.0
  %3274 = vmatpush1.msra.mxu0 0.0
  %3275 = vmatprep.subr.mxu0 0.0
  %3276 = vmatpush1.msra.mxu0 0.0
  %3277 = vmatprep.subr.mxu0 0.0
  %3278 = vmatpush1.msra.mxu0 0.0
  %3279 = vmatprep.subr.mxu0 0.0
  %3280 = vmatpush1.msra.mxu0 0.0
  %3281 = vmatprep.subr.mxu0 0.0
  %3282 = vmatpush1.msra.mxu0 0.0
  %3283 = vmatprep.subr.mxu0 0.0
  %3284 = vmatpush1.msra.mxu0 0.0
  %3285 = vmatprep.subr.mxu0 0.0
  %3286 = vmatpush1.msra.mxu0 0.0
  %3287 = vmatprep.subr.mxu0 0.0
  %3288 = vmatpush1.msra.mxu0 0.0
  %3289 = vmatprep.subr.mxu0 0.0
  %3290 = vmatpush1.msra.mxu0 0.0
  %3291 = vmatprep.subr.mxu0 0.0
  %3292 = vmatpush1.msra.mxu0 0.0
  %3293 = vmatprep.subr.mxu0 0.0
  %3294 = vmatpush1.msra.mxu0 0.0
  %3295 = vmatprep.subr.mxu0 0.0
  %3296 = vmatpush1.msra.mxu0 0.0
  %3297 = vmatprep.subr.mxu0 0.0
  %3298 = vmatpush1.msra.mxu0 0.0
  %3299 = vmatprep.subr.mxu0 0.0
  %3300 = vmatpush1.msra.mxu0 0.0
  %3301 = vmatprep.subr.mxu0 0.0
  %3302 = vmatpush1.msra.mxu0 0.0
  %3303 = vmatprep.subr.mxu0 0.0
  %3304 = vmatpush1.msra.mxu0 0.0
  %3305 = vmatprep.subr.mxu0 0.0
  %3306 = vmatpush1.msra.mxu0 0.0
  %3307 = vmatprep.mubr.f32.mxu0 0.0
  %3308 = vmatmul.mubr.f32.gmra.mrb[0].mxu0 %v2563
  %v3309 = vpop.f32.mrb[0].mxu0
  %v3310 = vadd.f32 0.0, %v3309
  %v3311 = vpop.f32.mrb[0].mxu0
  %3312 = vmatprep.mubr.f32.mxu0 0.0
  %3313 = vmatmul.mubr.f32.gmra.mrb[0].mxu0 %v2566
  %v3314 = vpop.f32.mrb[0].mxu0
  %v3315 = vadd.f32 0.0, %v3314
  %v3316 = vpop.f32.mrb[0].mxu0
  %3317 = vdwg.mxu0
  %3318 = vmatprep.subr.mxu0 0.0
  %3319 = vmatpush1.msra.mxu0 %v2538
  %3320 = vmatprep.subr.mxu0 0.0
  %3321 = vmatpush1.msra.mxu0 %v2539
  %3322 = vmatprep.subr.mxu0 0.0
  %3323 = vmatpush1.msra.mxu0 %v2540
  %3324 = vmatprep.subr.mxu0 0.0
  %3325 = vmatpush1.msra.mxu0 %v2541
  %3326 = vmatprep.subr.mxu0 0.0
  %3327 = vmatpush1.msra.mxu0 %v2542
  %3328 = vmatprep.subr.mxu0 0.0
  %3329 = vmatpush1.msra.mxu0 0.0
  %3330 = vmatprep.subr.mxu0 0.0
  %3331 = vmatpush1.msra.mxu0 0.0
  %3332 = vmatprep.subr.mxu0 0.0
  %3333 = vmatpush1.msra.mxu0 0.0
  %3334 = vmatprep.subr.mxu0 0.0
  %3335 = vmatpush1.msra.mxu0 0.0
  %3336 = vmatprep.subr.mxu0 0.0
  %3337 = vmatpush1.msra.mxu0 0.0
  %3338 = vmatprep.subr.mxu0 0.0
  %3339 = vmatpush1.msra.mxu0 0.0
  %3340 = vmatprep.subr.mxu0 0.0
  %3341 = vmatpush1.msra.mxu0 0.0
  %3342 = vmatprep.subr.mxu0 0.0
  %3343 = vmatpush1.msra.mxu0 0.0
  %3344 = vmatprep.subr.mxu0 0.0
  %3345 = vmatpush1.msra.mxu0 0.0
  %3346 = vmatprep.subr.mxu0 0.0
  %3347 = vmatpush1.msra.mxu0 0.0
  %3348 = vmatprep.subr.mxu0 0.0
  %3349 = vmatpush1.msra.mxu0 0.0
  %3350 = vmatprep.subr.mxu0 0.0
  %3351 = vmatpush1.msra.mxu0 0.0
  %3352 = vmatprep.subr.mxu0 0.0
  %3353 = vmatpush1.msra.mxu0 0.0
  %3354 = vmatprep.subr.mxu0 0.0
  %3355 = vmatpush1.msra.mxu0 0.0
  %3356 = vmatprep.subr.mxu0 0.0
  %3357 = vmatpush1.msra.mxu0 0.0
  %3358 = vmatprep.subr.mxu0 0.0
  %3359 = vmatpush1.msra.mxu0 0.0
  %3360 = vmatprep.subr.mxu0 0.0
  %3361 = vmatpush1.msra.mxu0 0.0
  %3362 = vmatprep.subr.mxu0 0.0
  %3363 = vmatpush1.msra.mxu0 0.0
  %3364 = vmatprep.subr.mxu0 0.0
  %3365 = vmatpush1.msra.mxu0 0.0
  %3366 = vmatprep.subr.mxu0 0.0
  %3367 = vmatpush1.msra.mxu0 0.0
  %3368 = vmatprep.subr.mxu0 0.0
  %3369 = vmatpush1.msra.mxu0 0.0
  %3370 = vmatprep.subr.mxu0 0.0
  %3371 = vmatpush1.msra.mxu0 0.0
  %3372 = vmatprep.subr.mxu0 0.0
  %3373 = vmatpush1.msra.mxu0 0.0
  %3374 = vmatprep.subr.mxu0 0.0
  %3375 = vmatpush1.msra.mxu0 0.0
  %3376 = vmatprep.subr.mxu0 0.0
  %3377 = vmatpush1.msra.mxu0 0.0
  %3378 = vmatprep.subr.mxu0 0.0
  %3379 = vmatpush1.msra.mxu0 0.0
  %3380 = vmatprep.subr.mxu0 0.0
  %3381 = vmatpush1.msra.mxu0 0.0
  %3382 = vmatprep.mubr.f32.mxu0 0.0
  %3383 = vmatmul.mubr.f32.gmra.mrb[0].mxu0 %v2563
  %v3384 = vpop.f32.mrb[0].mxu0
  %v3385 = vadd.f32 0.0, %v3384
  %v3386 = vpop.f32.mrb[0].mxu0
  %3387 = vmatprep.mubr.f32.mxu0 0.0
  %3388 = vmatmul.mubr.f32.gmra.mrb[0].mxu0 %v2566
  %v3389 = vpop.f32.mrb[0].mxu0
  %v3390 = vadd.f32 0.0, %v3389
  %v3391 = vpop.f32.mrb[0].mxu0
  %3392 = vdwg.mxu0
  %3393 = vmatprep.subr.mxu0 0.0
  %3394 = vmatpush1.msra.mxu0 %v2543
  %3395 = vmatprep.subr.mxu0 0.0
  %3396 = vmatpush1.msra.mxu0 %v2544
  %3397 = vmatprep.subr.mxu0 0.0
  %3398 = vmatpush1.msra.mxu0 %v2545
  %3399 = vmatprep.subr.mxu0 0.0
  %3400 = vmatpush1.msra.mxu0 %v2546
  %3401 = vmatprep.subr.mxu0 0.0
  %3402 = vmatpush1.msra.mxu0 %v2547
  %3403 = vmatprep.subr.mxu0 0.0
  %3404 = vmatpush1.msra.mxu0 0.0
  %3405 = vmatprep.subr.mxu0 0.0
  %3406 = vmatpush1.msra.mxu0 0.0
  %3407 = vmatprep.subr.mxu0 0.0
  %3408 = vmatpush1.msra.mxu0 0.0
  %3409 = vmatprep.subr.mxu0 0.0
  %3410 = vmatpush1.msra.mxu0 0.0
  %3411 = vmatprep.subr.mxu0 0.0
  %3412 = vmatpush1.msra.mxu0 0.0
  %3413 = vmatprep.subr.mxu0 0.0
  %3414 = vmatpush1.msra.mxu0 0.0
  %3415 = vmatprep.subr.mxu0 0.0
  %3416 = vmatpush1.msra.mxu0 0.0
  %3417 = vmatprep.subr.mxu0 0.0
  %3418 = vmatpush1.msra.mxu0 0.0
  %3419 = vmatprep.subr.mxu0 0.0
  %3420 = vmatpush1.msra.mxu0 0.0
  %3421 = vmatprep.subr.mxu0 0.0
  %3422 = vmatpush1.msra.mxu0 0.0
  %3423 = vmatprep.subr.mxu0 0.0
  %3424 = vmatpush1.msra.mxu0 0.0
  %3425 = vmatprep.subr.mxu0 0.0
  %3426 = vmatpush1.msra.mxu0 0.0
  %3427 = vmatprep.subr.mxu0 0.0
  %3428 = vmatpush1.msra.mxu0 0.0
  %3429 = vmatprep.subr.mxu0 0.0
  %3430 = vmatpush1.msra.mxu0 0.0
  %3431 = vmatprep.subr.mxu0 0.0
  %3432 = vmatpush1.msra.mxu0 0.0
  %3433 = vmatprep.subr.mxu0 0.0
  %3434 = vmatpush1.msra.mxu0 0.0
  %3435 = vmatprep.subr.mxu0 0.0
  %3436 = vmatpush1.msra.mxu0 0.0
  %3437 = vmatprep.subr.mxu0 0.0
  %3438 = vmatpush1.msra.mxu0 0.0
  %3439 = vmatprep.subr.mxu0 0.0
  %3440 = vmatpush1.msra.mxu0 0.0
  %3441 = vmatprep.subr.mxu0 0.0
  %3442 = vmatpush1.msra.mxu0 0.0
  %3443 = vmatprep.subr.mxu0 0.0
  %3444 = vmatpush1.msra.mxu0 0.0
  %3445 = vmatprep.subr.mxu0 0.0
  %3446 = vmatpush1.msra.mxu0 0.0
  %3447 = vmatprep.subr.mxu0 0.0
  %3448 = vmatpush1.msra.mxu0 0.0
  %3449 = vmatprep.subr.mxu0 0.0
  %3450 = vmatpush1.msra.mxu0 0.0
  %3451 = vmatprep.subr.mxu0 0.0
  %3452 = vmatpush1.msra.mxu0 0.0
  %3453 = vmatprep.subr.mxu0 0.0
  %3454 = vmatpush1.msra.mxu0 0.0
  %3455 = vmatprep.subr.mxu0 0.0
  %3456 = vmatpush1.msra.mxu0 0.0
  %3457 = vmatprep.mubr.f32.mxu0 0.0
  %3458 = vmatmul.mubr.f32.gmra.mrb[0].mxu0 %v2563
  %v3459 = vpop.f32.mrb[0].mxu0
  %v3460 = vadd.f32 0.0, %v3459
  %v3461 = vpop.f32.mrb[0].mxu0
  %3462 = vmatprep.mubr.f32.mxu0 0.0
  %3463 = vmatmul.mubr.f32.gmra.mrb[0].mxu0 %v2566
  %v3464 = vpop.f32.mrb[0].mxu0
  %v3465 = vadd.f32 0.0, %v3464
  %v3466 = vpop.f32.mrb[0].mxu0
  %3467 = vdwg.mxu0
  %v3469 = vsel %vm1124, %v2635, 0
  %v3472 = vsel %vm1124, %v2640, 0
  %v3475 = vsel %vm1124, %v2935, 0
  %v3478 = vsel %vm1124, %v2940, 0
  %3480 = vmatprep.subr.mxu0 0.0
  %3481 = vmatpush1.xpose.msra.mxu0 %v3475
  %3482 = vmatprep.subr.mxu0 0.0
  %3483 = vmatpush1.xpose.msra.mxu0 %v3478
  %3484 = vmatprep.subr.mxu0 0.0
  %3485 = vmatpush1.xpose.msra.mxu0 0.0
  %3486 = vmatprep.subr.mxu0 0.0
  %3487 = vmatpush1.xpose.msra.mxu0 0.0
  %3488 = vmatprep.subr.mxu0 0.0
  %3489 = vmatpush1.xpose.msra.mxu0 0.0
  %3490 = vmatprep.subr.mxu0 0.0
  %3491 = vmatpush1.xpose.msra.mxu0 0.0
  %3492 = vmatprep.subr.mxu0 0.0
  %3493 = vmatpush1.xpose.msra.mxu0 0.0
  %3494 = vmatprep.subr.mxu0 0.0
  %3495 = vmatpush1.xpose.msra.mxu0 0.0
  %3496 = vmatprep.subr.mxu0 0.0
  %3497 = vmatpush1.xpose.msra.mxu0 0.0
  %3498 = vmatprep.subr.mxu0 0.0
  %3499 = vmatpush1.xpose.msra.mxu0 0.0
  %3500 = vmatprep.subr.mxu0 0.0
  %3501 = vmatpush1.xpose.msra.mxu0 0.0
  %3502 = vmatprep.subr.mxu0 0.0
  %3503 = vmatpush1.xpose.msra.mxu0 0.0
  %3504 = vmatprep.subr.mxu0 0.0
  %3505 = vmatpush1.xpose.msra.mxu0 0.0
  %3506 = vmatprep.subr.mxu0 0.0
  %3507 = vmatpush1.xpose.msra.mxu0 0.0
  %3508 = vmatprep.subr.mxu0 0.0
  %3509 = vmatpush1.xpose.msra.mxu0 0.0
  %3510 = vmatprep.subr.mxu0 0.0
  %3511 = vmatpush1.xpose.msra.mxu0 0.0
  %3512 = vmatprep.subr.mxu0 0.0
  %3513 = vmatpush1.xpose.msra.mxu0 0.0
  %3514 = vmatprep.subr.mxu0 0.0
  %3515 = vmatpush1.xpose.msra.mxu0 0.0
  %3516 = vmatprep.subr.mxu0 0.0
  %3517 = vmatpush1.xpose.msra.mxu0 0.0
  %3518 = vmatprep.subr.mxu0 0.0
  %3519 = vmatpush1.xpose.msra.mxu0 0.0
  %3520 = vmatprep.subr.mxu0 0.0
  %3521 = vmatpush1.xpose.msra.mxu0 0.0
  %3522 = vmatprep.subr.mxu0 0.0
  %3523 = vmatpush1.xpose.msra.mxu0 0.0
  %3524 = vmatprep.subr.mxu0 0.0
  %3525 = vmatpush1.xpose.msra.mxu0 0.0
  %3526 = vmatprep.subr.mxu0 0.0
  %3527 = vmatpush1.xpose.msra.mxu0 0.0
  %3528 = vmatprep.subr.mxu0 0.0
  %3529 = vmatpush1.xpose.msra.mxu0 0.0
  %3530 = vmatprep.subr.mxu0 0.0
  %3531 = vmatpush1.xpose.msra.mxu0 0.0
  %3532 = vmatprep.subr.mxu0 0.0
  %3533 = vmatpush1.xpose.msra.mxu0 0.0
  %3534 = vmatprep.subr.mxu0 0.0
  %3535 = vmatpush1.xpose.msra.mxu0 0.0
  %3536 = vmatprep.subr.mxu0 0.0
  %3537 = vmatpush1.xpose.msra.mxu0 0.0
  %3538 = vmatprep.subr.mxu0 0.0
  %3539 = vmatpush1.xpose.msra.mxu0 0.0
  %3540 = vmatprep.subr.mxu0 0.0
  %3541 = vmatpush1.xpose.msra.mxu0 0.0
  %3542 = vmatprep.subr.mxu0 0.0
  %3543 = vmatpush1.xpose.msra.mxu0 0.0
  %3544 = vmatprep.mubr.f32.mxu0 0.0
  %3545 = vmatmul.mubr.f32.gmra.mrb[0].mxu0 %v3469
  %v3546 = vpop.f32.mrb[0].mxu0
  %v3547 = vadd.f32 %v141, %v3546
  %v3548 = vpop.f32.mrb[0].mxu0
  %3549 = vmatprep.mubr.f32.mxu0 0.0
  %3550 = vmatmul.mubr.f32.gmra.mrb[0].mxu0 %v3472
  %v3551 = vpop.f32.mrb[0].mxu0
  %v3552 = vadd.f32 %v142, %v3551
  %v3553 = vpop.f32.mrb[0].mxu0
  %3554 = vdwg.mxu0
  %v3556 = vsel %vm1124, %v2710, 0
  %v3559 = vsel %vm1124, %v2715, 0
  %v3562 = vsel %vm1124, %v3010, 0
  %v3565 = vsel %vm1124, %v3015, 0
  %3567 = vmatprep.subr.mxu0 0.0
  %3568 = vmatpush1.xpose.msra.mxu0 %v3562
  %3569 = vmatprep.subr.mxu0 0.0
  %3570 = vmatpush1.xpose.msra.mxu0 %v3565
  %3571 = vmatprep.subr.mxu0 0.0
  %3572 = vmatpush1.xpose.msra.mxu0 0.0
  %3573 = vmatprep.subr.mxu0 0.0
  %3574 = vmatpush1.xpose.msra.mxu0 0.0
  %3575 = vmatprep.subr.mxu0 0.0
  %3576 = vmatpush1.xpose.msra.mxu0 0.0
  %3577 = vmatprep.subr.mxu0 0.0
  %3578 = vmatpush1.xpose.msra.mxu0 0.0
  %3579 = vmatprep.subr.mxu0 0.0
  %3580 = vmatpush1.xpose.msra.mxu0 0.0
  %3581 = vmatprep.subr.mxu0 0.0
  %3582 = vmatpush1.xpose.msra.mxu0 0.0
  %3583 = vmatprep.subr.mxu0 0.0
  %3584 = vmatpush1.xpose.msra.mxu0 0.0
  %3585 = vmatprep.subr.mxu0 0.0
  %3586 = vmatpush1.xpose.msra.mxu0 0.0
  %3587 = vmatprep.subr.mxu0 0.0
  %3588 = vmatpush1.xpose.msra.mxu0 0.0
  %3589 = vmatprep.subr.mxu0 0.0
  %3590 = vmatpush1.xpose.msra.mxu0 0.0
  %3591 = vmatprep.subr.mxu0 0.0
  %3592 = vmatpush1.xpose.msra.mxu0 0.0
  %3593 = vmatprep.subr.mxu0 0.0
  %3594 = vmatpush1.xpose.msra.mxu0 0.0
  %3595 = vmatprep.subr.mxu0 0.0
  %3596 = vmatpush1.xpose.msra.mxu0 0.0
  %3597 = vmatprep.subr.mxu0 0.0
  %3598 = vmatpush1.xpose.msra.mxu0 0.0
  %3599 = vmatprep.subr.mxu0 0.0
  %3600 = vmatpush1.xpose.msra.mxu0 0.0
  %3601 = vmatprep.subr.mxu0 0.0
  %3602 = vmatpush1.xpose.msra.mxu0 0.0
  %3603 = vmatprep.subr.mxu0 0.0
  %3604 = vmatpush1.xpose.msra.mxu0 0.0
  %3605 = vmatprep.subr.mxu0 0.0
  %3606 = vmatpush1.xpose.msra.mxu0 0.0
  %3607 = vmatprep.subr.mxu0 0.0
  %3608 = vmatpush1.xpose.msra.mxu0 0.0
  %3609 = vmatprep.subr.mxu0 0.0
  %3610 = vmatpush1.xpose.msra.mxu0 0.0
  %3611 = vmatprep.subr.mxu0 0.0
  %3612 = vmatpush1.xpose.msra.mxu0 0.0
  %3613 = vmatprep.subr.mxu0 0.0
  %3614 = vmatpush1.xpose.msra.mxu0 0.0
  %3615 = vmatprep.subr.mxu0 0.0
  %3616 = vmatpush1.xpose.msra.mxu0 0.0
  %3617 = vmatprep.subr.mxu0 0.0
  %3618 = vmatpush1.xpose.msra.mxu0 0.0
  %3619 = vmatprep.subr.mxu0 0.0
  %3620 = vmatpush1.xpose.msra.mxu0 0.0
  %3621 = vmatprep.subr.mxu0 0.0
  %3622 = vmatpush1.xpose.msra.mxu0 0.0
  %3623 = vmatprep.subr.mxu0 0.0
  %3624 = vmatpush1.xpose.msra.mxu0 0.0
  %3625 = vmatprep.subr.mxu0 0.0
  %3626 = vmatpush1.xpose.msra.mxu0 0.0
  %3627 = vmatprep.subr.mxu0 0.0
  %3628 = vmatpush1.xpose.msra.mxu0 0.0
  %3629 = vmatprep.subr.mxu0 0.0
  %3630 = vmatpush1.xpose.msra.mxu0 0.0
  %3631 = vmatprep.mubr.f32.mxu0 0.0
  %3632 = vmatmul.mubr.f32.gmra.mrb[0].mxu0 %v3556
  %v3633 = vpop.f32.mrb[0].mxu0
  %v3634 = vadd.f32 %v141, %v3633
  %v3635 = vpop.f32.mrb[0].mxu0
  %3636 = vmatprep.mubr.f32.mxu0 0.0
  %3637 = vmatmul.mubr.f32.gmra.mrb[0].mxu0 %v3559
  %v3638 = vpop.f32.mrb[0].mxu0
  %v3639 = vadd.f32 %v142, %v3638
  %v3640 = vpop.f32.mrb[0].mxu0
  %3641 = vdwg.mxu0
  %v3643 = vsel %vm1124, %v2785, 0
  %v3646 = vsel %vm1124, %v2790, 0
  %v3649 = vsel %vm1124, %v3085, 0
  %v3652 = vsel %vm1124, %v3090, 0
  %3654 = vmatprep.subr.mxu0 0.0
  %3655 = vmatpush1.xpose.msra.mxu0 %v3649
  %3656 = vmatprep.subr.mxu0 0.0
  %3657 = vmatpush1.xpose.msra.mxu0 %v3652
  %3658 = vmatprep.subr.mxu0 0.0
  %3659 = vmatpush1.xpose.msra.mxu0 0.0
  %3660 = vmatprep.subr.mxu0 0.0
  %3661 = vmatpush1.xpose.msra.mxu0 0.0
  %3662 = vmatprep.subr.mxu0 0.0
  %3663 = vmatpush1.xpose.msra.mxu0 0.0
  %3664 = vmatprep.subr.mxu0 0.0
  %3665 = vmatpush1.xpose.msra.mxu0 0.0
  %3666 = vmatprep.subr.mxu0 0.0
  %3667 = vmatpush1.xpose.msra.mxu0 0.0
  %3668 = vmatprep.subr.mxu0 0.0
  %3669 = vmatpush1.xpose.msra.mxu0 0.0
  %3670 = vmatprep.subr.mxu0 0.0
  %3671 = vmatpush1.xpose.msra.mxu0 0.0
  %3672 = vmatprep.subr.mxu0 0.0
  %3673 = vmatpush1.xpose.msra.mxu0 0.0
  %3674 = vmatprep.subr.mxu0 0.0
  %3675 = vmatpush1.xpose.msra.mxu0 0.0
  %3676 = vmatprep.subr.mxu0 0.0
  %3677 = vmatpush1.xpose.msra.mxu0 0.0
  %3678 = vmatprep.subr.mxu0 0.0
  %3679 = vmatpush1.xpose.msra.mxu0 0.0
  %3680 = vmatprep.subr.mxu0 0.0
  %3681 = vmatpush1.xpose.msra.mxu0 0.0
  %3682 = vmatprep.subr.mxu0 0.0
  %3683 = vmatpush1.xpose.msra.mxu0 0.0
  %3684 = vmatprep.subr.mxu0 0.0
  %3685 = vmatpush1.xpose.msra.mxu0 0.0
  %3686 = vmatprep.subr.mxu0 0.0
  %3687 = vmatpush1.xpose.msra.mxu0 0.0
  %3688 = vmatprep.subr.mxu0 0.0
  %3689 = vmatpush1.xpose.msra.mxu0 0.0
  %3690 = vmatprep.subr.mxu0 0.0
  %3691 = vmatpush1.xpose.msra.mxu0 0.0
  %3692 = vmatprep.subr.mxu0 0.0
  %3693 = vmatpush1.xpose.msra.mxu0 0.0
  %3694 = vmatprep.subr.mxu0 0.0
  %3695 = vmatpush1.xpose.msra.mxu0 0.0
  %3696 = vmatprep.subr.mxu0 0.0
  %3697 = vmatpush1.xpose.msra.mxu0 0.0
  %3698 = vmatprep.subr.mxu0 0.0
  %3699 = vmatpush1.xpose.msra.mxu0 0.0
  %3700 = vmatprep.subr.mxu0 0.0
  %3701 = vmatpush1.xpose.msra.mxu0 0.0
  %3702 = vmatprep.subr.mxu0 0.0
  %3703 = vmatpush1.xpose.msra.mxu0 0.0
  %3704 = vmatprep.subr.mxu0 0.0
  %3705 = vmatpush1.xpose.msra.mxu0 0.0
  %3706 = vmatprep.subr.mxu0 0.0
  %3707 = vmatpush1.xpose.msra.mxu0 0.0
  %3708 = vmatprep.subr.mxu0 0.0
  %3709 = vmatpush1.xpose.msra.mxu0 0.0
  %3710 = vmatprep.subr.mxu0 0.0
  %3711 = vmatpush1.xpose.msra.mxu0 0.0
  %3712 = vmatprep.subr.mxu0 0.0
  %3713 = vmatpush1.xpose.msra.mxu0 0.0
  %3714 = vmatprep.subr.mxu0 0.0
  %3715 = vmatpush1.xpose.msra.mxu0 0.0
  %3716 = vmatprep.subr.mxu0 0.0
  %3717 = vmatpush1.xpose.msra.mxu0 0.0
  %3718 = vmatprep.mubr.f32.mxu0 0.0
  %3719 = vmatmul.mubr.f32.gmra.mrb[0].mxu0 %v3643
  %v3720 = vpop.f32.mrb[0].mxu0
  %v3721 = vadd.f32 %v141, %v3720
  %v3722 = vpop.f32.mrb[0].mxu0
  %3723 = vmatprep.mubr.f32.mxu0 0.0
  %3724 = vmatmul.mubr.f32.gmra.mrb[0].mxu0 %v3646
  %v3725 = vpop.f32.mrb[0].mxu0
  %v3726 = vadd.f32 %v142, %v3725
  %v3727 = vpop.f32.mrb[0].mxu0
  %3728 = vdwg.mxu0
  %v3730 = vsel %vm1124, %v2860, 0
  %v3733 = vsel %vm1124, %v2865, 0
  %v3736 = vsel %vm1124, %v3160, 0
  %v3739 = vsel %vm1124, %v3165, 0
  %3741 = vmatprep.subr.mxu0 0.0
  %3742 = vmatpush1.xpose.msra.mxu0 %v3736
  %3743 = vmatprep.subr.mxu0 0.0
  %3744 = vmatpush1.xpose.msra.mxu0 %v3739
  %3745 = vmatprep.subr.mxu0 0.0
  %3746 = vmatpush1.xpose.msra.mxu0 0.0
  %3747 = vmatprep.subr.mxu0 0.0
  %3748 = vmatpush1.xpose.msra.mxu0 0.0
  %3749 = vmatprep.subr.mxu0 0.0
  %3750 = vmatpush1.xpose.msra.mxu0 0.0
  %3751 = vmatprep.subr.mxu0 0.0
  %3752 = vmatpush1.xpose.msra.mxu0 0.0
  %3753 = vmatprep.subr.mxu0 0.0
  %3754 = vmatpush1.xpose.msra.mxu0 0.0
  %3755 = vmatprep.subr.mxu0 0.0
  %3756 = vmatpush1.xpose.msra.mxu0 0.0
  %3757 = vmatprep.subr.mxu0 0.0
  %3758 = vmatpush1.xpose.msra.mxu0 0.0
  %3759 = vmatprep.subr.mxu0 0.0
  %3760 = vmatpush1.xpose.msra.mxu0 0.0
  %3761 = vmatprep.subr.mxu0 0.0
  %3762 = vmatpush1.xpose.msra.mxu0 0.0
  %3763 = vmatprep.subr.mxu0 0.0
  %3764 = vmatpush1.xpose.msra.mxu0 0.0
  %3765 = vmatprep.subr.mxu0 0.0
  %3766 = vmatpush1.xpose.msra.mxu0 0.0
  %3767 = vmatprep.subr.mxu0 0.0
  %3768 = vmatpush1.xpose.msra.mxu0 0.0
  %3769 = vmatprep.subr.mxu0 0.0
  %3770 = vmatpush1.xpose.msra.mxu0 0.0
  %3771 = vmatprep.subr.mxu0 0.0
  %3772 = vmatpush1.xpose.msra.mxu0 0.0
  %3773 = vmatprep.subr.mxu0 0.0
  %3774 = vmatpush1.xpose.msra.mxu0 0.0
  %3775 = vmatprep.subr.mxu0 0.0
  %3776 = vmatpush1.xpose.msra.mxu0 0.0
  %3777 = vmatprep.subr.mxu0 0.0
  %3778 = vmatpush1.xpose.msra.mxu0 0.0
  %3779 = vmatprep.subr.mxu0 0.0
  %3780 = vmatpush1.xpose.msra.mxu0 0.0
  %3781 = vmatprep.subr.mxu0 0.0
  %3782 = vmatpush1.xpose.msra.mxu0 0.0
  %3783 = vmatprep.subr.mxu0 0.0
  %3784 = vmatpush1.xpose.msra.mxu0 0.0
  %3785 = vmatprep.subr.mxu0 0.0
  %3786 = vmatpush1.xpose.msra.mxu0 0.0
  %3787 = vmatprep.subr.mxu0 0.0
  %3788 = vmatpush1.xpose.msra.mxu0 0.0
  %3789 = vmatprep.subr.mxu0 0.0
  %3790 = vmatpush1.xpose.msra.mxu0 0.0
  %3791 = vmatprep.subr.mxu0 0.0
  %3792 = vmatpush1.xpose.msra.mxu0 0.0
  %3793 = vmatprep.subr.mxu0 0.0
  %3794 = vmatpush1.xpose.msra.mxu0 0.0
  %3795 = vmatprep.subr.mxu0 0.0
  %3796 = vmatpush1.xpose.msra.mxu0 0.0
  %3797 = vmatprep.subr.mxu0 0.0
  %3798 = vmatpush1.xpose.msra.mxu0 0.0
  %3799 = vmatprep.subr.mxu0 0.0
  %3800 = vmatpush1.xpose.msra.mxu0 0.0
  %3801 = vmatprep.subr.mxu0 0.0
  %3802 = vmatpush1.xpose.msra.mxu0 0.0
  %3803 = vmatprep.subr.mxu0 0.0
  %3804 = vmatpush1.xpose.msra.mxu0 0.0
  %3805 = vmatprep.mubr.f32.mxu0 0.0
  %3806 = vmatmul.mubr.f32.gmra.mrb[0].mxu0 %v3730
  %v3807 = vpop.f32.mrb[0].mxu0
  %v3808 = vadd.f32 %v141, %v3807
  %v3809 = vpop.f32.mrb[0].mxu0
  %3810 = vmatprep.mubr.f32.mxu0 0.0
  %3811 = vmatmul.mubr.f32.gmra.mrb[0].mxu0 %v3733
  %v3812 = vpop.f32.mrb[0].mxu0
  %v3813 = vadd.f32 %v142, %v3812
  %v3814 = vpop.f32.mrb[0].mxu0
  %3815 = vdwg.mxu0
  %v3816 = vsel %vm1473, %v3547, -inf
  %3817 = vmax.xlane.f32.xlu0 %v3816
  %v3818 = vpop.xlane.xlu0 %3817
  %v3819 = vsel %vm1473, %v3552, -inf
  %3820 = vmax.xlane.f32.xlu0 %v3819
  %v3821 = vpop.xlane.xlu0 %3820
  %v3822 = vsel %vm1473, %v3634, -inf
  %3823 = vmax.xlane.f32.xlu0 %v3822
  %v3824 = vpop.xlane.xlu0 %3823
  %v3825 = vsel %vm1473, %v3639, -inf
  %3826 = vmax.xlane.f32.xlu0 %v3825
  %v3827 = vpop.xlane.xlu0 %3826
  %v3828 = vsel %vm1473, %v3721, -inf
  %3829 = vmax.xlane.f32.xlu0 %v3828
  %v3830 = vpop.xlane.xlu0 %3829
  %v3831 = vsel %vm1473, %v3726, -inf
  %3832 = vmax.xlane.f32.xlu0 %v3831
  %v3833 = vpop.xlane.xlu0 %3832
  %v3834 = vsel %vm1473, %v3808, -inf
  %3835 = vmax.xlane.f32.xlu0 %v3834
  %v3836 = vpop.xlane.xlu0 %3835
  %v3837 = vsel %vm1473, %v3813, -inf
  %3838 = vmax.xlane.f32.xlu0 %v3837
  %v3839 = vpop.xlane.xlu0 %3838
  %v3840 = vsub.f32 %v3547, %v3818
  %v3841 = vsub.f32 %v3552, %v3821
  %v3842 = vsub.f32 %v3634, %v3824
  %v3843 = vsub.f32 %v3639, %v3827
  %v3844 = vsub.f32 %v3721, %v3830
  %v3845 = vsub.f32 %v3726, %v3833
  %v3846 = vsub.f32 %v3808, %v3836
  %v3847 = vsub.f32 %v3813, %v3839
  %v3848 = vmul.f32 %v3840, 1.442695
  %v3849 = vpow.pop %v3848
  %v3850 = vmul.f32 %v3841, 1.442695
  %v3851 = vpow.pop %v3850
  %v3852 = vmul.f32 %v3842, 1.442695
  %v3853 = vpow.pop %v3852
  %v3854 = vmul.f32 %v3843, 1.442695
  %v3855 = vpow.pop %v3854
  %v3856 = vmul.f32 %v3844, 1.442695
  %v3857 = vpow.pop %v3856
  %v3858 = vmul.f32 %v3845, 1.442695
  %v3859 = vpow.pop %v3858
  %v3860 = vmul.f32 %v3846, 1.442695
  %v3861 = vpow.pop %v3860
  %v3862 = vmul.f32 %v3847, 1.442695
  %v3863 = vpow.pop %v3862
  %v3864 = vsel %vm1473, %v3849, 0.0
  %3865 = vadd.xlane.f32.xlu0 %v3864
  %v3866 = vpop.xlane.xlu0 %3865
  %v3867 = vsel %vm1473, %v3851, 0.0
  %3868 = vadd.xlane.f32.xlu0 %v3867
  %v3869 = vpop.xlane.xlu0 %3868
  %v3870 = vsel %vm1473, %v3853, 0.0
  %3871 = vadd.xlane.f32.xlu0 %v3870
  %v3872 = vpop.xlane.xlu0 %3871
  %v3873 = vsel %vm1473, %v3855, 0.0
  %3874 = vadd.xlane.f32.xlu0 %v3873
  %v3875 = vpop.xlane.xlu0 %3874
  %v3876 = vsel %vm1473, %v3857, 0.0
  %3877 = vadd.xlane.f32.xlu0 %v3876
  %v3878 = vpop.xlane.xlu0 %3877
  %v3879 = vsel %vm1473, %v3859, 0.0
  %3880 = vadd.xlane.f32.xlu0 %v3879
  %v3881 = vpop.xlane.xlu0 %3880
  %v3882 = vsel %vm1473, %v3861, 0.0
  %3883 = vadd.xlane.f32.xlu0 %v3882
  %v3884 = vpop.xlane.xlu0 %3883
  %v3885 = vsel %vm1473, %v3863, 0.0
  %3886 = vadd.xlane.f32.xlu0 %v3885
  %v3887 = vpop.xlane.xlu0 %3886
  %v3888 = vrcp.pop %v3866
  %v3889 = vrcp.pop %v3869
  %v3890 = vrcp.pop %v3872
  %v3891 = vrcp.pop %v3875
  %v3892 = vrcp.pop %v3878
  %v3893 = vrcp.pop %v3881
  %v3894 = vrcp.pop %v3884
  %v3895 = vrcp.pop %v3887
  %v3896 = vmul.f32 %v3849, %v3888
  %v3897 = vmul.f32 %v3851, %v3889
  %v3898 = vmul.f32 %v3853, %v3890
  %v3899 = vmul.f32 %v3855, %v3891
  %v3900 = vmul.f32 %v3857, %v3892
  %v3901 = vmul.f32 %v3859, %v3893
  %v3902 = vmul.f32 %v3861, %v3894
  %v3903 = vmul.f32 %v3863, %v3895
  %v3905 = vsel %vm1473, %v3896, 0
  %v3908 = vsel %vm1473, %v3897, 0
  %3910 = vmatprep.subr.mxu0 0.0
  %3911 = vmatpush1.msra.mxu0 %v3235
  %3912 = vmatprep.subr.mxu0 0.0
  %3913 = vmatpush1.msra.mxu0 %v3240
  %3914 = vmatprep.subr.mxu0 0.0
  %3915 = vmatpush1.msra.mxu0 0.0
  %3916 = vmatprep.subr.mxu0 0.0
  %3917 = vmatpush1.msra.mxu0 0.0
  %3918 = vmatprep.subr.mxu0 0.0
  %3919 = vmatpush1.msra.mxu0 0.0
  %3920 = vmatprep.subr.mxu0 0.0
  %3921 = vmatpush1.msra.mxu0 0.0
  %3922 = vmatprep.subr.mxu0 0.0
  %3923 = vmatpush1.msra.mxu0 0.0
  %3924 = vmatprep.subr.mxu0 0.0
  %3925 = vmatpush1.msra.mxu0 0.0
  %3926 = vmatprep.subr.mxu0 0.0
  %3927 = vmatpush1.msra.mxu0 0.0
  %3928 = vmatprep.subr.mxu0 0.0
  %3929 = vmatpush1.msra.mxu0 0.0
  %3930 = vmatprep.subr.mxu0 0.0
  %3931 = vmatpush1.msra.mxu0 0.0
  %3932 = vmatprep.subr.mxu0 0.0
  %3933 = vmatpush1.msra.mxu0 0.0
  %3934 = vmatprep.subr.mxu0 0.0
  %3935 = vmatpush1.msra.mxu0 0.0
  %3936 = vmatprep.subr.mxu0 0.0
  %3937 = vmatpush1.msra.mxu0 0.0
  %3938 = vmatprep.subr.mxu0 0.0
  %3939 = vmatpush1.msra.mxu0 0.0
  %3940 = vmatprep.subr.mxu0 0.0
  %3941 = vmatpush1.msra.mxu0 0.0
  %3942 = vmatprep.subr.mxu0 0.0
  %3943 = vmatpush1.msra.mxu0 0.0
  %3944 = vmatprep.subr.mxu0 0.0
  %3945 = vmatpush1.msra.mxu0 0.0
  %3946 = vmatprep.subr.mxu0 0.0
  %3947 = vmatpush1.msra.mxu0 0.0
  %3948 = vmatprep.subr.mxu0 0.0
  %3949 = vmatpush1.msra.mxu0 0.0
  %3950 = vmatprep.subr.mxu0 0.0
  %3951 = vmatpush1.msra.mxu0 0.0
  %3952 = vmatprep.subr.mxu0 0.0
  %3953 = vmatpush1.msra.mxu0 0.0
  %3954 = vmatprep.subr.mxu0 0.0
  %3955 = vmatpush1.msra.mxu0 0.0
  %3956 = vmatprep.subr.mxu0 0.0
  %3957 = vmatpush1.msra.mxu0 0.0
  %3958 = vmatprep.subr.mxu0 0.0
  %3959 = vmatpush1.msra.mxu0 0.0
  %3960 = vmatprep.subr.mxu0 0.0
  %3961 = vmatpush1.msra.mxu0 0.0
  %3962 = vmatprep.subr.mxu0 0.0
  %3963 = vmatpush1.msra.mxu0 0.0
  %3964 = vmatprep.subr.mxu0 0.0
  %3965 = vmatpush1.msra.mxu0 0.0
  %3966 = vmatprep.subr.mxu0 0.0
  %3967 = vmatpush1.msra.mxu0 0.0
  %3968 = vmatprep.subr.mxu0 0.0
  %3969 = vmatpush1.msra.mxu0 0.0
  %3970 = vmatprep.subr.mxu0 0.0
  %3971 = vmatpush1.msra.mxu0 0.0
  %3972 = vmatprep.subr.mxu0 0.0
  %3973 = vmatpush1.msra.mxu0 0.0
  %3974 = vmatprep.mubr.f32.mxu0 0.0
  %3975 = vmatmul.mubr.f32.gmra.mrb[0].mxu0 %v3905
  %v3976 = vpop.f32.mrb[0].mxu0
  %v3977 = vadd.f32 0.0, %v3976
  %v3978 = vpop.f32.mrb[0].mxu0
  %3979 = vmatprep.mubr.f32.mxu0 0.0
  %3980 = vmatmul.mubr.f32.gmra.mrb[0].mxu0 %v3908
  %v3981 = vpop.f32.mrb[0].mxu0
  %v3982 = vadd.f32 0.0, %v3981
  %v3983 = vpop.f32.mrb[0].mxu0
  %3984 = vdwg.mxu0
  %v3986 = vsel %vm1473, %v3898, 0
  %v3989 = vsel %vm1473, %v3899, 0
  %3991 = vmatprep.subr.mxu0 0.0
  %3992 = vmatpush1.msra.mxu0 %v3310
  %3993 = vmatprep.subr.mxu0 0.0
  %3994 = vmatpush1.msra.mxu0 %v3315
  %3995 = vmatprep.subr.mxu0 0.0
  %3996 = vmatpush1.msra.mxu0 0.0
  %3997 = vmatprep.subr.mxu0 0.0
  %3998 = vmatpush1.msra.mxu0 0.0
  %3999 = vmatprep.subr.mxu0 0.0
  %4000 = vmatpush1.msra.mxu0 0.0
  %4001 = vmatprep.subr.mxu0 0.0
  %4002 = vmatpush1.msra.mxu0 0.0
  %4003 = vmatprep.subr.mxu0 0.0
  %4004 = vmatpush1.msra.mxu0 0.0
  %4005 = vmatprep.subr.mxu0 0.0
  %4006 = vmatpush1.msra.mxu0 0.0
  %4007 = vmatprep.subr.mxu0 0.0
  %4008 = vmatpush1.msra.mxu0 0.0
  %4009 = vmatprep.subr.mxu0 0.0
  %4010 = vmatpush1.msra.mxu0 0.0
  %4011 = vmatprep.subr.mxu0 0.0
  %4012 = vmatpush1.msra.mxu0 0.0
  %4013 = vmatprep.subr.mxu0 0.0
  %4014 = vmatpush1.msra.mxu0 0.0
  %4015 = vmatprep.subr.mxu0 0.0
  %4016 = vmatpush1.msra.mxu0 0.0
  %4017 = vmatprep.subr.mxu0 0.0
  %4018 = vmatpush1.msra.mxu0 0.0
  %4019 = vmatprep.subr.mxu0 0.0
  %4020 = vmatpush1.msra.mxu0 0.0
  %4021 = vmatprep.subr.mxu0 0.0
  %4022 = vmatpush1.msra.mxu0 0.0
  %4023 = vmatprep.subr.mxu0 0.0
  %4024 = vmatpush1.msra.mxu0 0.0
  %4025 = vmatprep.subr.mxu0 0.0
  %4026 = vmatpush1.msra.mxu0 0.0
  %4027 = vmatprep.subr.mxu0 0.0
  %4028 = vmatpush1.msra.mxu0 0.0
  %4029 = vmatprep.subr.mxu0 0.0
  %4030 = vmatpush1.msra.mxu0 0.0
  %4031 = vmatprep.subr.mxu0 0.0
  %4032 = vmatpush1.msra.mxu0 0.0
  %4033 = vmatprep.subr.mxu0 0.0
  %4034 = vmatpush1.msra.mxu0 0.0
  %4035 = vmatprep.subr.mxu0 0.0
  %4036 = vmatpush1.msra.mxu0 0.0
  %4037 = vmatprep.subr.mxu0 0.0
  %4038 = vmatpush1.msra.mxu0 0.0
  %4039 = vmatprep.subr.mxu0 0.0
  %4040 = vmatpush1.msra.mxu0 0.0
  %4041 = vmatprep.subr.mxu0 0.0
  %4042 = vmatpush1.msra.mxu0 0.0
  %4043 = vmatprep.subr.mxu0 0.0
  %4044 = vmatpush1.msra.mxu0 0.0
  %4045 = vmatprep.subr.mxu0 0.0
  %4046 = vmatpush1.msra.mxu0 0.0
  %4047 = vmatprep.subr.mxu0 0.0
  %4048 = vmatpush1.msra.mxu0 0.0
  %4049 = vmatprep.subr.mxu0 0.0
  %4050 = vmatpush1.msra.mxu0 0.0
  %4051 = vmatprep.subr.mxu0 0.0
  %4052 = vmatpush1.msra.mxu0 0.0
  %4053 = vmatprep.subr.mxu0 0.0
  %4054 = vmatpush1.msra.mxu0 0.0
  %4055 = vmatprep.mubr.f32.mxu0 0.0
  %4056 = vmatmul.mubr.f32.gmra.mrb[0].mxu0 %v3986
  %v4057 = vpop.f32.mrb[0].mxu0
  %v4058 = vadd.f32 0.0, %v4057
  %v4059 = vpop.f32.mrb[0].mxu0
  %4060 = vmatprep.mubr.f32.mxu0 0.0
  %4061 = vmatmul.mubr.f32.gmra.mrb[0].mxu0 %v3989
  %v4062 = vpop.f32.mrb[0].mxu0
  %v4063 = vadd.f32 0.0, %v4062
  %v4064 = vpop.f32.mrb[0].mxu0
  %4065 = vdwg.mxu0
  %v4067 = vsel %vm1473, %v3900, 0
  %v4070 = vsel %vm1473, %v3901, 0
  %4072 = vmatprep.subr.mxu0 0.0
  %4073 = vmatpush1.msra.mxu0 %v3385
  %4074 = vmatprep.subr.mxu0 0.0
  %4075 = vmatpush1.msra.mxu0 %v3390
  %4076 = vmatprep.subr.mxu0 0.0
  %4077 = vmatpush1.msra.mxu0 0.0
  %4078 = vmatprep.subr.mxu0 0.0
  %4079 = vmatpush1.msra.mxu0 0.0
  %4080 = vmatprep.subr.mxu0 0.0
  %4081 = vmatpush1.msra.mxu0 0.0
  %4082 = vmatprep.subr.mxu0 0.0
  %4083 = vmatpush1.msra.mxu0 0.0
  %4084 = vmatprep.subr.mxu0 0.0
  %4085 = vmatpush1.msra.mxu0 0.0
  %4086 = vmatprep.subr.mxu0 0.0
  %4087 = vmatpush1.msra.mxu0 0.0
  %4088 = vmatprep.subr.mxu0 0.0
  %4089 = vmatpush1.msra.mxu0 0.0
  %4090 = vmatprep.subr.mxu0 0.0
  %4091 = vmatpush1.msra.mxu0 0.0
  %4092 = vmatprep.subr.mxu0 0.0
  %4093 = vmatpush1.msra.mxu0 0.0
  %4094 = vmatprep.subr.mxu0 0.0
  %4095 = vmatpush1.msra.mxu0 0.0
  %4096 = vmatprep.subr.mxu0 0.0
  %4097 = vmatpush1.msra.mxu0 0.0
  %4098 = vmatprep.subr.mxu0 0.0
  %4099 = vmatpush1.msra.mxu0 0.0
  %4100 = vmatprep.subr.mxu0 0.0
  %4101 = vmatpush1.msra.mxu0 0.0
  %4102 = vmatprep.subr.mxu0 0.0
  %4103 = vmatpush1.msra.mxu0 0.0
  %4104 = vmatprep.subr.mxu0 0.0
  %4105 = vmatpush1.msra.mxu0 0.0
  %4106 = vmatprep.subr.mxu0 0.0
  %4107 = vmatpush1.msra.mxu0 0.0
  %4108 = vmatprep.subr.mxu0 0.0
  %4109 = vmatpush1.msra.mxu0 0.0
  %4110 = vmatprep.subr.mxu0 0.0
  %4111 = vmatpush1.msra.mxu0 0.0
  %4112 = vmatprep.subr.mxu0 0.0
  %4113 = vmatpush1.msra.mxu0 0.0
  %4114 = vmatprep.subr.mxu0 0.0
  %4115 = vmatpush1.msra.mxu0 0.0
  %4116 = vmatprep.subr.mxu0 0.0
  %4117 = vmatpush1.msra.mxu0 0.0
  %4118 = vmatprep.subr.mxu0 0.0
  %4119 = vmatpush1.msra.mxu0 0.0
  %4120 = vmatprep.subr.mxu0 0.0
  %4121 = vmatpush1.msra.mxu0 0.0
  %4122 = vmatprep.subr.mxu0 0.0
  %4123 = vmatpush1.msra.mxu0 0.0
  %4124 = vmatprep.subr.mxu0 0.0
  %4125 = vmatpush1.msra.mxu0 0.0
  %4126 = vmatprep.subr.mxu0 0.0
  %4127 = vmatpush1.msra.mxu0 0.0
  %4128 = vmatprep.subr.mxu0 0.0
  %4129 = vmatpush1.msra.mxu0 0.0
  %4130 = vmatprep.subr.mxu0 0.0
  %4131 = vmatpush1.msra.mxu0 0.0
  %4132 = vmatprep.subr.mxu0 0.0
  %4133 = vmatpush1.msra.mxu0 0.0
  %4134 = vmatprep.subr.mxu0 0.0
  %4135 = vmatpush1.msra.mxu0 0.0
  %4136 = vmatprep.mubr.f32.mxu0 0.0
  %4137 = vmatmul.mubr.f32.gmra.mrb[0].mxu0 %v4067
  %v4138 = vpop.f32.mrb[0].mxu0
  %v4139 = vadd.f32 0.0, %v4138
  %v4140 = vpop.f32.mrb[0].mxu0
  %4141 = vmatprep.mubr.f32.mxu0 0.0
  %4142 = vmatmul.mubr.f32.gmra.mrb[0].mxu0 %v4070
  %v4143 = vpop.f32.mrb[0].mxu0
  %v4144 = vadd.f32 0.0, %v4143
  %v4145 = vpop.f32.mrb[0].mxu0
  %4146 = vdwg.mxu0
  %v4148 = vsel %vm1473, %v3902, 0
  %v4151 = vsel %vm1473, %v3903, 0
  %4153 = vmatprep.subr.mxu0 0.0
  %4154 = vmatpush1.msra.mxu0 %v3460
  %4155 = vmatprep.subr.mxu0 0.0
  %4156 = vmatpush1.msra.mxu0 %v3465
  %4157 = vmatprep.subr.mxu0 0.0
  %4158 = vmatpush1.msra.mxu0 0.0
  %4159 = vmatprep.subr.mxu0 0.0
  %4160 = vmatpush1.msra.mxu0 0.0
  %4161 = vmatprep.subr.mxu0 0.0
  %4162 = vmatpush1.msra.mxu0 0.0
  %4163 = vmatprep.subr.mxu0 0.0
  %4164 = vmatpush1.msra.mxu0 0.0
  %4165 = vmatprep.subr.mxu0 0.0
  %4166 = vmatpush1.msra.mxu0 0.0
  %4167 = vmatprep.subr.mxu0 0.0
  %4168 = vmatpush1.msra.mxu0 0.0
  %4169 = vmatprep.subr.mxu0 0.0
  %4170 = vmatpush1.msra.mxu0 0.0
  %4171 = vmatprep.subr.mxu0 0.0
  %4172 = vmatpush1.msra.mxu0 0.0
  %4173 = vmatprep.subr.mxu0 0.0
  %4174 = vmatpush1.msra.mxu0 0.0
  %4175 = vmatprep.subr.mxu0 0.0
  %4176 = vmatpush1.msra.mxu0 0.0
  %4177 = vmatprep.subr.mxu0 0.0
  %4178 = vmatpush1.msra.mxu0 0.0
  %4179 = vmatprep.subr.mxu0 0.0
  %4180 = vmatpush1.msra.mxu0 0.0
  %4181 = vmatprep.subr.mxu0 0.0
  %4182 = vmatpush1.msra.mxu0 0.0
  %4183 = vmatprep.subr.mxu0 0.0
  %4184 = vmatpush1.msra.mxu0 0.0
  %4185 = vmatprep.subr.mxu0 0.0
  %4186 = vmatpush1.msra.mxu0 0.0
  %4187 = vmatprep.subr.mxu0 0.0
  %4188 = vmatpush1.msra.mxu0 0.0
  %4189 = vmatprep.subr.mxu0 0.0
  %4190 = vmatpush1.msra.mxu0 0.0
  %4191 = vmatprep.subr.mxu0 0.0
  %4192 = vmatpush1.msra.mxu0 0.0
  %4193 = vmatprep.subr.mxu0 0.0
  %4194 = vmatpush1.msra.mxu0 0.0
  %4195 = vmatprep.subr.mxu0 0.0
  %4196 = vmatpush1.msra.mxu0 0.0
  %4197 = vmatprep.subr.mxu0 0.0
  %4198 = vmatpush1.msra.mxu0 0.0
  %4199 = vmatprep.subr.mxu0 0.0
  %4200 = vmatpush1.msra.mxu0 0.0
  %4201 = vmatprep.subr.mxu0 0.0
  %4202 = vmatpush1.msra.mxu0 0.0
  %4203 = vmatprep.subr.mxu0 0.0
  %4204 = vmatpush1.msra.mxu0 0.0
  %4205 = vmatprep.subr.mxu0 0.0
  %4206 = vmatpush1.msra.mxu0 0.0
  %4207 = vmatprep.subr.mxu0 0.0
  %4208 = vmatpush1.msra.mxu0 0.0
  %4209 = vmatprep.subr.mxu0 0.0
  %4210 = vmatpush1.msra.mxu0 0.0
  %4211 = vmatprep.subr.mxu0 0.0
  %4212 = vmatpush1.msra.mxu0 0.0
  %4213 = vmatprep.subr.mxu0 0.0
  %4214 = vmatpush1.msra.mxu0 0.0
  %4215 = vmatprep.subr.mxu0 0.0
  %4216 = vmatpush1.msra.mxu0 0.0
  %4217 = vmatprep.mubr.f32.mxu0 0.0
  %4218 = vmatmul.mubr.f32.gmra.mrb[0].mxu0 %v4148
  %v4219 = vpop.f32.mrb[0].mxu0
  %v4220 = vadd.f32 0.0, %v4219
  %v4221 = vpop.f32.mrb[0].mxu0
  %4222 = vmatprep.mubr.f32.mxu0 0.0
  %4223 = vmatmul.mubr.f32.gmra.mrb[0].mxu0 %v4151
  %v4224 = vpop.f32.mrb[0].mxu0
  %v4225 = vadd.f32 0.0, %v4224
  %v4226 = vpop.f32.mrb[0].mxu0
  %4227 = vdwg.mxu0
  %v4229 = vsel %vm1124, %v3977, 0
  %v4232 = vsel %vm1124, %v3982, 0
  %4234 = vmatprep.subr.mxu0 0.0
  %4235 = vmatpush1.msra.mxu0 %v2549
  %4236 = vmatprep.subr.mxu0 0.0
  %4237 = vmatpush1.msra.mxu0 0.0
  %4238 = vmatprep.subr.mxu0 0.0
  %4239 = vmatpush1.msra.mxu0 0.0
  %4240 = vmatprep.subr.mxu0 0.0
  %4241 = vmatpush1.msra.mxu0 0.0
  %4242 = vmatprep.subr.mxu0 0.0
  %4243 = vmatpush1.msra.mxu0 0.0
  %4244 = vmatprep.subr.mxu0 0.0
  %4245 = vmatpush1.msra.mxu0 0.0
  %4246 = vmatprep.subr.mxu0 0.0
  %4247 = vmatpush1.msra.mxu0 0.0
  %4248 = vmatprep.subr.mxu0 0.0
  %4249 = vmatpush1.msra.mxu0 0.0
  %4250 = vmatprep.subr.mxu0 0.0
  %4251 = vmatpush1.msra.mxu0 0.0
  %4252 = vmatprep.subr.mxu0 0.0
  %4253 = vmatpush1.msra.mxu0 0.0
  %4254 = vmatprep.subr.mxu0 0.0
  %4255 = vmatpush1.msra.mxu0 0.0
  %4256 = vmatprep.subr.mxu0 0.0
  %4257 = vmatpush1.msra.mxu0 0.0
  %4258 = vmatprep.subr.mxu0 0.0
  %4259 = vmatpush1.msra.mxu0 0.0
  %4260 = vmatprep.subr.mxu0 0.0
  %4261 = vmatpush1.msra.mxu0 0.0
  %4262 = vmatprep.subr.mxu0 0.0
  %4263 = vmatpush1.msra.mxu0 0.0
  %4264 = vmatprep.subr.mxu0 0.0
  %4265 = vmatpush1.msra.mxu0 0.0
  %4266 = vmatprep.subr.mxu0 0.0
  %4267 = vmatpush1.msra.mxu0 0.0
  %4268 = vmatprep.subr.mxu0 0.0
  %4269 = vmatpush1.msra.mxu0 0.0
  %4270 = vmatprep.subr.mxu0 0.0
  %4271 = vmatpush1.msra.mxu0 0.0
  %4272 = vmatprep.subr.mxu0 0.0
  %4273 = vmatpush1.msra.mxu0 0.0
  %4274 = vmatprep.subr.mxu0 0.0
  %4275 = vmatpush1.msra.mxu0 0.0
  %4276 = vmatprep.subr.mxu0 0.0
  %4277 = vmatpush1.msra.mxu0 0.0
  %4278 = vmatprep.subr.mxu0 0.0
  %4279 = vmatpush1.msra.mxu0 0.0
  %4280 = vmatprep.subr.mxu0 0.0
  %4281 = vmatpush1.msra.mxu0 0.0
  %4282 = vmatprep.subr.mxu0 0.0
  %4283 = vmatpush1.msra.mxu0 0.0
  %4284 = vmatprep.subr.mxu0 0.0
  %4285 = vmatpush1.msra.mxu0 0.0
  %4286 = vmatprep.subr.mxu0 0.0
  %4287 = vmatpush1.msra.mxu0 0.0
  %4288 = vmatprep.subr.mxu0 0.0
  %4289 = vmatpush1.msra.mxu0 0.0
  %4290 = vmatprep.subr.mxu0 0.0
  %4291 = vmatpush1.msra.mxu0 0.0
  %4292 = vmatprep.subr.mxu0 0.0
  %4293 = vmatpush1.msra.mxu0 0.0
  %4294 = vmatprep.subr.mxu0 0.0
  %4295 = vmatpush1.msra.mxu0 0.0
  %4296 = vmatprep.subr.mxu0 0.0
  %4297 = vmatpush1.msra.mxu0 0.0
  %4298 = vmatprep.mubr.f32.mxu0 0.0
  %4299 = vmatmul.mubr.f32.gmra.mrb[0].mxu0 %v4229
  %v4300 = vpop.f32.mrb[0].mxu0
  %v4301 = vadd.f32 0.0, %v4300
  %v4302 = vpop.f32.mrb[0].mxu0
  %4303 = vmatprep.mubr.f32.mxu0 0.0
  %4304 = vmatmul.mubr.f32.gmra.mrb[0].mxu0 %v4232
  %v4305 = vpop.f32.mrb[0].mxu0
  %v4306 = vadd.f32 0.0, %v4305
  %v4307 = vpop.f32.mrb[0].mxu0
  %4308 = vdwg.mxu0
  %v4310 = vsel %vm1124, %v4058, 0
  %v4313 = vsel %vm1124, %v4063, 0
  %4315 = vmatprep.subr.mxu0 0.0
  %4316 = vmatpush1.msra.mxu0 %v2550
  %4317 = vmatprep.subr.mxu0 0.0
  %4318 = vmatpush1.msra.mxu0 0.0
  %4319 = vmatprep.subr.mxu0 0.0
  %4320 = vmatpush1.msra.mxu0 0.0
  %4321 = vmatprep.subr.mxu0 0.0
  %4322 = vmatpush1.msra.mxu0 0.0
  %4323 = vmatprep.subr.mxu0 0.0
  %4324 = vmatpush1.msra.mxu0 0.0
  %4325 = vmatprep.subr.mxu0 0.0
  %4326 = vmatpush1.msra.mxu0 0.0
  %4327 = vmatprep.subr.mxu0 0.0
  %4328 = vmatpush1.msra.mxu0 0.0
  %4329 = vmatprep.subr.mxu0 0.0
  %4330 = vmatpush1.msra.mxu0 0.0
  %4331 = vmatprep.subr.mxu0 0.0
  %4332 = vmatpush1.msra.mxu0 0.0
  %4333 = vmatprep.subr.mxu0 0.0
  %4334 = vmatpush1.msra.mxu0 0.0
  %4335 = vmatprep.subr.mxu0 0.0
  %4336 = vmatpush1.msra.mxu0 0.0
  %4337 = vmatprep.subr.mxu0 0.0
  %4338 = vmatpush1.msra.mxu0 0.0
  %4339 = vmatprep.subr.mxu0 0.0
  %4340 = vmatpush1.msra.mxu0 0.0
  %4341 = vmatprep.subr.mxu0 0.0
  %4342 = vmatpush1.msra.mxu0 0.0
  %4343 = vmatprep.subr.mxu0 0.0
  %4344 = vmatpush1.msra.mxu0 0.0
  %4345 = vmatprep.subr.mxu0 0.0
  %4346 = vmatpush1.msra.mxu0 0.0
  %4347 = vmatprep.subr.mxu0 0.0
  %4348 = vmatpush1.msra.mxu0 0.0
  %4349 = vmatprep.subr.mxu0 0.0
  %4350 = vmatpush1.msra.mxu0 0.0
  %4351 = vmatprep.subr.mxu0 0.0
  %4352 = vmatpush1.msra.mxu0 0.0
  %4353 = vmatprep.subr.mxu0 0.0
  %4354 = vmatpush1.msra.mxu0 0.0
  %4355 = vmatprep.subr.mxu0 0.0
  %4356 = vmatpush1.msra.mxu0 0.0
  %4357 = vmatprep.subr.mxu0 0.0
  %4358 = vmatpush1.msra.mxu0 0.0
  %4359 = vmatprep.subr.mxu0 0.0
  %4360 = vmatpush1.msra.mxu0 0.0
  %4361 = vmatprep.subr.mxu0 0.0
  %4362 = vmatpush1.msra.mxu0 0.0
  %4363 = vmatprep.subr.mxu0 0.0
  %4364 = vmatpush1.msra.mxu0 0.0
  %4365 = vmatprep.subr.mxu0 0.0
  %4366 = vmatpush1.msra.mxu0 0.0
  %4367 = vmatprep.subr.mxu0 0.0
  %4368 = vmatpush1.msra.mxu0 0.0
  %4369 = vmatprep.subr.mxu0 0.0
  %4370 = vmatpush1.msra.mxu0 0.0
  %4371 = vmatprep.subr.mxu0 0.0
  %4372 = vmatpush1.msra.mxu0 0.0
  %4373 = vmatprep.subr.mxu0 0.0
  %4374 = vmatpush1.msra.mxu0 0.0
  %4375 = vmatprep.subr.mxu0 0.0
  %4376 = vmatpush1.msra.mxu0 0.0
  %4377 = vmatprep.subr.mxu0 0.0
  %4378 = vmatpush1.msra.mxu0 0.0
  %4379 = vmatprep.mubr.f32.mxu0 0.0
  %4380 = vmatmul.mubr.f32.gmra.mrb[0].mxu0 %v4310
  %v4381 = vpop.f32.mrb[0].mxu0
  %v4382 = vadd.f32 0.0, %v4381
  %v4383 = vpop.f32.mrb[0].mxu0
  %4384 = vmatprep.mubr.f32.mxu0 0.0
  %4385 = vmatmul.mubr.f32.gmra.mrb[0].mxu0 %v4313
  %v4386 = vpop.f32.mrb[0].mxu0
  %v4387 = vadd.f32 0.0, %v4386
  %v4388 = vpop.f32.mrb[0].mxu0
  %4389 = vdwg.mxu0
  %v4391 = vsel %vm1124, %v4139, 0
  %v4394 = vsel %vm1124, %v4144, 0
  %4396 = vmatprep.subr.mxu0 0.0
  %4397 = vmatpush1.msra.mxu0 %v2551
  %4398 = vmatprep.subr.mxu0 0.0
  %4399 = vmatpush1.msra.mxu0 0.0
  %4400 = vmatprep.subr.mxu0 0.0
  %4401 = vmatpush1.msra.mxu0 0.0
  %4402 = vmatprep.subr.mxu0 0.0
  %4403 = vmatpush1.msra.mxu0 0.0
  %4404 = vmatprep.subr.mxu0 0.0
  %4405 = vmatpush1.msra.mxu0 0.0
  %4406 = vmatprep.subr.mxu0 0.0
  %4407 = vmatpush1.msra.mxu0 0.0
  %4408 = vmatprep.subr.mxu0 0.0
  %4409 = vmatpush1.msra.mxu0 0.0
  %4410 = vmatprep.subr.mxu0 0.0
  %4411 = vmatpush1.msra.mxu0 0.0
  %4412 = vmatprep.subr.mxu0 0.0
  %4413 = vmatpush1.msra.mxu0 0.0
  %4414 = vmatprep.subr.mxu0 0.0
  %4415 = vmatpush1.msra.mxu0 0.0
  %4416 = vmatprep.subr.mxu0 0.0
  %4417 = vmatpush1.msra.mxu0 0.0
  %4418 = vmatprep.subr.mxu0 0.0
  %4419 = vmatpush1.msra.mxu0 0.0
  %4420 = vmatprep.subr.mxu0 0.0
  %4421 = vmatpush1.msra.mxu0 0.0
  %4422 = vmatprep.subr.mxu0 0.0
  %4423 = vmatpush1.msra.mxu0 0.0
  %4424 = vmatprep.subr.mxu0 0.0
  %4425 = vmatpush1.msra.mxu0 0.0
  %4426 = vmatprep.subr.mxu0 0.0
  %4427 = vmatpush1.msra.mxu0 0.0
  %4428 = vmatprep.subr.mxu0 0.0
  %4429 = vmatpush1.msra.mxu0 0.0
  %4430 = vmatprep.subr.mxu0 0.0
  %4431 = vmatpush1.msra.mxu0 0.0
  %4432 = vmatprep.subr.mxu0 0.0
  %4433 = vmatpush1.msra.mxu0 0.0
  %4434 = vmatprep.subr.mxu0 0.0
  %4435 = vmatpush1.msra.mxu0 0.0
  %4436 = vmatprep.subr.mxu0 0.0
  %4437 = vmatpush1.msra.mxu0 0.0
  %4438 = vmatprep.subr.mxu0 0.0
  %4439 = vmatpush1.msra.mxu0 0.0
  %4440 = vmatprep.subr.mxu0 0.0
  %4441 = vmatpush1.msra.mxu0 0.0
  %4442 = vmatprep.subr.mxu0 0.0
  %4443 = vmatpush1.msra.mxu0 0.0
  %4444 = vmatprep.subr.mxu0 0.0
  %4445 = vmatpush1.msra.mxu0 0.0
  %4446 = vmatprep.subr.mxu0 0.0
  %4447 = vmatpush1.msra.mxu0 0.0
  %4448 = vmatprep.subr.mxu0 0.0
  %4449 = vmatpush1.msra.mxu0 0.0
  %4450 = vmatprep.subr.mxu0 0.0
  %4451 = vmatpush1.msra.mxu0 0.0
  %4452 = vmatprep.subr.mxu0 0.0
  %4453 = vmatpush1.msra.mxu0 0.0
  %4454 = vmatprep.subr.mxu0 0.0
  %4455 = vmatpush1.msra.mxu0 0.0
  %4456 = vmatprep.subr.mxu0 0.0
  %4457 = vmatpush1.msra.mxu0 0.0
  %4458 = vmatprep.subr.mxu0 0.0
  %4459 = vmatpush1.msra.mxu0 0.0
  %4460 = vmatprep.mubr.f32.mxu0 0.0
  %4461 = vmatmul.mubr.f32.gmra.mrb[0].mxu0 %v4391
  %v4462 = vpop.f32.mrb[0].mxu0
  %v4463 = vadd.f32 0.0, %v4462
  %v4464 = vpop.f32.mrb[0].mxu0
  %4465 = vmatprep.mubr.f32.mxu0 0.0
  %4466 = vmatmul.mubr.f32.gmra.mrb[0].mxu0 %v4394
  %v4467 = vpop.f32.mrb[0].mxu0
  %v4468 = vadd.f32 0.0, %v4467
  %v4469 = vpop.f32.mrb[0].mxu0
  %4470 = vdwg.mxu0
  %v4472 = vsel %vm1124, %v4220, 0
  %v4475 = vsel %vm1124, %v4225, 0
  %4477 = vmatprep.subr.mxu0 0.0
  %4478 = vmatpush1.msra.mxu0 %v2552
  %4479 = vmatprep.subr.mxu0 0.0
  %4480 = vmatpush1.msra.mxu0 0.0
  %4481 = vmatprep.subr.mxu0 0.0
  %4482 = vmatpush1.msra.mxu0 0.0
  %4483 = vmatprep.subr.mxu0 0.0
  %4484 = vmatpush1.msra.mxu0 0.0
  %4485 = vmatprep.subr.mxu0 0.0
  %4486 = vmatpush1.msra.mxu0 0.0
  %4487 = vmatprep.subr.mxu0 0.0
  %4488 = vmatpush1.msra.mxu0 0.0
  %4489 = vmatprep.subr.mxu0 0.0
  %4490 = vmatpush1.msra.mxu0 0.0
  %4491 = vmatprep.subr.mxu0 0.0
  %4492 = vmatpush1.msra.mxu0 0.0
  %4493 = vmatprep.subr.mxu0 0.0
  %4494 = vmatpush1.msra.mxu0 0.0
  %4495 = vmatprep.subr.mxu0 0.0
  %4496 = vmatpush1.msra.mxu0 0.0
  %4497 = vmatprep.subr.mxu0 0.0
  %4498 = vmatpush1.msra.mxu0 0.0
  %4499 = vmatprep.subr.mxu0 0.0
  %4500 = vmatpush1.msra.mxu0 0.0
  %4501 = vmatprep.subr.mxu0 0.0
  %4502 = vmatpush1.msra.mxu0 0.0
  %4503 = vmatprep.subr.mxu0 0.0
  %4504 = vmatpush1.msra.mxu0 0.0
  %4505 = vmatprep.subr.mxu0 0.0
  %4506 = vmatpush1.msra.mxu0 0.0
  %4507 = vmatprep.subr.mxu0 0.0
  %4508 = vmatpush1.msra.mxu0 0.0
  %4509 = vmatprep.subr.mxu0 0.0
  %4510 = vmatpush1.msra.mxu0 0.0
  %4511 = vmatprep.subr.mxu0 0.0
  %4512 = vmatpush1.msra.mxu0 0.0
  %4513 = vmatprep.subr.mxu0 0.0
  %4514 = vmatpush1.msra.mxu0 0.0
  %4515 = vmatprep.subr.mxu0 0.0
  %4516 = vmatpush1.msra.mxu0 0.0
  %4517 = vmatprep.subr.mxu0 0.0
  %4518 = vmatpush1.msra.mxu0 0.0
  %4519 = vmatprep.subr.mxu0 0.0
  %4520 = vmatpush1.msra.mxu0 0.0
  %4521 = vmatprep.subr.mxu0 0.0
  %4522 = vmatpush1.msra.mxu0 0.0
  %4523 = vmatprep.subr.mxu0 0.0
  %4524 = vmatpush1.msra.mxu0 0.0
  %4525 = vmatprep.subr.mxu0 0.0
  %4526 = vmatpush1.msra.mxu0 0.0
  %4527 = vmatprep.subr.mxu0 0.0
  %4528 = vmatpush1.msra.mxu0 0.0
  %4529 = vmatprep.subr.mxu0 0.0
  %4530 = vmatpush1.msra.mxu0 0.0
  %4531 = vmatprep.subr.mxu0 0.0
  %4532 = vmatpush1.msra.mxu0 0.0
  %4533 = vmatprep.subr.mxu0 0.0
  %4534 = vmatpush1.msra.mxu0 0.0
  %4535 = vmatprep.subr.mxu0 0.0
  %4536 = vmatpush1.msra.mxu0 0.0
  %4537 = vmatprep.subr.mxu0 0.0
  %4538 = vmatpush1.msra.mxu0 0.0
  %4539 = vmatprep.subr.mxu0 0.0
  %4540 = vmatpush1.msra.mxu0 0.0
  %4541 = vmatprep.mubr.f32.mxu0 0.0
  %4542 = vmatmul.mubr.f32.gmra.mrb[0].mxu0 %v4472
  %v4543 = vpop.f32.mrb[0].mxu0
  %v4544 = vadd.f32 0.0, %v4543
  %v4545 = vpop.f32.mrb[0].mxu0
  %4546 = vmatprep.mubr.f32.mxu0 0.0
  %4547 = vmatmul.mubr.f32.gmra.mrb[0].mxu0 %v4475
  %v4548 = vpop.f32.mrb[0].mxu0
  %v4549 = vadd.f32 0.0, %v4548
  %v4550 = vpop.f32.mrb[0].mxu0
  %4551 = vdwg.mxu0
  %v4552 = vadd.f32 %v4301, %v4382
  %v4553 = vadd.f32 %v4306, %v4387
  %v4554 = vadd.f32 %v4552, %v4463
  %v4555 = vadd.f32 %v4553, %v4468
  %v4556 = vadd.f32 %v4554, %v4544
  %v4557 = vadd.f32 %v4555, %v4549
  %v4558 = vlaneseq
  %v4559 = vshrl.u32 %v4558, 7
  %v4560 = vsub.s32 0, %v4559
  %v4561 = vrot.slane %v2553, %v4560
  %v4562 = vadd.f32 %v4556, %v4561
  %v4563 = vadd.f32 %v4557, %v4561
  %v4564 = vadd.f32 %v2485, %v4562
  %v4565 = vadd.f32 %v2486, %v4563
  %v4566 = vsel %vm214, %v4564, 0.0
  %4567 = vadd.xlane.f32.xlu0 %v4566
  %v4568 = vpop.xlane.xlu0 %4567
  %v4569 = vsel %vm214, %v4565, 0.0
  %4570 = vadd.xlane.f32.xlu0 %v4569
  %v4571 = vpop.xlane.xlu0 %4570
  %v4572 = vmul.f32 %v4568, %v2230
  %v4573 = vmul.f32 %v4571, %v2230
  %v4574 = vsub.f32 %v4564, %v4572
  %v4575 = vsub.f32 %v4565, %v4573
  %v4576 = vmul.f32 %v4574, %v4574
  %v4577 = vmul.f32 %v4575, %v4575
  %v4578 = vsel %vm214, %v4576, 0.0
  %4579 = vadd.xlane.f32.xlu0 %v4578
  %v4580 = vpop.xlane.xlu0 %4579
  %v4581 = vsel %vm214, %v4577, 0.0
  %4582 = vadd.xlane.f32.xlu0 %v4581
  %v4583 = vpop.xlane.xlu0 %4582
  %v4584 = vmul.f32 %v4580, %v2230
  %v4585 = vmul.f32 %v4583, %v2230
  %v4586 = vadd.f32 %v4584, 1e-05
  %v4587 = vadd.f32 %v4585, 1e-05
  %v4588 = vrsqrt.pop %v4586
  %v4589 = vrsqrt.pop %v4587
  %v4590 = vmul.f32 %v4574, %v4588
  %v4591 = vmul.f32 %v4575, %v4589
  %v4592 = vlaneseq
  %v4593 = vshrl.u32 %v4592, 7
  %v4594 = vsub.s32 0, %v4593
  %v4595 = vrot.slane %v2554, %v4594
  %v4596 = vmul.f32 %v4590, %v4595
  %v4597 = vmul.f32 %v4591, %v4595
  %v4598 = vlaneseq
  %v4599 = vshrl.u32 %v4598, 7
  %v4600 = vsub.s32 0, %v4599
  %v4601 = vrot.slane %v2555, %v4600
  %v4602 = vadd.f32 %v4596, %v4601
  %v4603 = vadd.f32 %v4597, %v4601
  %v4604 = vld [vmem:[%s1 + $0xd0] sm:$0xff]
  %v4605 = vld [vmem:[%s1 + $0xd8] sm:$0xff]
  %v4606 = vld [vmem:[%s1 + $0xe0] sm:$0xff]
  %v4607 = vld [vmem:[%s1 + $0xe8] sm:$0xff]
  %v4608 = vld [vmem:[%s1 + $0xf0] sm:$0xff]
  %v4609 = vld [vmem:[%s1 + $0xf8] sm:$0xff]
  %v4610 = vld [vmem:[%s1 + $0x100] sm:$0xff]
  %v4611 = vld [vmem:[%s1 + $0x108] sm:$0xff]
  %v4612 = vld [vmem:[%s1 + $0x110] sm:$0xff]
  %v4613 = vld [vmem:[%s1 + $0x118] sm:$0xff]
  %v4614 = vld [vmem:[%s1 + $0x120] sm:$0xff]
  %v4615 = vld [vmem:[%s1 + $0x128] sm:$0xff]
  %v4616 = vlaneseq
  %v4617 = vshrl.u32 %v4616, 7
  %v4618 = vsub.s32 0, %v4617
  %v4619 = vrot.slane %v2558, %v4618
  %v4621 = vsel %vm214, %v4602, 0
  %v4624 = vsel %vm214, %v4603, 0
  %4626 = vmatprep.subr.mxu0 0.0
  %4627 = vmatpush1.msra.mxu0 %v4604
  %4628 = vmatprep.subr.mxu0 0.0
  %4629 = vmatpush1.msra.mxu0 %v4605
  %4630 = vmatprep.subr.mxu0 0.0
  %4631 = vmatpush1.msra.mxu0 %v4606
  %4632 = vmatprep.subr.mxu0 0.0
  %4633 = vmatpush1.msra.mxu0 %v4607
  %4634 = vmatprep.subr.mxu0 0.0
  %4635 = vmatpush1.msra.mxu0 0.0
  %4636 = vmatprep.subr.mxu0 0.0
  %4637 = vmatpush1.msra.mxu0 0.0
  %4638 = vmatprep.subr.mxu0 0.0
  %4639 = vmatpush1.msra.mxu0 0.0
  %4640 = vmatprep.subr.mxu0 0.0
  %4641 = vmatpush1.msra.mxu0 0.0
  %4642 = vmatprep.subr.mxu0 0.0
  %4643 = vmatpush1.msra.mxu0 0.0
  %4644 = vmatprep.subr.mxu0 0.0
  %4645 = vmatpush1.msra.mxu0 0.0
  %4646 = vmatprep.subr.mxu0 0.0
  %4647 = vmatpush1.msra.mxu0 0.0
  %4648 = vmatprep.subr.mxu0 0.0
  %4649 = vmatpush1.msra.mxu0 0.0
  %4650 = vmatprep.subr.mxu0 0.0
  %4651 = vmatpush1.msra.mxu0 0.0
  %4652 = vmatprep.subr.mxu0 0.0
  %4653 = vmatpush1.msra.mxu0 0.0
  %4654 = vmatprep.subr.mxu0 0.0
  %4655 = vmatpush1.msra.mxu0 0.0
  %4656 = vmatprep.subr.mxu0 0.0
  %4657 = vmatpush1.msra.mxu0 0.0
  %4658 = vmatprep.subr.mxu0 0.0
  %4659 = vmatpush1.msra.mxu0 0.0
  %4660 = vmatprep.subr.mxu0 0.0
  %4661 = vmatpush1.msra.mxu0 0.0
  %4662 = vmatprep.subr.mxu0 0.0
  %4663 = vmatpush1.msra.mxu0 0.0
  %4664 = vmatprep.subr.mxu0 0.0
  %4665 = vmatpush1.msra.mxu0 0.0
  %4666 = vmatprep.subr.mxu0 0.0
  %4667 = vmatpush1.msra.mxu0 0.0
  %4668 = vmatprep.subr.mxu0 0.0
  %4669 = vmatpush1.msra.mxu0 0.0
  %4670 = vmatprep.subr.mxu0 0.0
  %4671 = vmatpush1.msra.mxu0 0.0
  %4672 = vmatprep.subr.mxu0 0.0
  %4673 = vmatpush1.msra.mxu0 0.0
  %4674 = vmatprep.subr.mxu0 0.0
  %4675 = vmatpush1.msra.mxu0 0.0
  %4676 = vmatprep.subr.mxu0 0.0
  %4677 = vmatpush1.msra.mxu0 0.0
  %4678 = vmatprep.subr.mxu0 0.0
  %4679 = vmatpush1.msra.mxu0 0.0
  %4680 = vmatprep.subr.mxu0 0.0
  %4681 = vmatpush1.msra.mxu0 0.0
  %4682 = vmatprep.subr.mxu0 0.0
  %4683 = vmatpush1.msra.mxu0 0.0
  %4684 = vmatprep.subr.mxu0 0.0
  %4685 = vmatpush1.msra.mxu0 0.0
  %4686 = vmatprep.subr.mxu0 0.0
  %4687 = vmatpush1.msra.mxu0 0.0
  %4688 = vmatprep.subr.mxu0 0.0
  %4689 = vmatpush1.msra.mxu0 0.0
  %4690 = vmatprep.mubr.f32.mxu0 0.0
  %4691 = vmatmul.mubr.f32.gmra.mrb[0].mxu0 %v4621
  %v4692 = vpop.f32.mrb[0].mxu0
  %v4693 = vadd.f32 %v4619, %v4692
  %v4694 = vpop.f32.mrb[0].mxu0
  %4695 = vmatprep.mubr.f32.mxu0 0.0
  %4696 = vmatmul.mubr.f32.gmra.mrb[0].mxu0 %v4624
  %v4697 = vpop.f32.mrb[0].mxu0
  %v4698 = vadd.f32 %v4619, %v4697
  %v4699 = vpop.f32.mrb[0].mxu0
  %4700 = vdwg.mxu0
  %v4701 = vmax.f32 %v4693, 0.0
  %v4702 = vmax.f32 %v4698, 0.0
  %v4703 = vlaneseq
  %v4704 = vshrl.u32 %v4703, 7
  %v4705 = vsub.s32 0, %v4704
  %v4706 = vrot.slane %v2559, %v4705
  %v4708 = vsel %vm45, %v4701, 0
  %v4711 = vsel %vm45, %v4702, 0
  %4713 = vmatprep.subr.mxu0 0.0
  %4714 = vmatpush1.msra.mxu0 %v4608
  %4715 = vmatprep.subr.mxu0 0.0
  %4716 = vmatpush1.msra.mxu0 %v4609
  %4717 = vmatprep.subr.mxu0 0.0
  %4718 = vmatpush1.msra.mxu0 %v4610
  %4719 = vmatprep.subr.mxu0 0.0
  %4720 = vmatpush1.msra.mxu0 %v4611
  %4721 = vmatprep.subr.mxu0 0.0
  %4722 = vmatpush1.msra.mxu0 %v4612
  %4723 = vmatprep.subr.mxu0 0.0
  %4724 = vmatpush1.msra.mxu0 %v4613
  %4725 = vmatprep.subr.mxu0 0.0
  %4726 = vmatpush1.msra.mxu0 %v4614
  %4727 = vmatprep.subr.mxu0 0.0
  %4728 = vmatpush1.msra.mxu0 %v4615
  %4729 = vmatprep.subr.mxu0 0.0
  %4730 = vmatpush1.msra.mxu0 0.0
  %4731 = vmatprep.subr.mxu0 0.0
  %4732 = vmatpush1.msra.mxu0 0.0
  %4733 = vmatprep.subr.mxu0 0.0
  %4734 = vmatpush1.msra.mxu0 0.0
  %4735 = vmatprep.subr.mxu0 0.0
  %4736 = vmatpush1.msra.mxu0 0.0
  %4737 = vmatprep.subr.mxu0 0.0
  %4738 = vmatpush1.msra.mxu0 0.0
  %4739 = vmatprep.subr.mxu0 0.0
  %4740 = vmatpush1.msra.mxu0 0.0
  %4741 = vmatprep.subr.mxu0 0.0
  %4742 = vmatpush1.msra.mxu0 0.0
  %4743 = vmatprep.subr.mxu0 0.0
  %4744 = vmatpush1.msra.mxu0 0.0
  %4745 = vmatprep.subr.mxu0 0.0
  %4746 = vmatpush1.msra.mxu0 0.0
  %4747 = vmatprep.subr.mxu0 0.0
  %4748 = vmatpush1.msra.mxu0 0.0
  %4749 = vmatprep.subr.mxu0 0.0
  %4750 = vmatpush1.msra.mxu0 0.0
  %4751 = vmatprep.subr.mxu0 0.0
  %4752 = vmatpush1.msra.mxu0 0.0
  %4753 = vmatprep.subr.mxu0 0.0
  %4754 = vmatpush1.msra.mxu0 0.0
  %4755 = vmatprep.subr.mxu0 0.0
  %4756 = vmatpush1.msra.mxu0 0.0
  %4757 = vmatprep.subr.mxu0 0.0
  %4758 = vmatpush1.msra.mxu0 0.0
  %4759 = vmatprep.subr.mxu0 0.0
  %4760 = vmatpush1.msra.mxu0 0.0
  %4761 = vmatprep.subr.mxu0 0.0
  %4762 = vmatpush1.msra.mxu0 0.0
  %4763 = vmatprep.subr.mxu0 0.0
  %4764 = vmatpush1.msra.mxu0 0.0
  %4765 = vmatprep.subr.mxu0 0.0
  %4766 = vmatpush1.msra.mxu0 0.0
  %4767 = vmatprep.subr.mxu0 0.0
  %4768 = vmatpush1.msra.mxu0 0.0
  %4769 = vmatprep.subr.mxu0 0.0
  %4770 = vmatpush1.msra.mxu0 0.0
  %4771 = vmatprep.subr.mxu0 0.0
  %4772 = vmatpush1.msra.mxu0 0.0
  %4773 = vmatprep.subr.mxu0 0.0
  %4774 = vmatpush1.msra.mxu0 0.0
  %4775 = vmatprep.subr.mxu0 0.0
  %4776 = vmatpush1.msra.mxu0 0.0
  %4777 = vmatprep.mubr.f32.mxu0 0.0
  %4778 = vmatmul.mubr.f32.gmra.mrb[0].mxu0 %v4708
  %v4779 = vpop.f32.mrb[0].mxu0
  %v4780 = vadd.f32 %v4706, %v4779
  %v4781 = vpop.f32.mrb[0].mxu0
  %4782 = vmatprep.mubr.f32.mxu0 0.0
  %4783 = vmatmul.mubr.f32.gmra.mrb[0].mxu0 %v4711
  %v4784 = vpop.f32.mrb[0].mxu0
  %v4785 = vadd.f32 %v4706, %v4784
  %v4786 = vpop.f32.mrb[0].mxu0
  %4787 = vdwg.mxu0
  %v4788 = vadd.f32 %v4602, %v4780
  %v4789 = vadd.f32 %v4603, %v4785
  %v4790 = vsel %vm214, %v4788, 0.0
  %4791 = vadd.xlane.f32.xlu0 %v4790
  %v4792 = vpop.xlane.xlu0 %4791
  %v4793 = vsel %vm214, %v4789, 0.0
  %4794 = vadd.xlane.f32.xlu0 %v4793
  %v4795 = vpop.xlane.xlu0 %4794
  %v4796 = vmul.f32 %v4792, %v2230
  %v4797 = vmul.f32 %v4795, %v2230
  %v4798 = vsub.f32 %v4788, %v4796
  %v4799 = vsub.f32 %v4789, %v4797
  %v4800 = vmul.f32 %v4798, %v4798
  %v4801 = vmul.f32 %v4799, %v4799
  %v4802 = vsel %vm214, %v4800, 0.0
  %4803 = vadd.xlane.f32.xlu0 %v4802
  %v4804 = vpop.xlane.xlu0 %4803
  %v4805 = vsel %vm214, %v4801, 0.0
  %4806 = vadd.xlane.f32.xlu0 %v4805
  %v4807 = vpop.xlane.xlu0 %4806
  %v4808 = vmul.f32 %v4804, %v2230
  %v4809 = vmul.f32 %v4807, %v2230
  %v4810 = vadd.f32 %v4808, 1e-05
  %v4811 = vadd.f32 %v4809, 1e-05
  %v4812 = vrsqrt.pop %v4810
  %v4813 = vrsqrt.pop %v4811
  %v4814 = vmul.f32 %v4798, %v4812
  %v4815 = vmul.f32 %v4799, %v4813
  %v4816 = vlaneseq
  %v4817 = vshrl.u32 %v4816, 7
  %v4818 = vsub.s32 0, %v4817
  %v4819 = vrot.slane %v2556, %v4818
  %v4820 = vmul.f32 %v4814, %v4819
  %v4821 = vmul.f32 %v4815, %v4819
  %v4822 = vlaneseq
  %v4823 = vshrl.u32 %v4822, 7
  %v4824 = vsub.s32 0, %v4823
  %v4825 = vrot.slane %v2557, %v4824
  %v4826 = vadd.f32 %v4820, %v4825
  %v4827 = vadd.f32 %v4821, %v4825
  %v4828 = vld [vmem:[%s1 + $0x50] sm:$0xff]
  %v4829 = vld [vmem:[%s1 + $0x58] sm:$0xff]
  %v4830 = vld [vmem:[%s1 + $0x60] sm:$0xff]
  %v4831 = vld [vmem:[%s1 + $0x68] sm:$0xff]
  %v4832 = vld [vmem:[%s2 + $0x10] sm:$0x1]
  %v4833 = vlaneseq
  %v4834 = vshrl.u32 %v4833, 7
  %v4835 = vsub.s32 0, %v4834
  %v4836 = vrot.slane %v4832, %v4835
  %v4838 = vsel %vm214, %v4826, 0
  %v4841 = vsel %vm214, %v4827, 0
  %4843 = vmatprep.subr.mxu0 0.0
  %4844 = vmatpush1.msra.mxu0 %v4828
  %4845 = vmatprep.subr.mxu0 0.0
  %4846 = vmatpush1.msra.mxu0 %v4829
  %4847 = vmatprep.subr.mxu0 0.0
  %4848 = vmatpush1.msra.mxu0 %v4830
  %4849 = vmatprep.subr.mxu0 0.0
  %4850 = vmatpush1.msra.mxu0 %v4831
  %4851 = vmatprep.subr.mxu0 0.0
  %4852 = vmatpush1.msra.mxu0 0.0
  %4853 = vmatprep.subr.mxu0 0.0
  %4854 = vmatpush1.msra.mxu0 0.0
  %4855 = vmatprep.subr.mxu0 0.0
  %4856 = vmatpush1.msra.mxu0 0.0
  %4857 = vmatprep.subr.mxu0 0.0
  %4858 = vmatpush1.msra.mxu0 0.0
  %4859 = vmatprep.subr.mxu0 0.0
  %4860 = vmatpush1.msra.mxu0 0.0
  %4861 = vmatprep.subr.mxu0 0.0
  %4862 = vmatpush1.msra.mxu0 0.0
  %4863 = vmatprep.subr.mxu0 0.0
  %4864 = vmatpush1.msra.mxu0 0.0
  %4865 = vmatprep.subr.mxu0 0.0
  %4866 = vmatpush1.msra.mxu0 0.0
  %4867 = vmatprep.subr.mxu0 0.0
  %4868 = vmatpush1.msra.mxu0 0.0
  %4869 = vmatprep.subr.mxu0 0.0
  %4870 = vmatpush1.msra.mxu0 0.0
  %4871 = vmatprep.subr.mxu0 0.0
  %4872 = vmatpush1.msra.mxu0 0.0
  %4873 = vmatprep.subr.mxu0 0.0
  %4874 = vmatpush1.msra.mxu0 0.0
  %4875 = vmatprep.subr.mxu0 0.0
  %4876 = vmatpush1.msra.mxu0 0.0
  %4877 = vmatprep.subr.mxu0 0.0
  %4878 = vmatpush1.msra.mxu0 0.0
  %4879 = vmatprep.subr.mxu0 0.0
  %4880 = vmatpush1.msra.mxu0 0.0
  %4881 = vmatprep.subr.mxu0 0.0
  %4882 = vmatpush1.msra.mxu0 0.0
  %4883 = vmatprep.subr.mxu0 0.0
  %4884 = vmatpush1.msra.mxu0 0.0
  %4885 = vmatprep.subr.mxu0 0.0
  %4886 = vmatpush1.msra.mxu0 0.0
  %4887 = vmatprep.subr.mxu0 0.0
  %4888 = vmatpush1.msra.mxu0 0.0
  %4889 = vmatprep.subr.mxu0 0.0
  %4890 = vmatpush1.msra.mxu0 0.0
  %4891 = vmatprep.subr.mxu0 0.0
  %4892 = vmatpush1.msra.mxu0 0.0
  %4893 = vmatprep.subr.mxu0 0.0
  %4894 = vmatpush1.msra.mxu0 0.0
  %4895 = vmatprep.subr.mxu0 0.0
  %4896 = vmatpush1.msra.mxu0 0.0
  %4897 = vmatprep.subr.mxu0 0.0
  %4898 = vmatpush1.msra.mxu0 0.0
  %4899 = vmatprep.subr.mxu0 0.0
  %4900 = vmatpush1.msra.mxu0 0.0
  %4901 = vmatprep.subr.mxu0 0.0
  %4902 = vmatpush1.msra.mxu0 0.0
  %4903 = vmatprep.subr.mxu0 0.0
  %4904 = vmatpush1.msra.mxu0 0.0
  %4905 = vmatprep.subr.mxu0 0.0
  %4906 = vmatpush1.msra.mxu0 0.0
  %4907 = vmatprep.mubr.f32.mxu0 0.0
  %4908 = vmatmul.mubr.f32.gmra.mrb[0].mxu0 %v4838
  %v4909 = vpop.f32.mrb[0].mxu0
  %v4910 = vadd.f32 %v4836, %v4909
  %v4911 = vpop.f32.mrb[0].mxu0
  %4912 = vmatprep.mubr.f32.mxu0 0.0
  %4913 = vmatmul.mubr.f32.gmra.mrb[0].mxu0 %v4841
  %v4914 = vpop.f32.mrb[0].mxu0
  %v4915 = vadd.f32 %v4836, %v4914
  %v4916 = vpop.f32.mrb[0].mxu0
  %4917 = vdwg.mxu0
  %4918 = vst [vmem:[%s5] sm:$0xff] %v4910
  %4919 = vst [vmem:[%s5 + $0x8] sm:$0xff] %v4915
  // Predicated region
  $region22: #{transformer_lm_forward.1} parent=0 // pred_check
    _
  $region23: #{transformer_lm_forward.1} parent=0 // pred_check_branch
    %4921 = sbr.rel (0) target = $region25
  $region24: #{transformer_lm_forward.1} parent=0 // pred_region
    _
  $region25: #{transformer_lm_forward.1} parent=0 // pred_fallthru
    _
  // Predicated region
  $region26: #{transformer_lm_forward.1} parent=0 // pred_check
    _
  $region27: #{transformer_lm_forward.1} parent=0 // pred_check_branch
    %4923 = sbr.rel (0) target = $region29
  $region28: #{transformer_lm_forward.1} parent=0 // pred_region
    _
  $region29: #{transformer_lm_forward.1} parent=0 // pred_fallthru
    _

</llo_original>
